<compile_context>
chip_gen: v7x
topology: tpu7x:2x2x1
jax: 0.10.0
libtpu: 0.0.40
codegen_flags: <defaults>
</compile_context>

<pallas_src>
import numpy as np

import jax
import jax.numpy as jnp
from jax import lax
from jax.experimental import pallas as pl
from jax.experimental.pallas import tpu as pltpu

_BN_EPS = 1e-5
_CH_ALIGN = 16            # channel padding (bf16 sublane packing is 16)


def _round_up(x, m):
    return (x + m - 1) // m * m


def _vmem_capacity_bytes():
    try:
        info = pltpu.get_tpu_info()
        for attr in ("vmem_capacity_bytes", "vmem_bytes", "vmem_capacity"):
            v = getattr(info, attr, None)
            if v:
                return int(v)
    except Exception:
        pass
    return 64 * 2 ** 20


# ---------------------------------------------------------------------------
# Fused residual-block Pallas kernel
#   stage 1: conv1(3x3) and `up` residual conv share one im2col + one matmul
#   stage 2: convT(as 3x3 conv) + bias(+BN) + residual add + ReLU
# All taps read a zero-padded flat-spatial buffer; outputs are masked so the
# pad regions stay exactly zero for the next consumer.
# ---------------------------------------------------------------------------
def _make_fused_block_kernel(cins_p, cout_p, lmm, front, lbuf, offsets):
    cin_tot = int(sum(cins_p))
    k1 = 9 * cin_tot
    k2 = 9 * cout_p
    n_in = len(cins_p)
    tail = lbuf - front - lmm
    ch_off = [0]
    for cp in cins_p:
        ch_off.append(ch_off[-1] + int(cp))

    def kernel(*refs):
        x_refs = refs[:n_in]
        (w1_ref, b1_ref, w2_ref, b2_ref, mask_ref,
         o_ref, col_ref, main_ref, resid_ref) = refs[n_in:]

        mask = mask_ref[...]                                    # (1, lmm) f32

        # ---- stage 1: stage 9 shifted slices once, one big-K matmul --------
        for t, off in enumerate(offsets):
            base = t * cin_tot
            for xi in range(n_in):
                cp = int(cins_p[xi])
                col_ref[base + ch_off[xi]:base + ch_off[xi] + cp, :] = \
                    x_refs[xi][:, off:off + lmm]
        acc1 = jnp.dot(w1_ref[...], col_ref[0:k1, :],
                       preferred_element_type=jnp.float32)      # (2*cout_p, lmm)
        acc1 = acc1 + b1_ref[...]
        resid_ref[...] = acc1[cout_p:2 * cout_p, :]             # up path (+BN)
        main = jnp.maximum(acc1[0:cout_p, :], 0.0) * mask       # conv1+BN+ReLU

        # intermediate activation kept in VMEM, padded flat layout, zero pads
        main_ref[:, 0:front] = jnp.zeros((cout_p, front), main_ref.dtype)
        main_ref[:, front + lmm:front + lmm + tail] = jnp.zeros(
            (cout_p, tail), main_ref.dtype)
        main_ref[:, front:front + lmm] = main.astype(main_ref.dtype)

        # ---- stage 2: convT(3x3) + BN + residual add + ReLU -----------------
        for t, off in enumerate(offsets):
            col_ref[t * cout_p:(t + 1) * cout_p, :] = main_ref[:, off:off + lmm]
        acc2 = jnp.dot(w2_ref[...], col_ref[0:k2, :],
                       preferred_element_type=jnp.float32)      # (cout_p, lmm)
        out = jnp.maximum(acc2 + b2_ref[...] + resid_ref[...], 0.0) * mask

        o_ref[:, 0:front] = jnp.zeros((cout_p, front), o_ref.dtype)
        o_ref[:, front + lmm:front + lmm + tail] = jnp.zeros(
            (cout_p, tail), o_ref.dtype)
        o_ref[:, front:front + lmm] = out.astype(o_ref.dtype)

    return kernel


def _fused_block_pallas(x_list, w1, b1, w2, b2, mask, *, cins_p, cout_p,
                        lmm, lbuf, front, offsets, out_dtype):
    n = x_list[0].shape[0]
    kmax = max(w1.shape[1], w2.shape[1])
    kernel = _make_fused_block_kernel(
        tuple(int(c) for c in cins_p), int(cout_p), int(lmm), int(front),
        int(lbuf), tuple(int(o) for o in offsets))

    in_specs = [pl.BlockSpec((None, int(cp), lbuf), lambda i: (i, 0, 0))
                for cp in cins_p]
    in_specs += [
        pl.BlockSpec(w1.shape, lambda i: (0, 0)),
        pl.BlockSpec(b1.shape, lambda i: (0, 0)),
        pl.BlockSpec(w2.shape, lambda i: (0, 0)),
        pl.BlockSpec(b2.shape, lambda i: (0, 0)),
        pl.BlockSpec(mask.shape, lambda i: (0, 0)),
    ]
    out_spec = pl.BlockSpec((None, cout_p, lbuf), lambda i: (i, 0, 0))

    scratch = [
        pltpu.VMEM((kmax, lmm), jnp.bfloat16),      # shared im2col staging
        pltpu.VMEM((cout_p, lbuf), jnp.bfloat16),   # intermediate activation
        pltpu.VMEM((cout_p, lmm), jnp.float32),     # residual (up path)
    ]

    out_isz = jnp.dtype(out_dtype).itemsize
    need = (sum(2 * int(cp) * lbuf * 2 for cp in cins_p)     # dbl-buffered x
            + 2 * cout_p * lbuf * out_isz                    # dbl-buffered out
            + 2 * (w1.size + w2.size) * 2                    # bf16 weights
            + 2 * (b1.size + b2.size + mask.size) * 4
            + kmax * lmm * 2 + cout_p * lbuf * 2 + cout_p * lmm * 4
            + (w1.shape[0] + cout_p) * lmm * 4               # f32 matmul results
            + (4 << 20))
    cap = _vmem_capacity_bytes()
    vmem_bytes = int(max(min(need, cap - (16 << 20)), 16 << 20))

    flops = int(2 * n * (w1.shape[0] * w1.shape[1] + cout_p * w2.shape[1]) * lmm)
    bytes_accessed = int(sum(x.size * x.dtype.itemsize for x in x_list)
                         + (w1.size + w2.size) * 2
                         + (b1.size + b2.size + mask.size) * 4
                         + n * cout_p * lbuf * out_isz)

    return pl.pallas_call(
        kernel,
        out_shape=jax.ShapeDtypeStruct((n, cout_p, lbuf), out_dtype),
        grid_spec=pltpu.PrefetchScalarGridSpec(
            num_scalar_prefetch=0,
            grid=(n,),
            in_specs=in_specs,
            out_specs=out_spec,
            scratch_shapes=scratch),
        compiler_params=pltpu.CompilerParams(
            dimension_semantics=("parallel",),
            vmem_limit_bytes=vmem_bytes),
        cost_estimate=pl.CostEstimate(
            flops=flops, transcendentals=0, bytes_accessed=bytes_accessed),
    )(*x_list, w1, b1, w2, b2, mask)


# ---------------------------------------------------------------------------
# Weight preparation: BN folding, ConvTranspose rewrite, tap stacking
# ---------------------------------------------------------------------------
def _fold_bn(w, b, bn):
    gamma, beta, mean, var = bn
    scale = gamma / jnp.sqrt(var + _BN_EPS)
    return w * scale[:, None, None, None], (b - mean) * scale + beta


def _convT_as_conv_weight(w_t):
    # ConvTranspose2d(k=3, stride=1, pad=1) == conv3x3(pad=1) with
    # channel-transposed, spatially flipped weights.
    return jnp.flip(jnp.transpose(w_t, (1, 0, 2, 3)), axis=(2, 3))


def _stack_taps_multi(w_list, cins_p):
    """w_list[i]: (Cout, Cin_i, 3, 3) -> (Cout, 9*sum(cins_p)); tap-major
    columns, each input's channel block zero-padded to cins_p[i]."""
    parts = []
    for dy in range(3):
        for dx in range(3):
            for w, cp in zip(w_list, cins_p):
                blk = w[:, :, dy, dx]
                parts.append(jnp.pad(blk, ((0, 0), (0, int(cp) - blk.shape[1]))))
    return jnp.concatenate(parts, axis=1)


def _stage1_weights(w_main_list, b_main, w_res_list, b_res, cins_p, cout, cout_p):
    wm = _stack_taps_multi(w_main_list, cins_p)
    wr = _stack_taps_multi(w_res_list, cins_p)
    k1 = wm.shape[1]
    w1 = jnp.zeros((2 * cout_p, k1), jnp.float32)
    w1 = w1.at[0:cout].set(wm).at[cout_p:cout_p + cout].set(wr)
    b1 = jnp.zeros((2 * cout_p, 1), jnp.float32)
    b1 = b1.at[0:cout, 0].set(b_main).at[cout_p:cout_p + cout, 0].set(b_res)
    return w1.astype(jnp.bfloat16), b1


def _stage2_weights(w, b, cout, cout_p):
    ws = _stack_taps_multi([w], (cout_p,))
    w2 = jnp.zeros((cout_p, ws.shape[1]), jnp.float32).at[0:cout].set(ws)
    b2 = jnp.zeros((cout_p, 1), jnp.float32).at[0:cout, 0].set(b)
    return w2.astype(jnp.bfloat16), b2


# ---------------------------------------------------------------------------
# Plain-JAX data movement helpers (upsample matrices / crop / layout)
# ---------------------------------------------------------------------------
def _bilinear_matrix(out_size, in_size):
    """1-D bilinear interpolation matrix, align_corners=True (torch Upsample)."""
    if in_size == 1:
        return np.ones((out_size, 1), np.float32)
    if out_size == 1:
        m = np.zeros((1, in_size), np.float32)
        m[0, 0] = 1.0
        return m
    src = np.arange(out_size, dtype=np.float64) * (in_size - 1) / (out_size - 1)
    i0 = np.clip(np.floor(src).astype(np.int64), 0, in_size - 2)
    frac = src - i0
    m = np.zeros((out_size, in_size), np.float64)
    m[np.arange(out_size), i0] += 1.0 - frac
    m[np.arange(out_size), i0 + 1] += frac
    return m.astype(np.float32)


def bilinear_upsample_x2(x):
    n, c, h, w = x.shape
    ah = jnp.asarray(_bilinear_matrix(2 * h, h))
    aw = jnp.asarray(_bilinear_matrix(2 * w, w))
    return jnp.einsum('ph,qw,nchw->ncpq', ah, aw, x)


def _valid_mask(h, w, lmm):
    hp, wp = h + 2, w + 2
    m = np.zeros((1, lmm), np.float32)
    idx = np.arange(hp * wp)
    r, c = idx // wp, idx % wp
    m[0, :hp * wp] = ((r >= 1) & (r <= h) & (c >= 1) & (c <= w)).astype(np.float32)
    return jnp.asarray(m)


def _to_flat(x, c_p, front, lbuf, dtype=jnp.bfloat16):
    """(N, C, H, W) -> (N, c_p, lbuf) zero-padded flat-spatial layout."""
    n, c, h, w = x.shape
    hp, wp = h + 2, w + 2
    xp = jnp.pad(x, ((0, 0), (0, c_p - c), (1, 1), (1, 1)))
    xf = xp.reshape(n, c_p, hp * wp)
    xf = jnp.pad(xf, ((0, 0), (0, 0), (front, lbuf - front - hp * wp)))
    return xf.astype(dtype)


def _pad_or_crop(x, pad):
    """torch F.pad on the last two dims: pad=(left,right,top,bottom); neg=crop."""
    left, right, top, bottom = pad
    if left < 0:
        x = x[:, :, :, -left:]
    if right < 0:
        x = x[:, :, :, :x.shape[3] + right]
    if top < 0:
        x = x[:, :, -top:, :]
    if bottom < 0:
        x = x[:, :, :x.shape[2] + bottom, :]
    if any(p > 0 for p in (left, right, top, bottom)):
        x = jnp.pad(x, ((0, 0), (0, 0),
                        (max(top, 0), max(bottom, 0)),
                        (max(left, 0), max(right, 0))))
    return x


def _crop_combine_to(x2, th, tw):
    diff_y = x2.shape[2] - th
    diff_x = x2.shape[3] - tw
    x2 = _pad_or_crop(x2, (-diff_x // 2, -diff_x // 2, -diff_y // 2, -diff_y // 2))
    diff_y = x2.shape[2] - th
    diff_x = x2.shape[3] - tw
    x2 = _pad_or_crop(x2, (-diff_x, 0, -diff_y, 0))
    return x2


def crop_combine(x1, x2):
    return _crop_combine_to(x2, x1.shape[2], x1.shape[3])


# ---------------------------------------------------------------------------
# Parameter init (matches the PyTorch module's layer shapes / defaults)
# ---------------------------------------------------------------------------
def _conv_init(key, cout, cin, k):
    kw_, kb_ = jax.random.split(key)
    bound = 1.0 / float(np.sqrt(cin * k * k))
    w = jax.random.uniform(kw_, (cout, cin, k, k), jnp.float32, -bound, bound)
    b = jax.random.uniform(kb_, (cout,), jnp.float32, -bound, bound)
    return w, b


def _convT_init(key, cin, cout, k):
    kw_, kb_ = jax.random.split(key)
    bound = 1.0 / float(np.sqrt(cout * k * k))
    w = jax.random.uniform(kw_, (cin, cout, k, k), jnp.float32, -bound, bound)
    b = jax.random.uniform(kb_, (cout,), jnp.float32, -bound, bound)
    return w, b


def _bn_init(key, c):
    k1, k2, k3, k4 = jax.random.split(key, 4)
    gamma = jax.random.uniform(k1, (c,), jnp.float32, 0.5, 1.5)
    beta = 0.1 * jax.random.normal(k2, (c,), jnp.float32)
    mean = 0.1 * jax.random.normal(k3, (c,), jnp.float32)
    var = jax.random.uniform(k4, (c,), jnp.float32, 0.5, 1.5)
    return gamma, beta, mean, var


def init_resnet18_blocks_up(input_channel, output_channel, key):
    keys = jax.random.split(key, 12)
    p = {}
    # block1 (up_sample=True, bilinear): UpLayer = Upsample + conv
    p['b1_conv1_w'], p['b1_conv1_b'] = _conv_init(keys[0], output_channel, input_channel, 3)
    p['b1_up_w'], p['b1_up_b'] = _conv_init(keys[1], output_channel, input_channel, 1)
    p['b1_upbn'] = _bn_init(keys[2], output_channel)
    p['b1_bn1'] = _bn_init(keys[3], output_channel)
    p['b1_conv2_w'], p['b1_conv2_b'] = _convT_init(keys[4], output_channel, output_channel, 3)
    p['b1_bn2'] = _bn_init(keys[5], output_channel)
    # block2 (up_sample=False)
    p['b2_conv1_w'], p['b2_conv1_b'] = _conv_init(keys[6], output_channel, 2 * output_channel, 3)
    p['b2_up_w'], p['b2_up_b'] = _conv_init(keys[7], output_channel, 2 * output_channel, 3)
    p['b2_bn1'] = _bn_init(keys[8], output_channel)
    p['b2_conv2_w'], p['b2_conv2_b'] = _convT_init(keys[9], output_channel, output_channel, 3)
    p['b2_bn2'] = _bn_init(keys[10], output_channel)
    return p


# ---------------------------------------------------------------------------
# Forward pass (Pallas path)
# ---------------------------------------------------------------------------
def resnet18_blocks_up_forward(params, x1, x2):
    p = params
    n, cin, h, w = x1.shape
    cout = p['b1_conv1_w'].shape[0]
    h2, w2d = 2 * h, 2 * w
    hp, wp = h2 + 2, w2d + 2
    lmm = _round_up(hp * wp, 128)
    front = _round_up(wp + 1, 128)
    lbuf = front + lmm + front
    offsets = [front - wp - 1 + dy * wp + dx for dy in range(3) for dx in range(3)]
    cin_p = _round_up(cin, _CH_ALIGN)
    cout_p = _round_up(cout, _CH_ALIGN)
    mask = _valid_mask(h2, w2d, lmm)

    # -- bilinear x2 upsample (align_corners=True), folded into one einsum
    #    whose matrices already carry the zero spatial border of the layout.
    ah = jnp.asarray(np.pad(_bilinear_matrix(h2, h), ((1, 1), (0, 0))))
    aw = jnp.asarray(np.pad(_bilinear_matrix(w2d, w), ((1, 1), (0, 0))))
    xu = jnp.einsum('ph,qw,nchw->ncpq', ah, aw, x1)            # (n,cin,hp,wp)
    xu = jnp.pad(xu, ((0, 0), (0, cin_p - cin), (0, 0), (0, 0)))
    xu = xu.reshape(n, cin_p, hp * wp)
    xu = jnp.pad(xu, ((0, 0), (0, 0), (front, lbuf - front - hp * wp)))
    xu = xu.astype(jnp.bfloat16)

    # -- block1 (up_sample=True, bilinear): one fused pallas_call
    w1m, b1m = _fold_bn(p['b1_conv1_w'], p['b1_conv1_b'], p['b1_bn1'])
    wu, bu = _fold_bn(p['b1_up_w'], p['b1_up_b'], p['b1_upbn'])
    wu3 = jnp.pad(wu, ((0, 0), (0, 0), (1, 1), (1, 1)))        # 1x1 -> centered 3x3
    w1_s, b1_s = _stage1_weights([w1m], b1m, [wu3], bu, (cin_p,), cout, cout_p)
    w2m, b2m = _fold_bn(_convT_as_conv_weight(p['b1_conv2_w']),
                        p['b1_conv2_b'], p['b1_bn2'])
    w2_s, b2_s = _stage2_weights(w2m, b2m, cout, cout_p)

    y1_flat = _fused_block_pallas(
        [xu], w1_s, b1_s, w2_s, b2_s, mask,
        cins_p=(cin_p,), cout_p=cout_p, lmm=lmm, lbuf=lbuf, front=front,
        offsets=offsets, out_dtype=jnp.bfloat16)

    # -- crop_combine; block2 consumes y1 and x2c as two channel groups,
    #    so the torch.cat is never materialized.
    x2c = _crop_combine_to(x2, h2, w2d)
    x2c_flat = _to_flat(x2c, cout_p, front, lbuf)

    # -- block2 (up_sample=False): one fused pallas_call
    w1b, b1b = _fold_bn(p['b2_conv1_w'], p['b2_conv1_b'], p['b2_bn1'])
    w1b_s, b1b_s = _stage1_weights(
        [w1b[:, :cout], w1b[:, cout:]], b1b,
        [p['b2_up_w'][:, :cout], p['b2_up_w'][:, cout:]], p['b2_up_b'],
        (cout_p, cout_p), cout, cout_p)
    w2b, b2b = _fold_bn(_convT_as_conv_weight(p['b2_conv2_w']),
                        p['b2_conv2_b'], p['b2_bn2'])
    w2b_s, b2b_s = _stage2_weights(w2b, b2b, cout, cout_p)

    out_flat = _fused_block_pallas(
        [y1_flat, x2c_flat], w1b_s, b1b_s, w2b_s, b2b_s, mask,
        cins_p=(cout_p, cout_p), cout_p=cout_p, lmm=lmm, lbuf=lbuf, front=front,
        offsets=offsets, out_dtype=jnp.float32)

    out = out_flat[:, :cout, front:front + hp * wp].reshape(n, cout, hp, wp)
    return out[:, :, 1:h2 + 1, 1:w2d + 1]


class Resnet18BlocksUpPallas:
    """JAX/Pallas inference-mode equivalent of the PyTorch Resnet18BlocksUp."""

    def __init__(self, input_channel, output_channel, key):
        self.params = init_resnet18_blocks_up(input_channel, output_channel, key)
        self._fwd = jax.jit(resnet18_blocks_up_forward)

    def __call__(self, x1, x2):
        return self._fwd(self.params, x1, x2)


# ---------------------------------------------------------------------------
# Pure-JAX reference (XLA convs + explicit BN) for correctness checking
# ---------------------------------------------------------------------------
def _conv_ref(x, w, b, padding):
    y = lax.conv_general_dilated(
        x, w, window_strides=(1, 1),
        padding=[(padding, padding), (padding, padding)],
        dimension_numbers=('NCHW', 'OIHW', 'NCHW'),
        precision=lax.Precision.HIGHEST)
    return y + b[None, :, None, None]


def _convT_ref(x, w_t, b):
    y = lax.conv_general_dilated(
        x, jnp.flip(w_t, (2, 3)), window_strides=(1, 1),
        padding=[(1, 1), (1, 1)],
        dimension_numbers=('NCHW', 'IOHW', 'NCHW'),
        precision=lax.Precision.HIGHEST)
    return y + b[None, :, None, None]


def _bn_ref(x, bn):
    gamma, beta, mean, var = bn
    inv = gamma / jnp.sqrt(var + _BN_EPS)
    return (x - mean[None, :, None, None]) * inv[None, :, None, None] \
        + beta[None, :, None, None]


def resnet18_blocks_up_reference(params, x1, x2):
    p = params
    relu = lambda v: jnp.maximum(v, 0.0)
    xu = bilinear_upsample_x2(x1)
    resid = _bn_ref(_conv_ref(xu, p['b1_up_w'], p['b1_up_b'], 0), p['b1_upbn'])
    h = relu(_bn_ref(_conv_ref(xu, p['b1_conv1_w'], p['b1_conv1_b'], 1), p['b1_bn1']))
    h = _bn_ref(_convT_ref(h, p['b1_conv2_w'], p['b1_conv2_b']), p['b1_bn2'])
    y1 = relu(resid + h)
    x2c = crop_combine(y1, x2)
    xcat = jnp.concatenate([y1, x2c], axis=1)
    resid2 = _conv_ref(xcat, p['b2_up_w'], p['b2_up_b'], 1)
    h2 = relu(_bn_ref(_conv_ref(xcat, p['b2_conv1_w'], p['b2_conv1_b'], 1), p['b2_bn1']))
    h2 = _bn_ref(_convT_ref(h2, p['b2_conv2_w'], p['b2_conv2_b']), p['b2_bn2'])
    return relu(resid2 + h2)


if __name__ == "__main__":
    key = jax.random.PRNGKey(0)
    k_x1, k_x2, k_m = jax.random.split(key, 3)

    batch, in_ch, out_ch, spatial = 2, 4, 8, 8
    # x1: decoder input (gets bilinearly upsampled 2x inside block1).
    x1 = jax.random.normal(k_x1, (batch, in_ch, spatial, spatial), jnp.float32)
    # x2: skip connection; slightly larger so crop_combine actually crops.
    x2 = jax.random.normal(
        k_x2, (batch, out_ch, 2 * spatial + 2, 2 * spatial + 2), jnp.float32)

    module = Resnet18BlocksUpPallas(in_ch, out_ch, k_m)
    y = jax.block_until_ready(module(x1, x2))

    ref = jax.block_until_ready(
        resnet18_blocks_up_reference(module.params, x1, x2))

    assert y.shape == (batch, out_ch, 2 * spatial, 2 * spatial), y.shape
    max_err = float(jnp.max(jnp.abs(y - ref)))
    # bf16 matmul inputs with f32 accumulation: expect ~1e-3..1e-2 abs error.
    assert max_err < 5e-2, max_err

    print("KERNEL_OK")
</pallas_src>

<mosaic_0001>
module attributes {stable_mosaic.version = 11 : i64} {
  func.func @kernel(%arg0: i32, %arg1: memref<1x16x640xbf16, #tpu.memory_space<vmem>>, %arg2: memref<32x144xbf16, #tpu.memory_space<vmem>>, %arg3: memref<32x1xf32, #tpu.memory_space<vmem>>, %arg4: memref<16x144xbf16, #tpu.memory_space<vmem>>, %arg5: memref<16x1xf32, #tpu.memory_space<vmem>>, %arg6: memref<1x384xf32, #tpu.memory_space<vmem>>, %arg7: memref<1x16x640xbf16, #tpu.memory_space<vmem>>, %arg8: memref<144x384xbf16, #tpu.memory_space<vmem>>, %arg9: memref<16x640xbf16, #tpu.memory_space<vmem>>, %arg10: memref<16x384xf32, #tpu.memory_space<vmem>>) attributes {dimension_semantics = [#tpu.dimension_semantics<parallel>], iteration_bounds = array<i64: 2>, scalar_prefetch = 0 : i64, scratch_operands = 3 : i64, tpu.core_type = #tpu.core_type<tc>, window_params = [{transform_indices = @transform_0, window_bounds = array<i64: 1, 16, 640>}, {pipeline_mode = #tpu.pipeline_mode<synchronous>, transform_indices = @transform_1, window_bounds = array<i64: 32, 144>}, {pipeline_mode = #tpu.pipeline_mode<synchronous>, transform_indices = @transform_2, window_bounds = array<i64: 32, 1>}, {pipeline_mode = #tpu.pipeline_mode<synchronous>, transform_indices = @transform_3, window_bounds = array<i64: 16, 144>}, {pipeline_mode = #tpu.pipeline_mode<synchronous>, transform_indices = @transform_4, window_bounds = array<i64: 16, 1>}, {pipeline_mode = #tpu.pipeline_mode<synchronous>, transform_indices = @transform_5, window_bounds = array<i64: 1, 384>}, {transform_indices = @transform_6, window_bounds = array<i64: 1, 16, 640>}]} {
    %c0 = arith.constant 0 : index
    %c0_0 = arith.constant 0 : index
    %0 = vector.load %arg6[%c0, %c0_0] : memref<1x384xf32, #tpu.memory_space<vmem>>, vector<1x384xf32>
    %c0_1 = arith.constant 0 : index
    %c0_2 = arith.constant 0 : index
    %c109 = arith.constant 109 : index
    %1 = vector.load %arg1[%c0_1, %c0_2, %c109] : memref<1x16x640xbf16, #tpu.memory_space<vmem>>, vector<1x16x384xbf16>
    %2 = vector.shape_cast %1 : vector<1x16x384xbf16> to vector<16x384xbf16>
    %c0_3 = arith.constant 0 : index
    %c0_4 = arith.constant 0 : index
    %3 = vector.load %arg8[%c0_3, %c0_4] : memref<144x384xbf16, #tpu.memory_space<vmem>>, vector<16x384xbf16>
    tpu.vector_store %arg8[%c0_3, %c0_4], %2 {strides = array<i32>} : memref<144x384xbf16, #tpu.memory_space<vmem>>, vector<16x384xbf16>,
    %c0_5 = arith.constant 0 : index
    %c0_6 = arith.constant 0 : index
    %c110 = arith.constant 110 : index
    %4 = vector.load %arg1[%c0_5, %c0_6, %c110] : memref<1x16x640xbf16, #tpu.memory_space<vmem>>, vector<1x16x384xbf16>
    %5 = vector.shape_cast %4 : vector<1x16x384xbf16> to vector<16x384xbf16>
    %c16 = arith.constant 16 : index
    %c0_7 = arith.constant 0 : index
    %6 = vector.load %arg8[%c16, %c0_7] : memref<144x384xbf16, #tpu.memory_space<vmem>>, vector<16x384xbf16>
    tpu.vector_store %arg8[%c16, %c0_7], %5 {strides = array<i32>} : memref<144x384xbf16, #tpu.memory_space<vmem>>, vector<16x384xbf16>,
    %c0_8 = arith.constant 0 : index
    %c0_9 = arith.constant 0 : index
    %c111 = arith.constant 111 : index
    %7 = vector.load %arg1[%c0_8, %c0_9, %c111] : memref<1x16x640xbf16, #tpu.memory_space<vmem>>, vector<1x16x384xbf16>
    %8 = vector.shape_cast %7 : vector<1x16x384xbf16> to vector<16x384xbf16>
    %c32 = arith.constant 32 : index
    %c0_10 = arith.constant 0 : index
    %9 = vector.load %arg8[%c32, %c0_10] : memref<144x384xbf16, #tpu.memory_space<vmem>>, vector<16x384xbf16>
    tpu.vector_store %arg8[%c32, %c0_10], %8 {strides = array<i32>} : memref<144x384xbf16, #tpu.memory_space<vmem>>, vector<16x384xbf16>,
    %c0_11 = arith.constant 0 : index
    %c0_12 = arith.constant 0 : index
    %c127 = arith.constant 127 : index
    %10 = vector.load %arg1[%c0_11, %c0_12, %c127] : memref<1x16x640xbf16, #tpu.memory_space<vmem>>, vector<1x16x384xbf16>
    %11 = vector.shape_cast %10 : vector<1x16x384xbf16> to vector<16x384xbf16>
    %c48 = arith.constant 48 : index
    %c0_13 = arith.constant 0 : index
    %12 = vector.load %arg8[%c48, %c0_13] : memref<144x384xbf16, #tpu.memory_space<vmem>>, vector<16x384xbf16>
    tpu.vector_store %arg8[%c48, %c0_13], %11 {strides = array<i32>} : memref<144x384xbf16, #tpu.memory_space<vmem>>, vector<16x384xbf16>,
    %c0_14 = arith.constant 0 : index
    %c0_15 = arith.constant 0 : index
    %c128 = arith.constant 128 : index
    %13 = vector.load %arg1[%c0_14, %c0_15, %c128] : memref<1x16x640xbf16, #tpu.memory_space<vmem>>, vector<1x16x384xbf16>
    %14 = vector.shape_cast %13 : vector<1x16x384xbf16> to vector<16x384xbf16>
    %c64 = arith.constant 64 : index
    %c0_16 = arith.constant 0 : index
    %15 = vector.load %arg8[%c64, %c0_16] : memref<144x384xbf16, #tpu.memory_space<vmem>>, vector<16x384xbf16>
    tpu.vector_store %arg8[%c64, %c0_16], %14 {strides = array<i32>} : memref<144x384xbf16, #tpu.memory_space<vmem>>, vector<16x384xbf16>,
    %c0_17 = arith.constant 0 : index
    %c0_18 = arith.constant 0 : index
    %c129 = arith.constant 129 : index
    %16 = vector.load %arg1[%c0_17, %c0_18, %c129] : memref<1x16x640xbf16, #tpu.memory_space<vmem>>, vector<1x16x384xbf16>
    %17 = vector.shape_cast %16 : vector<1x16x384xbf16> to vector<16x384xbf16>
    %c80 = arith.constant 80 : index
    %c0_19 = arith.constant 0 : index
    %18 = vector.load %arg8[%c80, %c0_19] : memref<144x384xbf16, #tpu.memory_space<vmem>>, vector<16x384xbf16>
    tpu.vector_store %arg8[%c80, %c0_19], %17 {strides = array<i32>} : memref<144x384xbf16, #tpu.memory_space<vmem>>, vector<16x384xbf16>,
    %c0_20 = arith.constant 0 : index
    %c0_21 = arith.constant 0 : index
    %c145 = arith.constant 145 : index
    %19 = vector.load %arg1[%c0_20, %c0_21, %c145] : memref<1x16x640xbf16, #tpu.memory_space<vmem>>, vector<1x16x384xbf16>
    %20 = vector.shape_cast %19 : vector<1x16x384xbf16> to vector<16x384xbf16>
    %c96 = arith.constant 96 : index
    %c0_22 = arith.constant 0 : index
    %21 = vector.load %arg8[%c96, %c0_22] : memref<144x384xbf16, #tpu.memory_space<vmem>>, vector<16x384xbf16>
    tpu.vector_store %arg8[%c96, %c0_22], %20 {strides = array<i32>} : memref<144x384xbf16, #tpu.memory_space<vmem>>, vector<16x384xbf16>,
    %c0_23 = arith.constant 0 : index
    %c0_24 = arith.constant 0 : index
    %c146 = arith.constant 146 : index
    %22 = vector.load %arg1[%c0_23, %c0_24, %c146] : memref<1x16x640xbf16, #tpu.memory_space<vmem>>, vector<1x16x384xbf16>
    %23 = vector.shape_cast %22 : vector<1x16x384xbf16> to vector<16x384xbf16>
    %c112 = arith.constant 112 : index
    %c0_25 = arith.constant 0 : index
    %24 = vector.load %arg8[%c112, %c0_25] : memref<144x384xbf16, #tpu.memory_space<vmem>>, vector<16x384xbf16>
    tpu.vector_store %arg8[%c112, %c0_25], %23 {strides = array<i32>} : memref<144x384xbf16, #tpu.memory_space<vmem>>, vector<16x384xbf16>,
    %c0_26 = arith.constant 0 : index
    %c0_27 = arith.constant 0 : index
    %c147 = arith.constant 147 : index
    %25 = vector.load %arg1[%c0_26, %c0_27, %c147] : memref<1x16x640xbf16, #tpu.memory_space<vmem>>, vector<1x16x384xbf16>
    %26 = vector.shape_cast %25 : vector<1x16x384xbf16> to vector<16x384xbf16>
    %c128_28 = arith.constant 128 : index
    %c0_29 = arith.constant 0 : index
    %27 = vector.load %arg8[%c128_28, %c0_29] : memref<144x384xbf16, #tpu.memory_space<vmem>>, vector<16x384xbf16>
    tpu.vector_store %arg8[%c128_28, %c0_29], %26 {strides = array<i32>} : memref<144x384xbf16, #tpu.memory_space<vmem>>, vector<16x384xbf16>,
    %c0_30 = arith.constant 0 : index
    %c0_31 = arith.constant 0 : index
    %28 = vector.load %arg2[%c0_30, %c0_31] : memref<32x144xbf16, #tpu.memory_space<vmem>>, vector<32x144xbf16>
    %c0_32 = arith.constant 0 : index
    %c0_33 = arith.constant 0 : index
    %29 = vector.load %arg8[%c0_32, %c0_33] : memref<144x384xbf16, #tpu.memory_space<vmem>>, vector<144x384xbf16>
    %cst = arith.constant dense<0.000000e+00> : vector<32x384xf32>
    %30 = tpu.matmul %28, %29, %cst {dimension_numbers = #tpu.dot_dimension_numbers<[1], [0], [0], [1], [0, 0, 1, 1], [], []>} : vector<32x144xbf16>, vector<144x384xbf16>, vector<32x384xf32> -> vector<32x384xf32>
    %c0_34 = arith.constant 0 : index
    %c0_35 = arith.constant 0 : index
    %31 = vector.load %arg3[%c0_34, %c0_35] : memref<32x1xf32, #tpu.memory_space<vmem>>, vector<32x1xf32>
    %32 = vector.broadcast %31 : vector<32x1xf32> to vector<32x384xf32>
    %33 = arith.addf %30, %32 : vector<32x384xf32>
    %34 = vector.extract_strided_slice %33 {offsets = [16, 0], sizes = [16, 384], strides = [1, 1]} : vector<32x384xf32> to vector<16x384xf32>
    %c0_36 = arith.constant 0 : index
    %c0_37 = arith.constant 0 : index
    %35 = vector.load %arg10[%c0_36, %c0_37] : memref<16x384xf32, #tpu.memory_space<vmem>>, vector<16x384xf32>
    tpu.vector_store %arg10[%c0_36, %c0_37], %34 {strides = array<i32>} : memref<16x384xf32, #tpu.memory_space<vmem>>, vector<16x384xf32>,
    %36 = vector.extract_strided_slice %33 {offsets = [0, 0], sizes = [16, 384], strides = [1, 1]} : vector<32x384xf32> to vector<16x384xf32>
    %cst_38 = arith.constant 0.000000e+00 : f32
    %37 = vector.broadcast %cst_38 : f32 to vector<16x384xf32>
    %38 = arith.maximumf %36, %37 : vector<16x384xf32>
    %39 = vector.broadcast %0 : vector<1x384xf32> to vector<16x384xf32>
    %40 = arith.mulf %38, %39 : vector<16x384xf32>
    %cst_39 = arith.constant 0.000000e+00 : bf16
    %41 = vector.broadcast %cst_39 : bf16 to vector<16x128xbf16>
    %c0_40 = arith.constant 0 : index
    %c0_41 = arith.constant 0 : index
    %42 = vector.load %arg9[%c0_40, %c0_41] : memref<16x640xbf16, #tpu.memory_space<vmem>>, vector<16x128xbf16>
    tpu.vector_store %arg9[%c0_40, %c0_41], %41 {strides = array<i32>} : memref<16x640xbf16, #tpu.memory_space<vmem>>, vector<16x128xbf16>,
    %cst_42 = arith.constant 0.000000e+00 : bf16
    %43 = vector.broadcast %cst_42 : bf16 to vector<16x128xbf16>
    %c0_43 = arith.constant 0 : index
    %c512 = arith.constant 512 : index
    %44 = vector.load %arg9[%c0_43, %c512] : memref<16x640xbf16, #tpu.memory_space<vmem>>, vector<16x128xbf16>
    tpu.vector_store %arg9[%c0_43, %c512], %43 {strides = array<i32>} : memref<16x640xbf16, #tpu.memory_space<vmem>>, vector<16x128xbf16>,
    %45 = arith.truncf %40 : vector<16x384xf32> to vector<16x384xbf16>
    %c0_44 = arith.constant 0 : index
    %c128_45 = arith.constant 128 : index
    %46 = vector.load %arg9[%c0_44, %c128_45] : memref<16x640xbf16, #tpu.memory_space<vmem>>, vector<16x384xbf16>
    tpu.vector_store %arg9[%c0_44, %c128_45], %45 {strides = array<i32>} : memref<16x640xbf16, #tpu.memory_space<vmem>>, vector<16x384xbf16>,
    %c0_46 = arith.constant 0 : index
    %c109_47 = arith.constant 109 : index
    %47 = vector.load %arg9[%c0_46, %c109_47] : memref<16x640xbf16, #tpu.memory_space<vmem>>, vector<16x384xbf16>
    %c0_48 = arith.constant 0 : index
    %c0_49 = arith.constant 0 : index
    %48 = vector.load %arg8[%c0_48, %c0_49] : memref<144x384xbf16, #tpu.memory_space<vmem>>, vector<16x384xbf16>
    tpu.vector_store %arg8[%c0_48, %c0_49], %47 {strides = array<i32>} : memref<144x384xbf16, #tpu.memory_space<vmem>>, vector<16x384xbf16>,
    %c0_50 = arith.constant 0 : index
    %c110_51 = arith.constant 110 : index
    %49 = vector.load %arg9[%c0_50, %c110_51] : memref<16x640xbf16, #tpu.memory_space<vmem>>, vector<16x384xbf16>
    %c16_52 = arith.constant 16 : index
    %c0_53 = arith.constant 0 : index
    %50 = vector.load %arg8[%c16_52, %c0_53] : memref<144x384xbf16, #tpu.memory_space<vmem>>, vector<16x384xbf16>
    tpu.vector_store %arg8[%c16_52, %c0_53], %49 {strides = array<i32>} : memref<144x384xbf16, #tpu.memory_space<vmem>>, vector<16x384xbf16>,
    %c0_54 = arith.constant 0 : index
    %c111_55 = arith.constant 111 : index
    %51 = vector.load %arg9[%c0_54, %c111_55] : memref<16x640xbf16, #tpu.memory_space<vmem>>, vector<16x384xbf16>
    %c32_56 = arith.constant 32 : index
    %c0_57 = arith.constant 0 : index
    %52 = vector.load %arg8[%c32_56, %c0_57] : memref<144x384xbf16, #tpu.memory_space<vmem>>, vector<16x384xbf16>
    tpu.vector_store %arg8[%c32_56, %c0_57], %51 {strides = array<i32>} : memref<144x384xbf16, #tpu.memory_space<vmem>>, vector<16x384xbf16>,
    %c0_58 = arith.constant 0 : index
    %c127_59 = arith.constant 127 : index
    %53 = vector.load %arg9[%c0_58, %c127_59] : memref<16x640xbf16, #tpu.memory_space<vmem>>, vector<16x384xbf16>
    %c48_60 = arith.constant 48 : index
    %c0_61 = arith.constant 0 : index
    %54 = vector.load %arg8[%c48_60, %c0_61] : memref<144x384xbf16, #tpu.memory_space<vmem>>, vector<16x384xbf16>
    tpu.vector_store %arg8[%c48_60, %c0_61], %53 {strides = array<i32>} : memref<144x384xbf16, #tpu.memory_space<vmem>>, vector<16x384xbf16>,
    %c0_62 = arith.constant 0 : index
    %c128_63 = arith.constant 128 : index
    %55 = vector.load %arg9[%c0_62, %c128_63] : memref<16x640xbf16, #tpu.memory_space<vmem>>, vector<16x384xbf16>
    %c64_64 = arith.constant 64 : index
    %c0_65 = arith.constant 0 : index
    %56 = vector.load %arg8[%c64_64, %c0_65] : memref<144x384xbf16, #tpu.memory_space<vmem>>, vector<16x384xbf16>
    tpu.vector_store %arg8[%c64_64, %c0_65], %55 {strides = array<i32>} : memref<144x384xbf16, #tpu.memory_space<vmem>>, vector<16x384xbf16>,
    %c0_66 = arith.constant 0 : index
    %c129_67 = arith.constant 129 : index
    %57 = vector.load %arg9[%c0_66, %c129_67] : memref<16x640xbf16, #tpu.memory_space<vmem>>, vector<16x384xbf16>
    %c80_68 = arith.constant 80 : index
    %c0_69 = arith.constant 0 : index
    %58 = vector.load %arg8[%c80_68, %c0_69] : memref<144x384xbf16, #tpu.memory_space<vmem>>, vector<16x384xbf16>
    tpu.vector_store %arg8[%c80_68, %c0_69], %57 {strides = array<i32>} : memref<144x384xbf16, #tpu.memory_space<vmem>>, vector<16x384xbf16>,
    %c0_70 = arith.constant 0 : index
    %c145_71 = arith.constant 145 : index
    %59 = vector.load %arg9[%c0_70, %c145_71] : memref<16x640xbf16, #tpu.memory_space<vmem>>, vector<16x384xbf16>
    %c96_72 = arith.constant 96 : index
    %c0_73 = arith.constant 0 : index
    %60 = vector.load %arg8[%c96_72, %c0_73] : memref<144x384xbf16, #tpu.memory_space<vmem>>, vector<16x384xbf16>
    tpu.vector_store %arg8[%c96_72, %c0_73], %59 {strides = array<i32>} : memref<144x384xbf16, #tpu.memory_space<vmem>>, vector<16x384xbf16>,
    %c0_74 = arith.constant 0 : index
    %c146_75 = arith.constant 146 : index
    %61 = vector.load %arg9[%c0_74, %c146_75] : memref<16x640xbf16, #tpu.memory_space<vmem>>, vector<16x384xbf16>
    %c112_76 = arith.constant 112 : index
    %c0_77 = arith.constant 0 : index
    %62 = vector.load %arg8[%c112_76, %c0_77] : memref<144x384xbf16, #tpu.memory_space<vmem>>, vector<16x384xbf16>
    tpu.vector_store %arg8[%c112_76, %c0_77], %61 {strides = array<i32>} : memref<144x384xbf16, #tpu.memory_space<vmem>>, vector<16x384xbf16>,
    %c0_78 = arith.constant 0 : index
    %c147_79 = arith.constant 147 : index
    %63 = vector.load %arg9[%c0_78, %c147_79] : memref<16x640xbf16, #tpu.memory_space<vmem>>, vector<16x384xbf16>
    %c128_80 = arith.constant 128 : index
    %c0_81 = arith.constant 0 : index
    %64 = vector.load %arg8[%c128_80, %c0_81] : memref<144x384xbf16, #tpu.memory_space<vmem>>, vector<16x384xbf16>
    tpu.vector_store %arg8[%c128_80, %c0_81], %63 {strides = array<i32>} : memref<144x384xbf16, #tpu.memory_space<vmem>>, vector<16x384xbf16>,
    %c0_82 = arith.constant 0 : index
    %c0_83 = arith.constant 0 : index
    %65 = vector.load %arg4[%c0_82, %c0_83] : memref<16x144xbf16, #tpu.memory_space<vmem>>, vector<16x144xbf16>
    %c0_84 = arith.constant 0 : index
    %c0_85 = arith.constant 0 : index
    %66 = vector.load %arg8[%c0_84, %c0_85] : memref<144x384xbf16, #tpu.memory_space<vmem>>, vector<144x384xbf16>
    %cst_86 = arith.constant dense<0.000000e+00> : vector<16x384xf32>
    %67 = tpu.matmul %65, %66, %cst_86 {dimension_numbers = #tpu.dot_dimension_numbers<[1], [0], [0], [1], [0, 0, 1, 1], [], []>} : vector<16x144xbf16>, vector<144x384xbf16>, vector<16x384xf32> -> vector<16x384xf32>
    %c0_87 = arith.constant 0 : index
    %c0_88 = arith.constant 0 : index
    %68 = vector.load %arg5[%c0_87, %c0_88] : memref<16x1xf32, #tpu.memory_space<vmem>>, vector<16x1xf32>
    %69 = vector.broadcast %68 : vector<16x1xf32> to vector<16x384xf32>
    %70 = arith.addf %67, %69 : vector<16x384xf32>
    %c0_89 = arith.constant 0 : index
    %c0_90 = arith.constant 0 : index
    %71 = vector.load %arg10[%c0_89, %c0_90] : memref<16x384xf32, #tpu.memory_space<vmem>>, vector<16x384xf32>
    %72 = arith.addf %70, %71 : vector<16x384xf32>
    %cst_91 = arith.constant 0.000000e+00 : f32
    %73 = vector.broadcast %cst_91 : f32 to vector<16x384xf32>
    %74 = arith.maximumf %72, %73 : vector<16x384xf32>
    %75 = vector.broadcast %0 : vector<1x384xf32> to vector<16x384xf32>
    %76 = arith.mulf %74, %75 : vector<16x384xf32>
    %cst_92 = arith.constant 0.000000e+00 : bf16
    %77 = vector.broadcast %cst_92 : bf16 to vector<16x128xbf16>
    %c0_93 = arith.constant 0 : index
    %c0_94 = arith.constant 0 : index
    %c0_95 = arith.constant 0 : index
    %78 = vector.load %arg7[%c0_93, %c0_94, %c0_95] : memref<1x16x640xbf16, #tpu.memory_space<vmem>>, vector<1x16x128xbf16>
    %79 = vector.shape_cast %78 : vector<1x16x128xbf16> to vector<16x128xbf16>
    %80 = vector.shape_cast %77 : vector<16x128xbf16> to vector<1x16x128xbf16>
    tpu.vector_store %arg7[%c0_93, %c0_94, %c0_95], %80 {strides = array<i32>} : memref<1x16x640xbf16, #tpu.memory_space<vmem>>, vector<1x16x128xbf16>,
    %cst_96 = arith.constant 0.000000e+00 : bf16
    %81 = vector.broadcast %cst_96 : bf16 to vector<16x128xbf16>
    %c0_97 = arith.constant 0 : index
    %c0_98 = arith.constant 0 : index
    %c512_99 = arith.constant 512 : index
    %82 = vector.load %arg7[%c0_97, %c0_98, %c512_99] : memref<1x16x640xbf16, #tpu.memory_space<vmem>>, vector<1x16x128xbf16>
    %83 = vector.shape_cast %82 : vector<1x16x128xbf16> to vector<16x128xbf16>
    %84 = vector.shape_cast %81 : vector<16x128xbf16> to vector<1x16x128xbf16>
    tpu.vector_store %arg7[%c0_97, %c0_98, %c512_99], %84 {strides = array<i32>} : memref<1x16x640xbf16, #tpu.memory_space<vmem>>, vector<1x16x128xbf16>,
    %85 = arith.truncf %76 : vector<16x384xf32> to vector<16x384xbf16>
    %c0_100 = arith.constant 0 : index
    %c0_101 = arith.constant 0 : index
    %c128_102 = arith.constant 128 : index
    %86 = vector.load %arg7[%c0_100, %c0_101, %c128_102] : memref<1x16x640xbf16, #tpu.memory_space<vmem>>, vector<1x16x384xbf16>
    %87 = vector.shape_cast %86 : vector<1x16x384xbf16> to vector<16x384xbf16>
    %88 = vector.shape_cast %85 : vector<16x384xbf16> to vector<1x16x384xbf16>
    tpu.vector_store %arg7[%c0_100, %c0_101, %c128_102], %88 {strides = array<i32>} : memref<1x16x640xbf16, #tpu.memory_space<vmem>>, vector<1x16x384xbf16>,
    return
  }
  func.func @transform_0(%arg0: i32) -> (i32, i32, i32) {
    %c0_i32 = arith.constant 0 : i32
    %c0_i32_0 = arith.constant 0 : i32
    %c0_i32_1 = arith.constant 0 : i32
    return %arg0, %c0_i32, %c0_i32_0 : i32, i32, i32
  }
  func.func @transform_1(%arg0: i32) -> (i32, i32) {
    %c0_i32 = arith.constant 0 : i32
    %c0_i32_0 = arith.constant 0 : i32
    %c0_i32_1 = arith.constant 0 : i32
    return %c0_i32, %c0_i32_0 : i32, i32
  }
  func.func @transform_2(%arg0: i32) -> (i32, i32) {
    %c0_i32 = arith.constant 0 : i32
    %c0_i32_0 = arith.constant 0 : i32
    %c0_i32_1 = arith.constant 0 : i32
    return %c0_i32, %c0_i32_0 : i32, i32
  }
  func.func @transform_3(%arg0: i32) -> (i32, i32) {
    %c0_i32 = arith.constant 0 : i32
    %c0_i32_0 = arith.constant 0 : i32
    %c0_i32_1 = arith.constant 0 : i32
    return %c0_i32, %c0_i32_0 : i32, i32
  }
  func.func @transform_4(%arg0: i32) -> (i32, i32) {
    %c0_i32 = arith.constant 0 : i32
    %c0_i32_0 = arith.constant 0 : i32
    %c0_i32_1 = arith.constant 0 : i32
    return %c0_i32, %c0_i32_0 : i32, i32
  }
  func.func @transform_5(%arg0: i32) -> (i32, i32) {
    %c0_i32 = arith.constant 0 : i32
    %c0_i32_0 = arith.constant 0 : i32
    %c0_i32_1 = arith.constant 0 : i32
    return %c0_i32, %c0_i32_0 : i32, i32
  }
  func.func @transform_6(%arg0: i32) -> (i32, i32, i32) {
    %c0_i32 = arith.constant 0 : i32
    %c0_i32_0 = arith.constant 0 : i32
    %c0_i32_1 = arith.constant 0 : i32
    return %arg0, %c0_i32, %c0_i32_0 : i32, i32, i32
  }
}

module attributes {stable_mosaic.version = 11 : i64} {
  func.func @kernel(%arg0: i32, %arg1: memref<1x16x640xbf16, #tpu.memory_space<vmem>>, %arg2: memref<1x16x640xbf16, #tpu.memory_space<vmem>>, %arg3: memref<32x288xbf16, #tpu.memory_space<vmem>>, %arg4: memref<32x1xf32, #tpu.memory_space<vmem>>, %arg5: memref<16x144xbf16, #tpu.memory_space<vmem>>, %arg6: memref<16x1xf32, #tpu.memory_space<vmem>>, %arg7: memref<1x384xf32, #tpu.memory_space<vmem>>, %arg8: memref<1x16x640xf32, #tpu.memory_space<vmem>>, %arg9: memref<288x384xbf16, #tpu.memory_space<vmem>>, %arg10: memref<16x640xbf16, #tpu.memory_space<vmem>>, %arg11: memref<16x384xf32, #tpu.memory_space<vmem>>) attributes {dimension_semantics = [#tpu.dimension_semantics<parallel>], iteration_bounds = array<i64: 2>, scalar_prefetch = 0 : i64, scratch_operands = 3 : i64, tpu.core_type = #tpu.core_type<tc>, window_params = [{transform_indices = @transform_0, window_bounds = array<i64: 1, 16, 640>}, {transform_indices = @transform_1, window_bounds = array<i64: 1, 16, 640>}, {pipeline_mode = #tpu.pipeline_mode<synchronous>, transform_indices = @transform_2, window_bounds = array<i64: 32, 288>}, {pipeline_mode = #tpu.pipeline_mode<synchronous>, transform_indices = @transform_3, window_bounds = array<i64: 32, 1>}, {pipeline_mode = #tpu.pipeline_mode<synchronous>, transform_indices = @transform_4, window_bounds = array<i64: 16, 144>}, {pipeline_mode = #tpu.pipeline_mode<synchronous>, transform_indices = @transform_5, window_bounds = array<i64: 16, 1>}, {pipeline_mode = #tpu.pipeline_mode<synchronous>, transform_indices = @transform_6, window_bounds = array<i64: 1, 384>}, {transform_indices = @transform_7, window_bounds = array<i64: 1, 16, 640>}]} {
    %c0 = arith.constant 0 : index
    %c0_0 = arith.constant 0 : index
    %0 = vector.load %arg7[%c0, %c0_0] : memref<1x384xf32, #tpu.memory_space<vmem>>, vector<1x384xf32>
    %c0_1 = arith.constant 0 : index
    %c0_2 = arith.constant 0 : index
    %c109 = arith.constant 109 : index
    %1 = vector.load %arg1[%c0_1, %c0_2, %c109] : memref<1x16x640xbf16, #tpu.memory_space<vmem>>, vector<1x16x384xbf16>
    %2 = vector.shape_cast %1 : vector<1x16x384xbf16> to vector<16x384xbf16>
    %c0_3 = arith.constant 0 : index
    %c0_4 = arith.constant 0 : index
    %3 = vector.load %arg9[%c0_3, %c0_4] : memref<288x384xbf16, #tpu.memory_space<vmem>>, vector<16x384xbf16>
    tpu.vector_store %arg9[%c0_3, %c0_4], %2 {strides = array<i32>} : memref<288x384xbf16, #tpu.memory_space<vmem>>, vector<16x384xbf16>,
    %c0_5 = arith.constant 0 : index
    %c0_6 = arith.constant 0 : index
    %c109_7 = arith.constant 109 : index
    %4 = vector.load %arg2[%c0_5, %c0_6, %c109_7] : memref<1x16x640xbf16, #tpu.memory_space<vmem>>, vector<1x16x384xbf16>
    %5 = vector.shape_cast %4 : vector<1x16x384xbf16> to vector<16x384xbf16>
    %c16 = arith.constant 16 : index
    %c0_8 = arith.constant 0 : index
    %6 = vector.load %arg9[%c16, %c0_8] : memref<288x384xbf16, #tpu.memory_space<vmem>>, vector<16x384xbf16>
    tpu.vector_store %arg9[%c16, %c0_8], %5 {strides = array<i32>} : memref<288x384xbf16, #tpu.memory_space<vmem>>, vector<16x384xbf16>,
    %c0_9 = arith.constant 0 : index
    %c0_10 = arith.constant 0 : index
    %c110 = arith.constant 110 : index
    %7 = vector.load %arg1[%c0_9, %c0_10, %c110] : memref<1x16x640xbf16, #tpu.memory_space<vmem>>, vector<1x16x384xbf16>
    %8 = vector.shape_cast %7 : vector<1x16x384xbf16> to vector<16x384xbf16>
    %c32 = arith.constant 32 : index
    %c0_11 = arith.constant 0 : index
    %9 = vector.load %arg9[%c32, %c0_11] : memref<288x384xbf16, #tpu.memory_space<vmem>>, vector<16x384xbf16>
    tpu.vector_store %arg9[%c32, %c0_11], %8 {strides = array<i32>} : memref<288x384xbf16, #tpu.memory_space<vmem>>, vector<16x384xbf16>,
    %c0_12 = arith.constant 0 : index
    %c0_13 = arith.constant 0 : index
    %c110_14 = arith.constant 110 : index
    %10 = vector.load %arg2[%c0_12, %c0_13, %c110_14] : memref<1x16x640xbf16, #tpu.memory_space<vmem>>, vector<1x16x384xbf16>
    %11 = vector.shape_cast %10 : vector<1x16x384xbf16> to vector<16x384xbf16>
    %c48 = arith.constant 48 : index
    %c0_15 = arith.constant 0 : index
    %12 = vector.load %arg9[%c48, %c0_15] : memref<288x384xbf16, #tpu.memory_space<vmem>>, vector<16x384xbf16>
    tpu.vector_store %arg9[%c48, %c0_15], %11 {strides = array<i32>} : memref<288x384xbf16, #tpu.memory_space<vmem>>, vector<16x384xbf16>,
    %c0_16 = arith.constant 0 : index
    %c0_17 = arith.constant 0 : index
    %c111 = arith.constant 111 : index
    %13 = vector.load %arg1[%c0_16, %c0_17, %c111] : memref<1x16x640xbf16, #tpu.memory_space<vmem>>, vector<1x16x384xbf16>
    %14 = vector.shape_cast %13 : vector<1x16x384xbf16> to vector<16x384xbf16>
    %c64 = arith.constant 64 : index
    %c0_18 = arith.constant 0 : index
    %15 = vector.load %arg9[%c64, %c0_18] : memref<288x384xbf16, #tpu.memory_space<vmem>>, vector<16x384xbf16>
    tpu.vector_store %arg9[%c64, %c0_18], %14 {strides = array<i32>} : memref<288x384xbf16, #tpu.memory_space<vmem>>, vector<16x384xbf16>,
    %c0_19 = arith.constant 0 : index
    %c0_20 = arith.constant 0 : index
    %c111_21 = arith.constant 111 : index
    %16 = vector.load %arg2[%c0_19, %c0_20, %c111_21] : memref<1x16x640xbf16, #tpu.memory_space<vmem>>, vector<1x16x384xbf16>
    %17 = vector.shape_cast %16 : vector<1x16x384xbf16> to vector<16x384xbf16>
    %c80 = arith.constant 80 : index
    %c0_22 = arith.constant 0 : index
    %18 = vector.load %arg9[%c80, %c0_22] : memref<288x384xbf16, #tpu.memory_space<vmem>>, vector<16x384xbf16>
    tpu.vector_store %arg9[%c80, %c0_22], %17 {strides = array<i32>} : memref<288x384xbf16, #tpu.memory_space<vmem>>, vector<16x384xbf16>,
    %c0_23 = arith.constant 0 : index
    %c0_24 = arith.constant 0 : index
    %c127 = arith.constant 127 : index
    %19 = vector.load %arg1[%c0_23, %c0_24, %c127] : memref<1x16x640xbf16, #tpu.memory_space<vmem>>, vector<1x16x384xbf16>
    %20 = vector.shape_cast %19 : vector<1x16x384xbf16> to vector<16x384xbf16>
    %c96 = arith.constant 96 : index
    %c0_25 = arith.constant 0 : index
    %21 = vector.load %arg9[%c96, %c0_25] : memref<288x384xbf16, #tpu.memory_space<vmem>>, vector<16x384xbf16>
    tpu.vector_store %arg9[%c96, %c0_25], %20 {strides = array<i32>} : memref<288x384xbf16, #tpu.memory_space<vmem>>, vector<16x384xbf16>,
    %c0_26 = arith.constant 0 : index
    %c0_27 = arith.constant 0 : index
    %c127_28 = arith.constant 127 : index
    %22 = vector.load %arg2[%c0_26, %c0_27, %c127_28] : memref<1x16x640xbf16, #tpu.memory_space<vmem>>, vector<1x16x384xbf16>
    %23 = vector.shape_cast %22 : vector<1x16x384xbf16> to vector<16x384xbf16>
    %c112 = arith.constant 112 : index
    %c0_29 = arith.constant 0 : index
    %24 = vector.load %arg9[%c112, %c0_29] : memref<288x384xbf16, #tpu.memory_space<vmem>>, vector<16x384xbf16>
    tpu.vector_store %arg9[%c112, %c0_29], %23 {strides = array<i32>} : memref<288x384xbf16, #tpu.memory_space<vmem>>, vector<16x384xbf16>,
    %c0_30 = arith.constant 0 : index
    %c0_31 = arith.constant 0 : index
    %c128 = arith.constant 128 : index
    %25 = vector.load %arg1[%c0_30, %c0_31, %c128] : memref<1x16x640xbf16, #tpu.memory_space<vmem>>, vector<1x16x384xbf16>
    %26 = vector.shape_cast %25 : vector<1x16x384xbf16> to vector<16x384xbf16>
    %c128_32 = arith.constant 128 : index
    %c0_33 = arith.constant 0 : index
    %27 = vector.load %arg9[%c128_32, %c0_33] : memref<288x384xbf16, #tpu.memory_space<vmem>>, vector<16x384xbf16>
    tpu.vector_store %arg9[%c128_32, %c0_33], %26 {strides = array<i32>} : memref<288x384xbf16, #tpu.memory_space<vmem>>, vector<16x384xbf16>,
    %c0_34 = arith.constant 0 : index
    %c0_35 = arith.constant 0 : index
    %c128_36 = arith.constant 128 : index
    %28 = vector.load %arg2[%c0_34, %c0_35, %c128_36] : memref<1x16x640xbf16, #tpu.memory_space<vmem>>, vector<1x16x384xbf16>
    %29 = vector.shape_cast %28 : vector<1x16x384xbf16> to vector<16x384xbf16>
    %c144 = arith.constant 144 : index
    %c0_37 = arith.constant 0 : index
    %30 = vector.load %arg9[%c144, %c0_37] : memref<288x384xbf16, #tpu.memory_space<vmem>>, vector<16x384xbf16>
    tpu.vector_store %arg9[%c144, %c0_37], %29 {strides = array<i32>} : memref<288x384xbf16, #tpu.memory_space<vmem>>, vector<16x384xbf16>,
    %c0_38 = arith.constant 0 : index
    %c0_39 = arith.constant 0 : index
    %c129 = arith.constant 129 : index
    %31 = vector.load %arg1[%c0_38, %c0_39, %c129] : memref<1x16x640xbf16, #tpu.memory_space<vmem>>, vector<1x16x384xbf16>
    %32 = vector.shape_cast %31 : vector<1x16x384xbf16> to vector<16x384xbf16>
    %c160 = arith.constant 160 : index
    %c0_40 = arith.constant 0 : index
    %33 = vector.load %arg9[%c160, %c0_40] : memref<288x384xbf16, #tpu.memory_space<vmem>>, vector<16x384xbf16>
    tpu.vector_store %arg9[%c160, %c0_40], %32 {strides = array<i32>} : memref<288x384xbf16, #tpu.memory_space<vmem>>, vector<16x384xbf16>,
    %c0_41 = arith.constant 0 : index
    %c0_42 = arith.constant 0 : index
    %c129_43 = arith.constant 129 : index
    %34 = vector.load %arg2[%c0_41, %c0_42, %c129_43] : memref<1x16x640xbf16, #tpu.memory_space<vmem>>, vector<1x16x384xbf16>
    %35 = vector.shape_cast %34 : vector<1x16x384xbf16> to vector<16x384xbf16>
    %c176 = arith.constant 176 : index
    %c0_44 = arith.constant 0 : index
    %36 = vector.load %arg9[%c176, %c0_44] : memref<288x384xbf16, #tpu.memory_space<vmem>>, vector<16x384xbf16>
    tpu.vector_store %arg9[%c176, %c0_44], %35 {strides = array<i32>} : memref<288x384xbf16, #tpu.memory_space<vmem>>, vector<16x384xbf16>,
    %c0_45 = arith.constant 0 : index
    %c0_46 = arith.constant 0 : index
    %c145 = arith.constant 145 : index
    %37 = vector.load %arg1[%c0_45, %c0_46, %c145] : memref<1x16x640xbf16, #tpu.memory_space<vmem>>, vector<1x16x384xbf16>
    %38 = vector.shape_cast %37 : vector<1x16x384xbf16> to vector<16x384xbf16>
    %c192 = arith.constant 192 : index
    %c0_47 = arith.constant 0 : index
    %39 = vector.load %arg9[%c192, %c0_47] : memref<288x384xbf16, #tpu.memory_space<vmem>>, vector<16x384xbf16>
    tpu.vector_store %arg9[%c192, %c0_47], %38 {strides = array<i32>} : memref<288x384xbf16, #tpu.memory_space<vmem>>, vector<16x384xbf16>,
    %c0_48 = arith.constant 0 : index
    %c0_49 = arith.constant 0 : index
    %c145_50 = arith.constant 145 : index
    %40 = vector.load %arg2[%c0_48, %c0_49, %c145_50] : memref<1x16x640xbf16, #tpu.memory_space<vmem>>, vector<1x16x384xbf16>
    %41 = vector.shape_cast %40 : vector<1x16x384xbf16> to vector<16x384xbf16>
    %c208 = arith.constant 208 : index
    %c0_51 = arith.constant 0 : index
    %42 = vector.load %arg9[%c208, %c0_51] : memref<288x384xbf16, #tpu.memory_space<vmem>>, vector<16x384xbf16>
    tpu.vector_store %arg9[%c208, %c0_51], %41 {strides = array<i32>} : memref<288x384xbf16, #tpu.memory_space<vmem>>, vector<16x384xbf16>,
    %c0_52 = arith.constant 0 : index
    %c0_53 = arith.constant 0 : index
    %c146 = arith.constant 146 : index
    %43 = vector.load %arg1[%c0_52, %c0_53, %c146] : memref<1x16x640xbf16, #tpu.memory_space<vmem>>, vector<1x16x384xbf16>
    %44 = vector.shape_cast %43 : vector<1x16x384xbf16> to vector<16x384xbf16>
    %c224 = arith.constant 224 : index
    %c0_54 = arith.constant 0 : index
    %45 = vector.load %arg9[%c224, %c0_54] : memref<288x384xbf16, #tpu.memory_space<vmem>>, vector<16x384xbf16>
    tpu.vector_store %arg9[%c224, %c0_54], %44 {strides = array<i32>} : memref<288x384xbf16, #tpu.memory_space<vmem>>, vector<16x384xbf16>,
    %c0_55 = arith.constant 0 : index
    %c0_56 = arith.constant 0 : index
    %c146_57 = arith.constant 146 : index
    %46 = vector.load %arg2[%c0_55, %c0_56, %c146_57] : memref<1x16x640xbf16, #tpu.memory_space<vmem>>, vector<1x16x384xbf16>
    %47 = vector.shape_cast %46 : vector<1x16x384xbf16> to vector<16x384xbf16>
    %c240 = arith.constant 240 : index
    %c0_58 = arith.constant 0 : index
    %48 = vector.load %arg9[%c240, %c0_58] : memref<288x384xbf16, #tpu.memory_space<vmem>>, vector<16x384xbf16>
    tpu.vector_store %arg9[%c240, %c0_58], %47 {strides = array<i32>} : memref<288x384xbf16, #tpu.memory_space<vmem>>, vector<16x384xbf16>,
    %c0_59 = arith.constant 0 : index
    %c0_60 = arith.constant 0 : index
    %c147 = arith.constant 147 : index
    %49 = vector.load %arg1[%c0_59, %c0_60, %c147] : memref<1x16x640xbf16, #tpu.memory_space<vmem>>, vector<1x16x384xbf16>
    %50 = vector.shape_cast %49 : vector<1x16x384xbf16> to vector<16x384xbf16>
    %c256 = arith.constant 256 : index
    %c0_61 = arith.constant 0 : index
    %51 = vector.load %arg9[%c256, %c0_61] : memref<288x384xbf16, #tpu.memory_space<vmem>>, vector<16x384xbf16>
    tpu.vector_store %arg9[%c256, %c0_61], %50 {strides = array<i32>} : memref<288x384xbf16, #tpu.memory_space<vmem>>, vector<16x384xbf16>,
    %c0_62 = arith.constant 0 : index
    %c0_63 = arith.constant 0 : index
    %c147_64 = arith.constant 147 : index
    %52 = vector.load %arg2[%c0_62, %c0_63, %c147_64] : memref<1x16x640xbf16, #tpu.memory_space<vmem>>, vector<1x16x384xbf16>
    %53 = vector.shape_cast %52 : vector<1x16x384xbf16> to vector<16x384xbf16>
    %c272 = arith.constant 272 : index
    %c0_65 = arith.constant 0 : index
    %54 = vector.load %arg9[%c272, %c0_65] : memref<288x384xbf16, #tpu.memory_space<vmem>>, vector<16x384xbf16>
    tpu.vector_store %arg9[%c272, %c0_65], %53 {strides = array<i32>} : memref<288x384xbf16, #tpu.memory_space<vmem>>, vector<16x384xbf16>,
    %c0_66 = arith.constant 0 : index
    %c0_67 = arith.constant 0 : index
    %55 = vector.load %arg3[%c0_66, %c0_67] : memref<32x288xbf16, #tpu.memory_space<vmem>>, vector<32x288xbf16>
    %c0_68 = arith.constant 0 : index
    %c0_69 = arith.constant 0 : index
    %56 = vector.load %arg9[%c0_68, %c0_69] : memref<288x384xbf16, #tpu.memory_space<vmem>>, vector<288x384xbf16>
    %cst = arith.constant dense<0.000000e+00> : vector<32x384xf32>
    %57 = tpu.matmul %55, %56, %cst {dimension_numbers = #tpu.dot_dimension_numbers<[1], [0], [0], [1], [0, 0, 1, 1], [], []>} : vector<32x288xbf16>, vector<288x384xbf16>, vector<32x384xf32> -> vector<32x384xf32>
    %c0_70 = arith.constant 0 : index
    %c0_71 = arith.constant 0 : index
    %58 = vector.load %arg4[%c0_70, %c0_71] : memref<32x1xf32, #tpu.memory_space<vmem>>, vector<32x1xf32>
    %59 = vector.broadcast %58 : vector<32x1xf32> to vector<32x384xf32>
    %60 = arith.addf %57, %59 : vector<32x384xf32>
    %61 = vector.extract_strided_slice %60 {offsets = [16, 0], sizes = [16, 384], strides = [1, 1]} : vector<32x384xf32> to vector<16x384xf32>
    %c0_72 = arith.constant 0 : index
    %c0_73 = arith.constant 0 : index
    %62 = vector.load %arg11[%c0_72, %c0_73] : memref<16x384xf32, #tpu.memory_space<vmem>>, vector<16x384xf32>
    tpu.vector_store %arg11[%c0_72, %c0_73], %61 {strides = array<i32>} : memref<16x384xf32, #tpu.memory_space<vmem>>, vector<16x384xf32>,
    %63 = vector.extract_strided_slice %60 {offsets = [0, 0], sizes = [16, 384], strides = [1, 1]} : vector<32x384xf32> to vector<16x384xf32>
    %cst_74 = arith.constant 0.000000e+00 : f32
    %64 = vector.broadcast %cst_74 : f32 to vector<16x384xf32>
    %65 = arith.maximumf %63, %64 : vector<16x384xf32>
    %66 = vector.broadcast %0 : vector<1x384xf32> to vector<16x384xf32>
    %67 = arith.mulf %65, %66 : vector<16x384xf32>
    %cst_75 = arith.constant 0.000000e+00 : bf16
    %68 = vector.broadcast %cst_75 : bf16 to vector<16x128xbf16>
    %c0_76 = arith.constant 0 : index
    %c0_77 = arith.constant 0 : index
    %69 = vector.load %arg10[%c0_76, %c0_77] : memref<16x640xbf16, #tpu.memory_space<vmem>>, vector<16x128xbf16>
    tpu.vector_store %arg10[%c0_76, %c0_77], %68 {strides = array<i32>} : memref<16x640xbf16, #tpu.memory_space<vmem>>, vector<16x128xbf16>,
    %cst_78 = arith.constant 0.000000e+00 : bf16
    %70 = vector.broadcast %cst_78 : bf16 to vector<16x128xbf16>
    %c0_79 = arith.constant 0 : index
    %c512 = arith.constant 512 : index
    %71 = vector.load %arg10[%c0_79, %c512] : memref<16x640xbf16, #tpu.memory_space<vmem>>, vector<16x128xbf16>
    tpu.vector_store %arg10[%c0_79, %c512], %70 {strides = array<i32>} : memref<16x640xbf16, #tpu.memory_space<vmem>>, vector<16x128xbf16>,
    %72 = arith.truncf %67 : vector<16x384xf32> to vector<16x384xbf16>
    %c0_80 = arith.constant 0 : index
    %c128_81 = arith.constant 128 : index
    %73 = vector.load %arg10[%c0_80, %c128_81] : memref<16x640xbf16, #tpu.memory_space<vmem>>, vector<16x384xbf16>
    tpu.vector_store %arg10[%c0_80, %c128_81], %72 {strides = array<i32>} : memref<16x640xbf16, #tpu.memory_space<vmem>>, vector<16x384xbf16>,
    %c0_82 = arith.constant 0 : index
    %c109_83 = arith.constant 109 : index
    %74 = vector.load %arg10[%c0_82, %c109_83] : memref<16x640xbf16, #tpu.memory_space<vmem>>, vector<16x384xbf16>
    %c0_84 = arith.constant 0 : index
    %c0_85 = arith.constant 0 : index
    %75 = vector.load %arg9[%c0_84, %c0_85] : memref<288x384xbf16, #tpu.memory_space<vmem>>, vector<16x384xbf16>
    tpu.vector_store %arg9[%c0_84, %c0_85], %74 {strides = array<i32>} : memref<288x384xbf16, #tpu.memory_space<vmem>>, vector<16x384xbf16>,
    %c0_86 = arith.constant 0 : index
    %c110_87 = arith.constant 110 : index
    %76 = vector.load %arg10[%c0_86, %c110_87] : memref<16x640xbf16, #tpu.memory_space<vmem>>, vector<16x384xbf16>
    %c16_88 = arith.constant 16 : index
    %c0_89 = arith.constant 0 : index
    %77 = vector.load %arg9[%c16_88, %c0_89] : memref<288x384xbf16, #tpu.memory_space<vmem>>, vector<16x384xbf16>
    tpu.vector_store %arg9[%c16_88, %c0_89], %76 {strides = array<i32>} : memref<288x384xbf16, #tpu.memory_space<vmem>>, vector<16x384xbf16>,
    %c0_90 = arith.constant 0 : index
    %c111_91 = arith.constant 111 : index
    %78 = vector.load %arg10[%c0_90, %c111_91] : memref<16x640xbf16, #tpu.memory_space<vmem>>, vector<16x384xbf16>
    %c32_92 = arith.constant 32 : index
    %c0_93 = arith.constant 0 : index
    %79 = vector.load %arg9[%c32_92, %c0_93] : memref<288x384xbf16, #tpu.memory_space<vmem>>, vector<16x384xbf16>
    tpu.vector_store %arg9[%c32_92, %c0_93], %78 {strides = array<i32>} : memref<288x384xbf16, #tpu.memory_space<vmem>>, vector<16x384xbf16>,
    %c0_94 = arith.constant 0 : index
    %c127_95 = arith.constant 127 : index
    %80 = vector.load %arg10[%c0_94, %c127_95] : memref<16x640xbf16, #tpu.memory_space<vmem>>, vector<16x384xbf16>
    %c48_96 = arith.constant 48 : index
    %c0_97 = arith.constant 0 : index
    %81 = vector.load %arg9[%c48_96, %c0_97] : memref<288x384xbf16, #tpu.memory_space<vmem>>, vector<16x384xbf16>
    tpu.vector_store %arg9[%c48_96, %c0_97], %80 {strides = array<i32>} : memref<288x384xbf16, #tpu.memory_space<vmem>>, vector<16x384xbf16>,
    %c0_98 = arith.constant 0 : index
    %c128_99 = arith.constant 128 : index
    %82 = vector.load %arg10[%c0_98, %c128_99] : memref<16x640xbf16, #tpu.memory_space<vmem>>, vector<16x384xbf16>
    %c64_100 = arith.constant 64 : index
    %c0_101 = arith.constant 0 : index
    %83 = vector.load %arg9[%c64_100, %c0_101] : memref<288x384xbf16, #tpu.memory_space<vmem>>, vector<16x384xbf16>
    tpu.vector_store %arg9[%c64_100, %c0_101], %82 {strides = array<i32>} : memref<288x384xbf16, #tpu.memory_space<vmem>>, vector<16x384xbf16>,
    %c0_102 = arith.constant 0 : index
    %c129_103 = arith.constant 129 : index
    %84 = vector.load %arg10[%c0_102, %c129_103] : memref<16x640xbf16, #tpu.memory_space<vmem>>, vector<16x384xbf16>
    %c80_104 = arith.constant 80 : index
    %c0_105 = arith.constant 0 : index
    %85 = vector.load %arg9[%c80_104, %c0_105] : memref<288x384xbf16, #tpu.memory_space<vmem>>, vector<16x384xbf16>
    tpu.vector_store %arg9[%c80_104, %c0_105], %84 {strides = array<i32>} : memref<288x384xbf16, #tpu.memory_space<vmem>>, vector<16x384xbf16>,
    %c0_106 = arith.constant 0 : index
    %c145_107 = arith.constant 145 : index
    %86 = vector.load %arg10[%c0_106, %c145_107] : memref<16x640xbf16, #tpu.memory_space<vmem>>, vector<16x384xbf16>
    %c96_108 = arith.constant 96 : index
    %c0_109 = arith.constant 0 : index
    %87 = vector.load %arg9[%c96_108, %c0_109] : memref<288x384xbf16, #tpu.memory_space<vmem>>, vector<16x384xbf16>
    tpu.vector_store %arg9[%c96_108, %c0_109], %86 {strides = array<i32>} : memref<288x384xbf16, #tpu.memory_space<vmem>>, vector<16x384xbf16>,
    %c0_110 = arith.constant 0 : index
    %c146_111 = arith.constant 146 : index
    %88 = vector.load %arg10[%c0_110, %c146_111] : memref<16x640xbf16, #tpu.memory_space<vmem>>, vector<16x384xbf16>
    %c112_112 = arith.constant 112 : index
    %c0_113 = arith.constant 0 : index
    %89 = vector.load %arg9[%c112_112, %c0_113] : memref<288x384xbf16, #tpu.memory_space<vmem>>, vector<16x384xbf16>
    tpu.vector_store %arg9[%c112_112, %c0_113], %88 {strides = array<i32>} : memref<288x384xbf16, #tpu.memory_space<vmem>>, vector<16x384xbf16>,
    %c0_114 = arith.constant 0 : index
    %c147_115 = arith.constant 147 : index
    %90 = vector.load %arg10[%c0_114, %c147_115] : memref<16x640xbf16, #tpu.memory_space<vmem>>, vector<16x384xbf16>
    %c128_116 = arith.constant 128 : index
    %c0_117 = arith.constant 0 : index
    %91 = vector.load %arg9[%c128_116, %c0_117] : memref<288x384xbf16, #tpu.memory_space<vmem>>, vector<16x384xbf16>
    tpu.vector_store %arg9[%c128_116, %c0_117], %90 {strides = array<i32>} : memref<288x384xbf16, #tpu.memory_space<vmem>>, vector<16x384xbf16>,
    %c0_118 = arith.constant 0 : index
    %c0_119 = arith.constant 0 : index
    %92 = vector.load %arg5[%c0_118, %c0_119] : memref<16x144xbf16, #tpu.memory_space<vmem>>, vector<16x144xbf16>
    %c0_120 = arith.constant 0 : index
    %c0_121 = arith.constant 0 : index
    %93 = vector.load %arg9[%c0_120, %c0_121] : memref<288x384xbf16, #tpu.memory_space<vmem>>, vector<144x384xbf16>
    %cst_122 = arith.constant dense<0.000000e+00> : vector<16x384xf32>
    %94 = tpu.matmul %92, %93, %cst_122 {dimension_numbers = #tpu.dot_dimension_numbers<[1], [0], [0], [1], [0, 0, 1, 1], [], []>} : vector<16x144xbf16>, vector<144x384xbf16>, vector<16x384xf32> -> vector<16x384xf32>
    %c0_123 = arith.constant 0 : index
    %c0_124 = arith.constant 0 : index
    %95 = vector.load %arg6[%c0_123, %c0_124] : memref<16x1xf32, #tpu.memory_space<vmem>>, vector<16x1xf32>
    %96 = vector.broadcast %95 : vector<16x1xf32> to vector<16x384xf32>
    %97 = arith.addf %94, %96 : vector<16x384xf32>
    %c0_125 = arith.constant 0 : index
    %c0_126 = arith.constant 0 : index
    %98 = vector.load %arg11[%c0_125, %c0_126] : memref<16x384xf32, #tpu.memory_space<vmem>>, vector<16x384xf32>
    %99 = arith.addf %97, %98 : vector<16x384xf32>
    %cst_127 = arith.constant 0.000000e+00 : f32
    %100 = vector.broadcast %cst_127 : f32 to vector<16x384xf32>
    %101 = arith.maximumf %99, %100 : vector<16x384xf32>
    %102 = vector.broadcast %0 : vector<1x384xf32> to vector<16x384xf32>
    %103 = arith.mulf %101, %102 : vector<16x384xf32>
    %cst_128 = arith.constant 0.000000e+00 : f32
    %104 = vector.broadcast %cst_128 : f32 to vector<16x128xf32>
    %c0_129 = arith.constant 0 : index
    %c0_130 = arith.constant 0 : index
    %c0_131 = arith.constant 0 : index
    %105 = vector.load %arg8[%c0_129, %c0_130, %c0_131] : memref<1x16x640xf32, #tpu.memory_space<vmem>>, vector<1x16x128xf32>
    %106 = vector.shape_cast %105 : vector<1x16x128xf32> to vector<16x128xf32>
    %107 = vector.shape_cast %104 : vector<16x128xf32> to vector<1x16x128xf32>
    tpu.vector_store %arg8[%c0_129, %c0_130, %c0_131], %107 {strides = array<i32>} : memref<1x16x640xf32, #tpu.memory_space<vmem>>, vector<1x16x128xf32>,
    %cst_132 = arith.constant 0.000000e+00 : f32
    %108 = vector.broadcast %cst_132 : f32 to vector<16x128xf32>
    %c0_133 = arith.constant 0 : index
    %c0_134 = arith.constant 0 : index
    %c512_135 = arith.constant 512 : index
    %109 = vector.load %arg8[%c0_133, %c0_134, %c512_135] : memref<1x16x640xf32, #tpu.memory_space<vmem>>, vector<1x16x128xf32>
    %110 = vector.shape_cast %109 : vector<1x16x128xf32> to vector<16x128xf32>
    %111 = vector.shape_cast %108 : vector<16x128xf32> to vector<1x16x128xf32>
    tpu.vector_store %arg8[%c0_133, %c0_134, %c512_135], %111 {strides = array<i32>} : memref<1x16x640xf32, #tpu.memory_space<vmem>>, vector<1x16x128xf32>,
    %c0_136 = arith.constant 0 : index
    %c0_137 = arith.constant 0 : index
    %c128_138 = arith.constant 128 : index
    %112 = vector.load %arg8[%c0_136, %c0_137, %c128_138] : memref<1x16x640xf32, #tpu.memory_space<vmem>>, vector<1x16x384xf32>
    %113 = vector.shape_cast %112 : vector<1x16x384xf32> to vector<16x384xf32>
    %114 = vector.shape_cast %103 : vector<16x384xf32> to vector<1x16x384xf32>
    tpu.vector_store %arg8[%c0_136, %c0_137, %c128_138], %114 {strides = array<i32>} : memref<1x16x640xf32, #tpu.memory_space<vmem>>, vector<1x16x384xf32>,
    return
  }
  func.func @transform_0(%arg0: i32) -> (i32, i32, i32) {
    %c0_i32 = arith.constant 0 : i32
    %c0_i32_0 = arith.constant 0 : i32
    %c0_i32_1 = arith.constant 0 : i32
    return %arg0, %c0_i32, %c0_i32_0 : i32, i32, i32
  }
  func.func @transform_1(%arg0: i32) -> (i32, i32, i32) {
    %c0_i32 = arith.constant 0 : i32
    %c0_i32_0 = arith.constant 0 : i32
    %c0_i32_1 = arith.constant 0 : i32
    return %arg0, %c0_i32, %c0_i32_0 : i32, i32, i32
  }
  func.func @transform_2(%arg0: i32) -> (i32, i32) {
    %c0_i32 = arith.constant 0 : i32
    %c0_i32_0 = arith.constant 0 : i32
    %c0_i32_1 = arith.constant 0 : i32
    return %c0_i32, %c0_i32_0 : i32, i32
  }
  func.func @transform_3(%arg0: i32) -> (i32, i32) {
    %c0_i32 = arith.constant 0 : i32
    %c0_i32_0 = arith.constant 0 : i32
    %c0_i32_1 = arith.constant 0 : i32
    return %c0_i32, %c0_i32_0 : i32, i32
  }
  func.func @transform_4(%arg0: i32) -> (i32, i32) {
    %c0_i32 = arith.constant 0 : i32
    %c0_i32_0 = arith.constant 0 : i32
    %c0_i32_1 = arith.constant 0 : i32
    return %c0_i32, %c0_i32_0 : i32, i32
  }
  func.func @transform_5(%arg0: i32) -> (i32, i32) {
    %c0_i32 = arith.constant 0 : i32
    %c0_i32_0 = arith.constant 0 : i32
    %c0_i32_1 = arith.constant 0 : i32
    return %c0_i32, %c0_i32_0 : i32, i32
  }
  func.func @transform_6(%arg0: i32) -> (i32, i32) {
    %c0_i32 = arith.constant 0 : i32
    %c0_i32_0 = arith.constant 0 : i32
    %c0_i32_1 = arith.constant 0 : i32
    return %c0_i32, %c0_i32_0 : i32, i32
  }
  func.func @transform_7(%arg0: i32) -> (i32, i32, i32) {
    %c0_i32 = arith.constant 0 : i32
    %c0_i32_0 = arith.constant 0 : i32
    %c0_i32_1 = arith.constant 0 : i32
    return %arg0, %c0_i32, %c0_i32_0 : i32, i32, i32
  }
}

</mosaic_0001>

<llo_original>
// kernel: resnet18_blocks_up_forward.2
$region0: #{resnet18_blocks_up_forward.2}
  #allocation0 [shape = 'u32[]', space=smem, size = 0x4, offset = 0x4, fixed_abs, tag = 'smem constant byte address 0x4 - core index']
  #allocation1 [shape = 'u32[144,128]{1,0:T(1,128)}', space=vmem, size = 0x12000, scoped, tag = 'internal scratch']
  #allocation2 [shape = 'bf16[144,384]{1,0:T(16,128)(2,1)}', space=vmem, size = 0x1b000, scoped, tag = 'scratch operand']
  #allocation3 [shape = 'bf16[16,640]{1,0:T(16,128)(2,1)}', space=vmem, size = 0x5000, scoped, tag = 'scratch operand']
  #allocation4 [shape = 'f32[16,384]{1,0:T(8,128)}', space=vmem, size = 0x6000, scoped, tag = 'scratch operand']
  %s0 = inlined_call_operand.vmem [shape: bf16[2,16,640], index: 0, kind: input, shape index: {}]
  %s1 = inlined_call_operand.vmem [shape: bf16[32,144], index: 1, kind: input, shape index: {}]
  %s2 = inlined_call_operand.vmem [shape: f32[32,1], index: 2, kind: input, shape index: {}]
  %s3 = inlined_call_operand.vmem [shape: bf16[16,144], index: 3, kind: input, shape index: {}]
  %s4 = inlined_call_operand.vmem [shape: f32[16,1], index: 4, kind: input, shape index: {}]
  %s5 = inlined_call_operand.vmem [shape: f32[1,384], index: 5, kind: input, shape index: {}]
  %s6 = inlined_call_operand.vmem [shape: bf16[2,16,640], index: 6, kind: output, shape index: {}]
  %s7 = sld [smem:[#allocation0]]
  $region57: #{resnet18_blocks_up_forward.2} parent=0
    _
  %s9 = ssub.s32 1, %s7
  %s10 = scalar_select 0, %s9, %s7
  loop: start=0, step=1, limit=4
  $region2: #{resnet18_blocks_up_forward.2} parent=0 // loop_pre_header
    _
  $region3: #{resnet18_blocks_up_forward.2} parent=0 // loop_header
    %s12 = sphi 0, %s16
    %p13 = scmp.ge.s32.totalorder %s12, 4
    %s22 = sphi 0, %s24
    %s25 = sphi 0, %s22
    %s26 = sphi 0, %s25
    %s42 = sphi 0, %s26
    %s46 = sphi 0, %s46
    %s48 = sphi 0, %s46
    %s49 = sphi 0, %s48
    %s63 = sphi 0, %s49
    %s67 = sphi 0, %s67
    %s69 = sphi 0, %s67
    %s70 = sphi 0, %s69
    %s84 = sphi 0, %s70
    %s88 = sphi 0, %s88
    %s90 = sphi 0, %s88
    %s91 = sphi 0, %s90
    %s105 = sphi 0, %s91
    %s109 = sphi 0, %s109
    %s111 = sphi 0, %s109
    %s112 = sphi 0, %s111
    %s126 = sphi 0, %s112
    %s130 = sphi 0, %s130
    %s132 = sphi 0, %s130
    %s133 = sphi 0, %s132
    %s147 = sphi 0, %s133
    %s153 = sphi 0, %s155
    %s156 = sphi 0, %s153
    %s157 = sphi 0, %s156
    %s173 = sphi 0, %s157
  $region4: #{resnet18_blocks_up_forward.2} parent=0 // loop_header_branch
    %15 = sbr.rel (%p13) target = $region8
  $region5: #{resnet18_blocks_up_forward.2} parent=0 // loop_body
    %s17 = ssub.s32 %s12, 1
    %s18 = ssub.s32 %s12, 2
    %s19 = sadd.s32 %s12, 1
    %s20 = ssub.s32 %s12, %s19
    %p21 = scmp.eq.s32.totalorder %s20, 0
    %s23 = sadd.s32 %s22, 1
    %s24 = scalar_select %p21, %s22, %s23
    %p27 = pneg %p21
    %p28 = scmp.eq.s32.totalorder %s12, 1
    %p29 = por %p27, %p28
    %p30 = scmp.ne.s32.totalorder %s22, %s25
    %p31 = scmp.eq.s32.totalorder %s12, 0
    %p32 = por %p30, %p31
    %p33 = scmp.ne.s32.totalorder %s22, %s25
    %p34 = scmp.eq.s32.totalorder %s17, 1
    %p35 = por %p33, %p34
    %p36 = scmp.ne.s32.totalorder %s25, %s26
    %p37 = scmp.eq.s32.totalorder %s17, 0
    %p38 = por %p36, %p37
    %p39 = scmp.ne.s32.totalorder %s25, %s26
    %p40 = scmp.eq.s32.totalorder %s18, 1
    %p41 = por %p39, %p40
    %p43 = scmp.ne.s32.totalorder %s26, %s42
    %p44 = scmp.eq.s32.totalorder %s18, 0
    %p45 = por %p43, %p44
    %s47 = sadd.s32 %s46, 1
    %p50 = scmp.eq.s32.totalorder %s12, 1
    %p51 = scmp.ne.s32.totalorder %s46, %s48
    %p52 = scmp.eq.s32.totalorder %s12, 0
    %p53 = por %p51, %p52
    %p54 = scmp.ne.s32.totalorder %s46, %s48
    %p55 = scmp.eq.s32.totalorder %s17, 1
    %p56 = por %p54, %p55
    %p57 = scmp.ne.s32.totalorder %s48, %s49
    %p58 = scmp.eq.s32.totalorder %s17, 0
    %p59 = por %p57, %p58
    %p60 = scmp.ne.s32.totalorder %s48, %s49
    %p61 = scmp.eq.s32.totalorder %s18, 1
    %p62 = por %p60, %p61
    %p64 = scmp.ne.s32.totalorder %s49, %s63
    %p65 = scmp.eq.s32.totalorder %s18, 0
    %p66 = por %p64, %p65
    %s68 = sadd.s32 %s67, 1
    %p71 = scmp.eq.s32.totalorder %s12, 1
    %p72 = scmp.ne.s32.totalorder %s67, %s69
    %p73 = scmp.eq.s32.totalorder %s12, 0
    %p74 = por %p72, %p73
    %p75 = scmp.ne.s32.totalorder %s67, %s69
    %p76 = scmp.eq.s32.totalorder %s17, 1
    %p77 = por %p75, %p76
    %p78 = scmp.ne.s32.totalorder %s69, %s70
    %p79 = scmp.eq.s32.totalorder %s17, 0
    %p80 = por %p78, %p79
    %p81 = scmp.ne.s32.totalorder %s69, %s70
    %p82 = scmp.eq.s32.totalorder %s18, 1
    %p83 = por %p81, %p82
    %p85 = scmp.ne.s32.totalorder %s70, %s84
    %p86 = scmp.eq.s32.totalorder %s18, 0
    %p87 = por %p85, %p86
    %s89 = sadd.s32 %s88, 1
    %p92 = scmp.eq.s32.totalorder %s12, 1
    %p93 = scmp.ne.s32.totalorder %s88, %s90
    %p94 = scmp.eq.s32.totalorder %s12, 0
    %p95 = por %p93, %p94
    %p96 = scmp.ne.s32.totalorder %s88, %s90
    %p97 = scmp.eq.s32.totalorder %s17, 1
    %p98 = por %p96, %p97
    %p99 = scmp.ne.s32.totalorder %s90, %s91
    %p100 = scmp.eq.s32.totalorder %s17, 0
    %p101 = por %p99, %p100
    %p102 = scmp.ne.s32.totalorder %s90, %s91
    %p103 = scmp.eq.s32.totalorder %s18, 1
    %p104 = por %p102, %p103
    %p106 = scmp.ne.s32.totalorder %s91, %s105
    %p107 = scmp.eq.s32.totalorder %s18, 0
    %p108 = por %p106, %p107
    %s110 = sadd.s32 %s109, 1
    %p113 = scmp.eq.s32.totalorder %s12, 1
    %p114 = scmp.ne.s32.totalorder %s109, %s111
    %p115 = scmp.eq.s32.totalorder %s12, 0
    %p116 = por %p114, %p115
    %p117 = scmp.ne.s32.totalorder %s109, %s111
    %p118 = scmp.eq.s32.totalorder %s17, 1
    %p119 = por %p117, %p118
    %p120 = scmp.ne.s32.totalorder %s111, %s112
    %p121 = scmp.eq.s32.totalorder %s17, 0
    %p122 = por %p120, %p121
    %p123 = scmp.ne.s32.totalorder %s111, %s112
    %p124 = scmp.eq.s32.totalorder %s18, 1
    %p125 = por %p123, %p124
    %p127 = scmp.ne.s32.totalorder %s112, %s126
    %p128 = scmp.eq.s32.totalorder %s18, 0
    %p129 = por %p127, %p128
    %s131 = sadd.s32 %s130, 1
    %p134 = scmp.eq.s32.totalorder %s12, 1
    %p135 = scmp.ne.s32.totalorder %s130, %s132
    %p136 = scmp.eq.s32.totalorder %s12, 0
    %p137 = por %p135, %p136
    %p138 = scmp.ne.s32.totalorder %s130, %s132
    %p139 = scmp.eq.s32.totalorder %s17, 1
    %p140 = por %p138, %p139
    %p141 = scmp.ne.s32.totalorder %s132, %s133
    %p142 = scmp.eq.s32.totalorder %s17, 0
    %p143 = por %p141, %p142
    %p144 = scmp.ne.s32.totalorder %s132, %s133
    %p145 = scmp.eq.s32.totalorder %s18, 1
    %p146 = por %p144, %p145
    %p148 = scmp.ne.s32.totalorder %s133, %s147
    %p149 = scmp.eq.s32.totalorder %s18, 0
    %p150 = por %p148, %p149
    %s151 = ssub.s32 %s12, %s19
    %p152 = scmp.eq.s32.totalorder %s151, 0
    %s154 = sadd.s32 %s153, 1
    %s155 = scalar_select %p152, %s153, %s154
    %p158 = pneg %p152
    %p159 = scmp.eq.s32.totalorder %s12, 1
    %p160 = por %p158, %p159
    %p161 = scmp.ne.s32.totalorder %s153, %s156
    %p162 = scmp.eq.s32.totalorder %s12, 0
    %p163 = por %p161, %p162
    %p164 = scmp.ne.s32.totalorder %s153, %s156
    %p165 = scmp.eq.s32.totalorder %s17, 1
    %p166 = por %p164, %p165
    %p167 = scmp.ne.s32.totalorder %s156, %s157
    %p168 = scmp.eq.s32.totalorder %s17, 0
    %p169 = por %p167, %p168
    %p170 = scmp.ne.s32.totalorder %s156, %s157
    %p171 = scmp.eq.s32.totalorder %s18, 1
    %p172 = por %p170, %p171
    %p174 = scmp.ne.s32.totalorder %s157, %s173
    %p175 = scmp.eq.s32.totalorder %s18, 0
    %p176 = por %p174, %p175
    %p177 = scmp.le.s32.totalorder 1, %s12
    %p178 = scmp.lt.s32.totalorder %s12, 3
    %p179 = pnand %p177, %p178
    %p180 = pneg %p179
    // Predicated region
    $region9: #{resnet18_blocks_up_forward.2} parent=5 // pred_check
      _
    $region10: #{resnet18_blocks_up_forward.2} parent=5 // pred_check_branch
      %182 = sbr.rel (%p179) target = $region12
    $region11: #{resnet18_blocks_up_forward.2} parent=5 // pred_region
      %s183 = ssub.s32 %s12, 1
      // Predicated region
      $region13: #{resnet18_blocks_up_forward.2} parent=11 // pred_check
        %p184 = pneg %p59
      $region14: #{resnet18_blocks_up_forward.2} parent=11 // pred_check_branch
        %186 = sbr.rel (%p184) target = $region16
      $region15: #{resnet18_blocks_up_forward.2} parent=11 // pred_region
        _
      $region16: #{resnet18_blocks_up_forward.2} parent=11 // pred_fallthru
        _
      // Predicated region
      $region17: #{resnet18_blocks_up_forward.2} parent=11 // pred_check
        %p187 = pneg %p80
      $region18: #{resnet18_blocks_up_forward.2} parent=11 // pred_check_branch
        %189 = sbr.rel (%p187) target = $region20
      $region19: #{resnet18_blocks_up_forward.2} parent=11 // pred_region
        _
      $region20: #{resnet18_blocks_up_forward.2} parent=11 // pred_fallthru
        _
      // Predicated region
      $region21: #{resnet18_blocks_up_forward.2} parent=11 // pred_check
        %p190 = pneg %p101
      $region22: #{resnet18_blocks_up_forward.2} parent=11 // pred_check_branch
        %192 = sbr.rel (%p190) target = $region24
      $region23: #{resnet18_blocks_up_forward.2} parent=11 // pred_region
        _
      $region24: #{resnet18_blocks_up_forward.2} parent=11 // pred_fallthru
        _
      // Predicated region
      $region25: #{resnet18_blocks_up_forward.2} parent=11 // pred_check
        %p193 = pneg %p122
      $region26: #{resnet18_blocks_up_forward.2} parent=11 // pred_check_branch
        %195 = sbr.rel (%p193) target = $region28
      $region27: #{resnet18_blocks_up_forward.2} parent=11 // pred_region
        _
      $region28: #{resnet18_blocks_up_forward.2} parent=11 // pred_fallthru
        _
      // Predicated region
      $region29: #{resnet18_blocks_up_forward.2} parent=11 // pred_check
        %p196 = pneg %p143
      $region30: #{resnet18_blocks_up_forward.2} parent=11 // pred_check_branch
        %198 = sbr.rel (%p196) target = $region32
      $region31: #{resnet18_blocks_up_forward.2} parent=11 // pred_region
        _
      $region32: #{resnet18_blocks_up_forward.2} parent=11 // pred_fallthru
        _
    $region12: #{resnet18_blocks_up_forward.2} parent=5 // pred_fallthru
      _
    %p199 = scmp.lt.s32.totalorder %s12, 2
    // Predicated region
    $region33: #{resnet18_blocks_up_forward.2} parent=5 // pred_check
      %p200 = pneg %p199
    $region34: #{resnet18_blocks_up_forward.2} parent=5 // pred_check_branch
      %202 = sbr.rel (%p200) target = $region36
    $region35: #{resnet18_blocks_up_forward.2} parent=5 // pred_region
      // Predicated region
      $region37: #{resnet18_blocks_up_forward.2} parent=35 // pred_check
        %p203 = pneg %p32
      $region38: #{resnet18_blocks_up_forward.2} parent=35 // pred_check_branch
        %205 = sbr.rel (%p203) target = $region40
      $region39: #{resnet18_blocks_up_forward.2} parent=35 // pred_region
        %p206 = scmp.lt.s32.totalorder %s12, 1
        %s207 = scalar_select %p206, %s12, 1
        %s208 = smul.addr %s207, 10
        %s209 = smul.addr %s208, 4
        %s210 = scalar_lea.vmem %s0, %s209
      $region40: #{resnet18_blocks_up_forward.2} parent=35 // pred_fallthru
        _
    $region36: #{resnet18_blocks_up_forward.2} parent=5 // pred_fallthru
      _
    %p211 = scmp.le.s32.totalorder 1, %s12
    %p212 = scmp.lt.s32.totalorder %s12, 3
    %p213 = pnand %p211, %p212
    %p214 = pneg %p213
    // Predicated region
    $region41: #{resnet18_blocks_up_forward.2} parent=5 // pred_check
      _
    $region42: #{resnet18_blocks_up_forward.2} parent=5 // pred_check_branch
      %216 = sbr.rel (%p213) target = $region44
    $region43: #{resnet18_blocks_up_forward.2} parent=5 // pred_region
      %s217 = ssub.s32 %s12, 1
      %p218 = scmp.lt.s32.totalorder %s17, 1
      %s219 = scalar_select %p218, %s17, 1
      %s220 = smul.addr %s219, 10
      %s221 = smul.addr %s220, 4
      %s222 = scalar_lea.vmem %s0, %s221
      %p223 = pneg %p38
      %p224 = pneg %p35
      %p225 = pneg %p59
      %p226 = pneg %p56
      %p227 = pneg %p80
      %p228 = pneg %p77
      %p229 = pneg %p101
      %p230 = pneg %p98
      %p231 = pneg %p122
      %p232 = pneg %p119
      %p233 = pneg %p143
      %p234 = pneg %p140
      %p235 = pneg %p169
      %p236 = pneg %p166
      %p237 = scmp.lt.s32.totalorder %s17, 1
      %s238 = scalar_select %p237, %s17, 1
      %s239 = smul.addr %s238, 10
      %s240 = smul.addr %s239, 4
      %s241 = scalar_lea.vmem %s6, %s240
      %p242 = scmp.lt.s32.totalorder %s17, 1
      %s243 = scalar_select %p242, %s17, 1
      %s244 = smul.addr %s243, 10
      %s245 = smul.addr %s244, 4
      %s246 = scalar_lea.vmem %s0, %s245
      %p247 = scmp.lt.s32.totalorder %s17, 1
      %s248 = scalar_select %p247, %s17, 1
      %s249 = smul.addr %s248, 10
      %s250 = smul.addr %s249, 4
      %s251 = scalar_lea.vmem %s6, %s250
      %v253 = vld [vmem:[%s5] sm:$0x7]
      %v254 = vld [vmem:[%s246] sm:$0xff]
      %v255 = vld [vmem:[%s246 + $0x8] sm:$0xff]
      %v256 = vld [vmem:[%s246 + $0x14] sm:$0xff]
      %v257 = vld [vmem:[%s246 + $0x1c] sm:$0xff]
      %v262 = vunpack.c.l.b16 %v254
      %v263 = vunpack.c.h.b16 %v254
      %v264 = vunpack.c.l.b16 %v255
      %v265 = vunpack.c.h.b16 %v255
      %v266 = vunpack.c.l.b16 %v256
      %v267 = vunpack.c.h.b16 %v256
      %v268 = vunpack.c.l.b16 %v257
      %v269 = vunpack.c.h.b16 %v257
      %v270 = vpack.c.b16 %v266, %v262
      %v271 = vpack.c.b16 %v267, %v263
      %v272 = vpack.c.b16 %v268, %v264
      %v273 = vpack.c.b16 %v269, %v265
      %274 = vrot.lane.b32.xlu0 %v270, 19
      %v275 = vpop.permute.xlu0 %274
      %276 = vrot.lane.b32.xlu0 %v271, 19
      %v277 = vpop.permute.xlu0 %276
      %278 = vrot.lane.b32.xlu0 %v272, 19
      %v279 = vpop.permute.xlu0 %278
      %280 = vrot.lane.b32.xlu0 %v273, 19
      %v281 = vpop.permute.xlu0 %280
      %vm282 = vcmask 154624
      %v283 = vsel %vm282, %v275, %v277
      %v284 = vsel %vm282, %v277, %v279
      %v285 = vsel %vm282, %v279, %v281
      %289 = vst [vmem:[#allocation2] sm:$0xff] %v283
      %290 = vst [vmem:[#allocation2 + $0x8] sm:$0xff] %v284
      %291 = vst [vmem:[#allocation2 + $0x10] sm:$0xff] %v285
      %v292 = vld [vmem:[%s246] sm:$0xff]
      %v293 = vld [vmem:[%s246 + $0x8] sm:$0xff]
      %v294 = vld [vmem:[%s246 + $0x14] sm:$0xff]
      %v295 = vld [vmem:[%s246 + $0x1c] sm:$0xff]
      %v300 = vunpack.c.l.b16 %v292
      %v301 = vunpack.c.h.b16 %v292
      %v302 = vunpack.c.l.b16 %v293
      %v303 = vunpack.c.h.b16 %v293
      %v304 = vunpack.c.l.b16 %v294
      %v305 = vunpack.c.h.b16 %v294
      %v306 = vunpack.c.l.b16 %v295
      %v307 = vunpack.c.h.b16 %v295
      %v308 = vpack.c.b16 %v304, %v300
      %v309 = vpack.c.b16 %v305, %v301
      %v310 = vpack.c.b16 %v306, %v302
      %v311 = vpack.c.b16 %v307, %v303
      %312 = vrot.lane.b32.xlu0 %v308, 18
      %v313 = vpop.permute.xlu0 %312
      %314 = vrot.lane.b32.xlu0 %v309, 18
      %v315 = vpop.permute.xlu0 %314
      %316 = vrot.lane.b32.xlu0 %v310, 18
      %v317 = vpop.permute.xlu0 %316
      %318 = vrot.lane.b32.xlu0 %v311, 18
      %v319 = vpop.permute.xlu0 %318
      %vm320 = vcmask 146432
      %v321 = vsel %vm320, %v313, %v315
      %v322 = vsel %vm320, %v315, %v317
      %v323 = vsel %vm320, %v317, %v319
      %327 = vst [vmem:[#allocation2 + $0x18] sm:$0xff] %v321
      %328 = vst [vmem:[#allocation2 + $0x20] sm:$0xff] %v322
      %329 = vst [vmem:[#allocation2 + $0x28] sm:$0xff] %v323
      %v330 = vld [vmem:[%s246] sm:$0xff]
      %v331 = vld [vmem:[%s246 + $0x8] sm:$0xff]
      %v332 = vld [vmem:[%s246 + $0x14] sm:$0xff]
      %v333 = vld [vmem:[%s246 + $0x1c] sm:$0xff]
      %v338 = vunpack.c.l.b16 %v330
      %v339 = vunpack.c.h.b16 %v330
      %v340 = vunpack.c.l.b16 %v331
      %v341 = vunpack.c.h.b16 %v331
      %v342 = vunpack.c.l.b16 %v332
      %v343 = vunpack.c.h.b16 %v332
      %v344 = vunpack.c.l.b16 %v333
      %v345 = vunpack.c.h.b16 %v333
      %v346 = vpack.c.b16 %v342, %v338
      %v347 = vpack.c.b16 %v343, %v339
      %v348 = vpack.c.b16 %v344, %v340
      %v349 = vpack.c.b16 %v345, %v341
      %350 = vrot.lane.b32.xlu0 %v346, 17
      %v351 = vpop.permute.xlu0 %350
      %352 = vrot.lane.b32.xlu0 %v347, 17
      %v353 = vpop.permute.xlu0 %352
      %354 = vrot.lane.b32.xlu0 %v348, 17
      %v355 = vpop.permute.xlu0 %354
      %356 = vrot.lane.b32.xlu0 %v349, 17
      %v357 = vpop.permute.xlu0 %356
      %vm358 = vcmask 138240
      %v359 = vsel %vm358, %v351, %v353
      %v360 = vsel %vm358, %v353, %v355
      %v361 = vsel %vm358, %v355, %v357
      %365 = vst [vmem:[#allocation2 + $0x30] sm:$0xff] %v359
      %366 = vst [vmem:[#allocation2 + $0x38] sm:$0xff] %v360
      %367 = vst [vmem:[#allocation2 + $0x40] sm:$0xff] %v361
      %v368 = vld [vmem:[%s246] sm:$0xff]
      %v369 = vld [vmem:[%s246 + $0x8] sm:$0xff]
      %v370 = vld [vmem:[%s246 + $0x14] sm:$0xff]
      %v371 = vld [vmem:[%s246 + $0x1c] sm:$0xff]
      %v376 = vunpack.c.l.b16 %v368
      %v377 = vunpack.c.h.b16 %v368
      %v378 = vunpack.c.l.b16 %v369
      %v379 = vunpack.c.h.b16 %v369
      %v380 = vunpack.c.l.b16 %v370
      %v381 = vunpack.c.h.b16 %v370
      %v382 = vunpack.c.l.b16 %v371
      %v383 = vunpack.c.h.b16 %v371
      %v384 = vpack.c.b16 %v380, %v376
      %v385 = vpack.c.b16 %v381, %v377
      %v386 = vpack.c.b16 %v382, %v378
      %v387 = vpack.c.b16 %v383, %v379
      %388 = vrot.lane.b32.xlu0 %v384, 1
      %v389 = vpop.permute.xlu0 %388
      %390 = vrot.lane.b32.xlu0 %v385, 1
      %v391 = vpop.permute.xlu0 %390
      %392 = vrot.lane.b32.xlu0 %v386, 1
      %v393 = vpop.permute.xlu0 %392
      %394 = vrot.lane.b32.xlu0 %v387, 1
      %v395 = vpop.permute.xlu0 %394
      %vm396 = vcmask 7168
      %v397 = vsel %vm396, %v389, %v391
      %v398 = vsel %vm396, %v391, %v393
      %v399 = vsel %vm396, %v393, %v395
      %403 = vst [vmem:[#allocation2 + $0x48] sm:$0xff] %v397
      %404 = vst [vmem:[#allocation2 + $0x50] sm:$0xff] %v398
      %405 = vst [vmem:[#allocation2 + $0x58] sm:$0xff] %v399
      %v406 = vld [vmem:[%s246 + $0x4] sm:$0xff]
      %v407 = vld [vmem:[%s246 + $0xc] sm:$0xf]
      %v408 = vld [vmem:[%s246 + $0x18] sm:$0xff]
      %v409 = vld [vmem:[%s246 + $0x20] sm:$0xf]
      %v414 = vunpack.c.l.b16 %v406
      %v415 = vunpack.c.h.b16 %v406
      %v416 = vunpack.c.l.b16 %v407
      %v417 = vunpack.c.l.b16 %v408
      %v418 = vunpack.c.h.b16 %v408
      %v419 = vunpack.c.l.b16 %v409
      %v420 = vpack.c.b16 %v417, %v414
      %v421 = vpack.c.b16 %v418, %v415
      %v422 = vpack.c.b16 %v419, %v416
      %426 = vst [vmem:[#allocation2 + $0x60] sm:$0xff] %v420
      %427 = vst [vmem:[#allocation2 + $0x68] sm:$0xff] %v421
      %428 = vst [vmem:[#allocation2 + $0x70] sm:$0xff] %v422
      %v429 = vld [vmem:[%s246 + $0x4] sm:$0xff]
      %v430 = vld [vmem:[%s246 + $0xc] sm:$0xff]
      %v431 = vld [vmem:[%s246 + $0x18] sm:$0xff]
      %v432 = vld [vmem:[%s246 + $0x20] sm:$0xff]
      %v437 = vunpack.c.l.b16 %v429
      %v438 = vunpack.c.h.b16 %v429
      %v439 = vunpack.c.l.b16 %v430
      %v440 = vunpack.c.h.b16 %v430
      %v441 = vunpack.c.l.b16 %v431
      %v442 = vunpack.c.h.b16 %v431
      %v443 = vunpack.c.l.b16 %v432
      %v444 = vunpack.c.h.b16 %v432
      %v445 = vpack.c.b16 %v441, %v437
      %v446 = vpack.c.b16 %v442, %v438
      %v447 = vpack.c.b16 %v443, %v439
      %v448 = vpack.c.b16 %v444, %v440
      %449 = vrot.lane.b32.xlu0 %v445, 127
      %v450 = vpop.permute.xlu0 %449
      %451 = vrot.lane.b32.xlu0 %v446, 127
      %v452 = vpop.permute.xlu0 %451
      %453 = vrot.lane.b32.xlu0 %v447, 127
      %v454 = vpop.permute.xlu0 %453
      %455 = vrot.lane.b32.xlu0 %v448, 127
      %v456 = vpop.permute.xlu0 %455
      %vm457 = vcmask 1039360
      %v458 = vsel %vm457, %v450, %v452
      %v459 = vsel %vm457, %v452, %v454
      %v460 = vsel %vm457, %v454, %v456
      %464 = vst [vmem:[#allocation2 + $0x78] sm:$0xff] %v458
      %465 = vst [vmem:[#allocation2 + $0x80] sm:$0xff] %v459
      %466 = vst [vmem:[#allocation2 + $0x88] sm:$0xff] %v460
      %v467 = vld [vmem:[%s246 + $0x4] sm:$0xff]
      %v468 = vld [vmem:[%s246 + $0xc] sm:$0xff]
      %v469 = vld [vmem:[%s246 + $0x18] sm:$0xff]
      %v470 = vld [vmem:[%s246 + $0x20] sm:$0xff]
      %v475 = vunpack.c.l.b16 %v467
      %v476 = vunpack.c.h.b16 %v467
      %v477 = vunpack.c.l.b16 %v468
      %v478 = vunpack.c.h.b16 %v468
      %v479 = vunpack.c.l.b16 %v469
      %v480 = vunpack.c.h.b16 %v469
      %v481 = vunpack.c.l.b16 %v470
      %v482 = vunpack.c.h.b16 %v470
      %v483 = vpack.c.b16 %v479, %v475
      %v484 = vpack.c.b16 %v480, %v476
      %v485 = vpack.c.b16 %v481, %v477
      %v486 = vpack.c.b16 %v482, %v478
      %487 = vrot.lane.b32.xlu0 %v483, 111
      %v488 = vpop.permute.xlu0 %487
      %489 = vrot.lane.b32.xlu0 %v484, 111
      %v490 = vpop.permute.xlu0 %489
      %491 = vrot.lane.b32.xlu0 %v485, 111
      %v492 = vpop.permute.xlu0 %491
      %493 = vrot.lane.b32.xlu0 %v486, 111
      %v494 = vpop.permute.xlu0 %493
      %vm495 = vcmask 908288
      %v496 = vsel %vm495, %v488, %v490
      %v497 = vsel %vm495, %v490, %v492
      %v498 = vsel %vm495, %v492, %v494
      %502 = vst [vmem:[#allocation2 + $0x90] sm:$0xff] %v496
      %503 = vst [vmem:[#allocation2 + $0x98] sm:$0xff] %v497
      %504 = vst [vmem:[#allocation2 + $0xa0] sm:$0xff] %v498
      %v505 = vld [vmem:[%s246 + $0x4] sm:$0xff]
      %v506 = vld [vmem:[%s246 + $0xc] sm:$0xff]
      %v507 = vld [vmem:[%s246 + $0x18] sm:$0xff]
      %v508 = vld [vmem:[%s246 + $0x20] sm:$0xff]
      %v513 = vunpack.c.l.b16 %v505
      %v514 = vunpack.c.h.b16 %v505
      %v515 = vunpack.c.l.b16 %v506
      %v516 = vunpack.c.h.b16 %v506
      %v517 = vunpack.c.l.b16 %v507
      %v518 = vunpack.c.h.b16 %v507
      %v519 = vunpack.c.l.b16 %v508
      %v520 = vunpack.c.h.b16 %v508
      %v521 = vpack.c.b16 %v517, %v513
      %v522 = vpack.c.b16 %v518, %v514
      %v523 = vpack.c.b16 %v519, %v515
      %v524 = vpack.c.b16 %v520, %v516
      %525 = vrot.lane.b32.xlu0 %v521, 110
      %v526 = vpop.permute.xlu0 %525
      %527 = vrot.lane.b32.xlu0 %v522, 110
      %v528 = vpop.permute.xlu0 %527
      %529 = vrot.lane.b32.xlu0 %v523, 110
      %v530 = vpop.permute.xlu0 %529
      %531 = vrot.lane.b32.xlu0 %v524, 110
      %v532 = vpop.permute.xlu0 %531
      %vm533 = vcmask 900096
      %v534 = vsel %vm533, %v526, %v528
      %v535 = vsel %vm533, %v528, %v530
      %v536 = vsel %vm533, %v530, %v532
      %540 = vst [vmem:[#allocation2 + $0xa8] sm:$0xff] %v534
      %541 = vst [vmem:[#allocation2 + $0xb0] sm:$0xff] %v535
      %542 = vst [vmem:[#allocation2 + $0xb8] sm:$0xff] %v536
      %v543 = vld [vmem:[%s246 + $0x4] sm:$0xff]
      %v544 = vld [vmem:[%s246 + $0xc] sm:$0xff]
      %v545 = vld [vmem:[%s246 + $0x18] sm:$0xff]
      %v546 = vld [vmem:[%s246 + $0x20] sm:$0xff]
      %v551 = vunpack.c.l.b16 %v543
      %v552 = vunpack.c.h.b16 %v543
      %v553 = vunpack.c.l.b16 %v544
      %v554 = vunpack.c.h.b16 %v544
      %v555 = vunpack.c.l.b16 %v545
      %v556 = vunpack.c.h.b16 %v545
      %v557 = vunpack.c.l.b16 %v546
      %v558 = vunpack.c.h.b16 %v546
      %v559 = vpack.c.b16 %v555, %v551
      %v560 = vpack.c.b16 %v556, %v552
      %v561 = vpack.c.b16 %v557, %v553
      %v562 = vpack.c.b16 %v558, %v554
      %563 = vrot.lane.b32.xlu0 %v559, 109
      %v564 = vpop.permute.xlu0 %563
      %565 = vrot.lane.b32.xlu0 %v560, 109
      %v566 = vpop.permute.xlu0 %565
      %567 = vrot.lane.b32.xlu0 %v561, 109
      %v568 = vpop.permute.xlu0 %567
      %569 = vrot.lane.b32.xlu0 %v562, 109
      %v570 = vpop.permute.xlu0 %569
      %vm571 = vcmask 891904
      %v572 = vsel %vm571, %v564, %v566
      %v573 = vsel %vm571, %v566, %v568
      %v574 = vsel %vm571, %v568, %v570
      %578 = vst [vmem:[#allocation2 + $0xc0] sm:$0xff] %v572
      %579 = vst [vmem:[#allocation2 + $0xc8] sm:$0xff] %v573
      %580 = vst [vmem:[#allocation2 + $0xd0] sm:$0xff] %v574
      %v581 = vld [vmem:[%s1] sm:$0xff]
      %v582 = vld [vmem:[%s1 + $0x8] sm:$0xff]
      %v583 = vld [vmem:[%s1 + $0x10] sm:$0xff]
      %v584 = vld [vmem:[%s1 + $0x18] sm:$0xff]
      %v585 = vld [vmem:[#allocation2] sm:$0xff]
      %v586 = vld [vmem:[#allocation2 + $0x8] sm:$0xff]
      %v587 = vld [vmem:[#allocation2 + $0x10] sm:$0xff]
      %v588 = vld [vmem:[#allocation2 + $0x18] sm:$0xff]
      %v589 = vld [vmem:[#allocation2 + $0x20] sm:$0xff]
      %v590 = vld [vmem:[#allocation2 + $0x28] sm:$0xff]
      %v591 = vld [vmem:[#allocation2 + $0x30] sm:$0xff]
      %v592 = vld [vmem:[#allocation2 + $0x38] sm:$0xff]
      %v593 = vld [vmem:[#allocation2 + $0x40] sm:$0xff]
      %v594 = vld [vmem:[#allocation2 + $0x48] sm:$0xff]
      %v595 = vld [vmem:[#allocation2 + $0x50] sm:$0xff]
      %v596 = vld [vmem:[#allocation2 + $0x58] sm:$0xff]
      %v597 = vld [vmem:[#allocation2 + $0x60] sm:$0xff]
      %v598 = vld [vmem:[#allocation2 + $0x68] sm:$0xff]
      %v599 = vld [vmem:[#allocation2 + $0x70] sm:$0xff]
      %v600 = vld [vmem:[#allocation2 + $0x78] sm:$0xff]
      %v601 = vld [vmem:[#allocation2 + $0x80] sm:$0xff]
      %v602 = vld [vmem:[#allocation2 + $0x88] sm:$0xff]
      %v603 = vld [vmem:[#allocation2 + $0x90] sm:$0xff]
      %v604 = vld [vmem:[#allocation2 + $0x98] sm:$0xff]
      %v605 = vld [vmem:[#allocation2 + $0xa0] sm:$0xff]
      %v606 = vld [vmem:[#allocation2 + $0xa8] sm:$0xff]
      %v607 = vld [vmem:[#allocation2 + $0xb0] sm:$0xff]
      %v608 = vld [vmem:[#allocation2 + $0xb8] sm:$0xff]
      %v609 = vld [vmem:[#allocation2 + $0xc0] sm:$0xff]
      %v610 = vld [vmem:[#allocation2 + $0xc8] sm:$0xff]
      %v611 = vld [vmem:[#allocation2 + $0xd0] sm:$0xff]
      %v612 = vld [vmem:[%s2] sm:$0xff]
      %v613 = vld [vmem:[%s2 + $0x8] sm:$0xff]
      %v614 = vld [vmem:[%s2 + $0x10] sm:$0xff]
      %v615 = vld [vmem:[%s2 + $0x18] sm:$0xff]
      %617 = vset.pattern.permute.xlu0 0
      %618 = vperm.xlu0 %617, %v612
      %v619 = vpop.permute.xlu0 %618
      %622 = vset.pattern.permute.xlu0 0
      %623 = vperm.xlu0 %622, %v613
      %v624 = vpop.permute.xlu0 %623
      %627 = vset.pattern.permute.xlu0 0
      %628 = vperm.xlu0 %627, %v614
      %v629 = vpop.permute.xlu0 %628
      %632 = vset.pattern.permute.xlu0 0
      %633 = vperm.xlu0 %632, %v615
      %v634 = vpop.permute.xlu0 %633
      %v640 = vunpack.c.l.b16 %v581
      %v641 = vunpack.c.h.b16 %v581
      %v642 = vunpack.c.l.b16 %v582
      %v643 = vunpack.c.h.b16 %v582
      %v644 = vunpack.c.l.b16 %v583
      %v645 = vunpack.c.h.b16 %v583
      %v646 = vunpack.c.l.b16 %v584
      %v647 = vunpack.c.h.b16 %v584
      %v648 = vpack.c.b16 %v642, %v640
      %v649 = vpack.c.b16 %v643, %v641
      %v650 = vpack.c.b16 %v646, %v644
      %v651 = vpack.c.b16 %v647, %v645
      %vm654 = vcmask 130048
      %v656 = vsel %vm654, %v649, 0
      %v659 = vsel %vm654, %v651, 0
      %661 = vmatprep.subr.bf16.mxu0 %v586
      %662 = vmatpush1.bf16.msra.mxu0 %v585
      %663 = vmatprep.subr.bf16.mxu0 %v589
      %664 = vmatpush1.bf16.msra.mxu0 %v588
      %665 = vmatprep.subr.bf16.mxu0 %v592
      %666 = vmatpush1.bf16.msra.mxu0 %v591
      %667 = vmatprep.subr.bf16.mxu0 %v595
      %668 = vmatpush1.bf16.msra.mxu0 %v594
      %669 = vmatprep.subr.bf16.mxu0 %v598
      %670 = vmatpush1.bf16.msra.mxu0 %v597
      %671 = vmatprep.subr.bf16.mxu0 %v601
      %672 = vmatpush1.bf16.msra.mxu0 %v600
      %673 = vmatprep.subr.bf16.mxu0 %v604
      %674 = vmatpush1.bf16.msra.mxu0 %v603
      %675 = vmatprep.subr.bf16.mxu0 %v607
      %676 = vmatpush1.bf16.msra.mxu0 %v606
      %677 = vmatprep.subr.bf16.mxu0 %v610
      %678 = vmatpush1.bf16.msra.mxu0 %v609
      %679 = vmatprep.subr.bf16.mxu0 0
      %680 = vmatpush1.bf16.msra.mxu0 0
      %681 = vmatprep.subr.bf16.mxu0 0
      %682 = vmatpush1.bf16.msra.mxu0 0
      %683 = vmatprep.subr.bf16.mxu0 0
      %684 = vmatpush1.bf16.msra.mxu0 0
      %685 = vmatprep.subr.bf16.mxu0 0
      %686 = vmatpush1.bf16.msra.mxu0 0
      %687 = vmatprep.subr.bf16.mxu0 0
      %688 = vmatpush1.bf16.msra.mxu0 0
      %689 = vmatprep.subr.bf16.mxu0 0
      %690 = vmatpush1.bf16.msra.mxu0 0
      %691 = vmatprep.subr.bf16.mxu0 0
      %692 = vmatpush1.bf16.msra.mxu0 0
      %693 = vmatprep.mubr.bf16.mxu0 %v656
      %694 = vmatmul.mubr.bf16.gmra.mrb[0].mxu0 %v648
      %v695 = vpop.f32.mrb[0].mxu0
      %v696 = vadd.f32 %v619, %v695
      %v697 = vpop.f32.mrb[0].mxu0
      %v698 = vadd.f32 %v619, %v697
      %v699 = vpop.f32.mrb[0].mxu0
      %v700 = vadd.f32 %v624, %v699
      %v701 = vpop.f32.mrb[0].mxu0
      %v702 = vadd.f32 %v624, %v701
      %703 = vmatprep.mubr.bf16.mxu0 %v659
      %704 = vmatmul.mubr.bf16.gmra.mrb[0].mxu0 %v650
      %v705 = vpop.f32.mrb[0].mxu0
      %v706 = vadd.f32 %v629, %v705
      %v707 = vpop.f32.mrb[0].mxu0
      %v708 = vadd.f32 %v629, %v707
      %v709 = vpop.f32.mrb[0].mxu0
      %v710 = vadd.f32 %v634, %v709
      %v711 = vpop.f32.mrb[0].mxu0
      %v712 = vadd.f32 %v634, %v711
      %713 = vdwg.mxu0
      %714 = vmatprep.subr.bf16.mxu0 0
      %715 = vmatpush1.bf16.msra.mxu0 %v587
      %716 = vmatprep.subr.bf16.mxu0 0
      %717 = vmatpush1.bf16.msra.mxu0 %v590
      %718 = vmatprep.subr.bf16.mxu0 0
      %719 = vmatpush1.bf16.msra.mxu0 %v593
      %720 = vmatprep.subr.bf16.mxu0 0
      %721 = vmatpush1.bf16.msra.mxu0 %v596
      %722 = vmatprep.subr.bf16.mxu0 0
      %723 = vmatpush1.bf16.msra.mxu0 %v599
      %724 = vmatprep.subr.bf16.mxu0 0
      %725 = vmatpush1.bf16.msra.mxu0 %v602
      %726 = vmatprep.subr.bf16.mxu0 0
      %727 = vmatpush1.bf16.msra.mxu0 %v605
      %728 = vmatprep.subr.bf16.mxu0 0
      %729 = vmatpush1.bf16.msra.mxu0 %v608
      %730 = vmatprep.subr.bf16.mxu0 0
      %731 = vmatpush1.bf16.msra.mxu0 %v611
      %732 = vmatprep.subr.bf16.mxu0 0
      %733 = vmatpush1.bf16.msra.mxu0 0
      %734 = vmatprep.subr.bf16.mxu0 0
      %735 = vmatpush1.bf16.msra.mxu0 0
      %736 = vmatprep.subr.bf16.mxu0 0
      %737 = vmatpush1.bf16.msra.mxu0 0
      %738 = vmatprep.subr.bf16.mxu0 0
      %739 = vmatpush1.bf16.msra.mxu0 0
      %740 = vmatprep.subr.bf16.mxu0 0
      %741 = vmatpush1.bf16.msra.mxu0 0
      %742 = vmatprep.subr.bf16.mxu0 0
      %743 = vmatpush1.bf16.msra.mxu0 0
      %744 = vmatprep.subr.bf16.mxu0 0
      %745 = vmatpush1.bf16.msra.mxu0 0
      %746 = vmatprep.mubr.bf16.mxu0 %v656
      %747 = vmatmul.mubr.bf16.gmra.mrb[0].mxu0 %v648
      %v748 = vpop.f32.mrb[0].mxu0
      %v749 = vadd.f32 %v619, %v748
      %v750 = vpop.f32.mrb[0].mxu0
      %v751 = vpop.f32.mrb[0].mxu0
      %v752 = vadd.f32 %v624, %v751
      %v753 = vpop.f32.mrb[0].mxu0
      %754 = vmatprep.mubr.bf16.mxu0 %v659
      %755 = vmatmul.mubr.bf16.gmra.mrb[0].mxu0 %v650
      %v756 = vpop.f32.mrb[0].mxu0
      %v757 = vadd.f32 %v629, %v756
      %v758 = vpop.f32.mrb[0].mxu0
      %v759 = vpop.f32.mrb[0].mxu0
      %v760 = vadd.f32 %v634, %v759
      %v761 = vpop.f32.mrb[0].mxu0
      %762 = vdwg.mxu0
      %763 = vst [vmem:[#allocation4] sm:$0xff] %v706
      %764 = vst [vmem:[#allocation4 + $0x8] sm:$0xff] %v708
      %765 = vst [vmem:[#allocation4 + $0x10] sm:$0xff] %v757
      %766 = vst [vmem:[#allocation4 + $0x18] sm:$0xff] %v710
      %767 = vst [vmem:[#allocation4 + $0x20] sm:$0xff] %v712
      %768 = vst [vmem:[#allocation4 + $0x28] sm:$0xff] %v760
      %v769 = vmax.f32 %v696, 0.0
      %v770 = vmax.f32 %v698, 0.0
      %v771 = vmax.f32 %v749, 0.0
      %v772 = vmax.f32 %v700, 0.0
      %v773 = vmax.f32 %v702, 0.0
      %v774 = vmax.f32 %v752, 0.0
      %v776 = vlaneseq
      %v777 = vshrl.u32 %v776, 7
      %v778 = vsub.s32 0, %v777
      %v779 = vrot.slane %v253, %v778
      %v780 = vlaneseq
      %v781 = vshrl.u32 %v780, 7
      %v782 = vsub.s32 1, %v781
      %v783 = vrot.slane %v253, %v782
      %v784 = vlaneseq
      %v785 = vshrl.u32 %v784, 7
      %v786 = vsub.s32 2, %v785
      %v787 = vrot.slane %v253, %v786
      %v791 = vmul.f32 %v769, %v779
      %v792 = vmul.f32 %v770, %v783
      %v793 = vmul.f32 %v771, %v787
      %v794 = vmul.f32 %v772, %v779
      %v795 = vmul.f32 %v773, %v783
      %v796 = vmul.f32 %v774, %v787
      %797 = vst [vmem:[#allocation3] sm:$0xff] 0
      %798 = vst [vmem:[#allocation3 + $0x20] sm:$0xff] 0
      %v799 = vpack.c.bf16 %v794, %v791
      %v800 = vpack.c.bf16 %v795, %v792
      %v801 = vpack.c.bf16 %v796, %v793
      %802 = vst [vmem:[#allocation3 + $0x8] sm:$0xff] %v799
      %803 = vst [vmem:[#allocation3 + $0x10] sm:$0xff] %v800
      %804 = vst [vmem:[#allocation3 + $0x18] sm:$0xff] %v801
      %v805 = vld [vmem:[#allocation3] sm:$0xff]
      %v806 = vld [vmem:[#allocation3 + $0x8] sm:$0xff]
      %v807 = vld [vmem:[#allocation3 + $0x10] sm:$0xff]
      %v808 = vld [vmem:[#allocation3 + $0x18] sm:$0xff]
      %813 = vrot.lane.b32.xlu0 %v805, 19
      %v814 = vpop.permute.xlu0 %813
      %815 = vrot.lane.b32.xlu0 %v806, 19
      %v816 = vpop.permute.xlu0 %815
      %817 = vrot.lane.b32.xlu0 %v807, 19
      %v818 = vpop.permute.xlu0 %817
      %819 = vrot.lane.b32.xlu0 %v808, 19
      %v820 = vpop.permute.xlu0 %819
      %v821 = vsel %vm282, %v814, %v816
      %v822 = vsel %vm282, %v816, %v818
      %v823 = vsel %vm282, %v818, %v820
      %827 = vst [vmem:[#allocation2] sm:$0xff] %v821
      %828 = vst [vmem:[#allocation2 + $0x8] sm:$0xff] %v822
      %829 = vst [vmem:[#allocation2 + $0x10] sm:$0xff] %v823
      %v830 = vld [vmem:[#allocation3] sm:$0xff]
      %v831 = vld [vmem:[#allocation3 + $0x8] sm:$0xff]
      %v832 = vld [vmem:[#allocation3 + $0x10] sm:$0xff]
      %v833 = vld [vmem:[#allocation3 + $0x18] sm:$0xff]
      %838 = vrot.lane.b32.xlu0 %v830, 18
      %v839 = vpop.permute.xlu0 %838
      %840 = vrot.lane.b32.xlu0 %v831, 18
      %v841 = vpop.permute.xlu0 %840
      %842 = vrot.lane.b32.xlu0 %v832, 18
      %v843 = vpop.permute.xlu0 %842
      %844 = vrot.lane.b32.xlu0 %v833, 18
      %v845 = vpop.permute.xlu0 %844
      %v846 = vsel %vm320, %v839, %v841
      %v847 = vsel %vm320, %v841, %v843
      %v848 = vsel %vm320, %v843, %v845
      %852 = vst [vmem:[#allocation2 + $0x18] sm:$0xff] %v846
      %853 = vst [vmem:[#allocation2 + $0x20] sm:$0xff] %v847
      %854 = vst [vmem:[#allocation2 + $0x28] sm:$0xff] %v848
      %v855 = vld [vmem:[#allocation3] sm:$0xff]
      %v856 = vld [vmem:[#allocation3 + $0x8] sm:$0xff]
      %v857 = vld [vmem:[#allocation3 + $0x10] sm:$0xff]
      %v858 = vld [vmem:[#allocation3 + $0x18] sm:$0xff]
      %863 = vrot.lane.b32.xlu0 %v855, 17
      %v864 = vpop.permute.xlu0 %863
      %865 = vrot.lane.b32.xlu0 %v856, 17
      %v866 = vpop.permute.xlu0 %865
      %867 = vrot.lane.b32.xlu0 %v857, 17
      %v868 = vpop.permute.xlu0 %867
      %869 = vrot.lane.b32.xlu0 %v858, 17
      %v870 = vpop.permute.xlu0 %869
      %v871 = vsel %vm358, %v864, %v866
      %v872 = vsel %vm358, %v866, %v868
      %v873 = vsel %vm358, %v868, %v870
      %877 = vst [vmem:[#allocation2 + $0x30] sm:$0xff] %v871
      %878 = vst [vmem:[#allocation2 + $0x38] sm:$0xff] %v872
      %879 = vst [vmem:[#allocation2 + $0x40] sm:$0xff] %v873
      %v880 = vld [vmem:[#allocation3] sm:$0xff]
      %v881 = vld [vmem:[#allocation3 + $0x8] sm:$0xff]
      %v882 = vld [vmem:[#allocation3 + $0x10] sm:$0xff]
      %v883 = vld [vmem:[#allocation3 + $0x18] sm:$0xff]
      %888 = vrot.lane.b32.xlu0 %v880, 1
      %v889 = vpop.permute.xlu0 %888
      %890 = vrot.lane.b32.xlu0 %v881, 1
      %v891 = vpop.permute.xlu0 %890
      %892 = vrot.lane.b32.xlu0 %v882, 1
      %v893 = vpop.permute.xlu0 %892
      %894 = vrot.lane.b32.xlu0 %v883, 1
      %v895 = vpop.permute.xlu0 %894
      %v896 = vsel %vm396, %v889, %v891
      %v897 = vsel %vm396, %v891, %v893
      %v898 = vsel %vm396, %v893, %v895
      %902 = vst [vmem:[#allocation2 + $0x48] sm:$0xff] %v896
      %903 = vst [vmem:[#allocation2 + $0x50] sm:$0xff] %v897
      %904 = vst [vmem:[#allocation2 + $0x58] sm:$0xff] %v898
      %v905 = vld [vmem:[#allocation3 + $0x8] sm:$0xff]
      %v906 = vld [vmem:[#allocation3 + $0x10] sm:$0xff]
      %v907 = vld [vmem:[#allocation3 + $0x18] sm:$0xff]
      %908 = vst [vmem:[#allocation2 + $0x60] sm:$0xff] %v905
      %909 = vst [vmem:[#allocation2 + $0x68] sm:$0xff] %v906
      %910 = vst [vmem:[#allocation2 + $0x70] sm:$0xff] %v907
      %v911 = vld [vmem:[#allocation3 + $0x8] sm:$0xff]
      %v912 = vld [vmem:[#allocation3 + $0x10] sm:$0xff]
      %v913 = vld [vmem:[#allocation3 + $0x18] sm:$0xff]
      %v914 = vld [vmem:[#allocation3 + $0x20] sm:$0xff]
      %919 = vrot.lane.b32.xlu0 %v911, 127
      %v920 = vpop.permute.xlu0 %919
      %921 = vrot.lane.b32.xlu0 %v912, 127
      %v922 = vpop.permute.xlu0 %921
      %923 = vrot.lane.b32.xlu0 %v913, 127
      %v924 = vpop.permute.xlu0 %923
      %925 = vrot.lane.b32.xlu0 %v914, 127
      %v926 = vpop.permute.xlu0 %925
      %v927 = vsel %vm457, %v920, %v922
      %v928 = vsel %vm457, %v922, %v924
      %v929 = vsel %vm457, %v924, %v926
      %933 = vst [vmem:[#allocation2 + $0x78] sm:$0xff] %v927
      %934 = vst [vmem:[#allocation2 + $0x80] sm:$0xff] %v928
      %935 = vst [vmem:[#allocation2 + $0x88] sm:$0xff] %v929
      %v936 = vld [vmem:[#allocation3 + $0x8] sm:$0xff]
      %v937 = vld [vmem:[#allocation3 + $0x10] sm:$0xff]
      %v938 = vld [vmem:[#allocation3 + $0x18] sm:$0xff]
      %v939 = vld [vmem:[#allocation3 + $0x20] sm:$0xff]
      %944 = vrot.lane.b32.xlu0 %v936, 111
      %v945 = vpop.permute.xlu0 %944
      %946 = vrot.lane.b32.xlu0 %v937, 111
      %v947 = vpop.permute.xlu0 %946
      %948 = vrot.lane.b32.xlu0 %v938, 111
      %v949 = vpop.permute.xlu0 %948
      %950 = vrot.lane.b32.xlu0 %v939, 111
      %v951 = vpop.permute.xlu0 %950
      %v952 = vsel %vm495, %v945, %v947
      %v953 = vsel %vm495, %v947, %v949
      %v954 = vsel %vm495, %v949, %v951
      %958 = vst [vmem:[#allocation2 + $0x90] sm:$0xff] %v952
      %959 = vst [vmem:[#allocation2 + $0x98] sm:$0xff] %v953
      %960 = vst [vmem:[#allocation2 + $0xa0] sm:$0xff] %v954
      %v961 = vld [vmem:[#allocation3 + $0x8] sm:$0xff]
      %v962 = vld [vmem:[#allocation3 + $0x10] sm:$0xff]
      %v963 = vld [vmem:[#allocation3 + $0x18] sm:$0xff]
      %v964 = vld [vmem:[#allocation3 + $0x20] sm:$0xff]
      %969 = vrot.lane.b32.xlu0 %v961, 110
      %v970 = vpop.permute.xlu0 %969
      %971 = vrot.lane.b32.xlu0 %v962, 110
      %v972 = vpop.permute.xlu0 %971
      %973 = vrot.lane.b32.xlu0 %v963, 110
      %v974 = vpop.permute.xlu0 %973
      %975 = vrot.lane.b32.xlu0 %v964, 110
      %v976 = vpop.permute.xlu0 %975
      %v977 = vsel %vm533, %v970, %v972
      %v978 = vsel %vm533, %v972, %v974
      %v979 = vsel %vm533, %v974, %v976
      %983 = vst [vmem:[#allocation2 + $0xa8] sm:$0xff] %v977
      %984 = vst [vmem:[#allocation2 + $0xb0] sm:$0xff] %v978
      %985 = vst [vmem:[#allocation2 + $0xb8] sm:$0xff] %v979
      %v986 = vld [vmem:[#allocation3 + $0x8] sm:$0xff]
      %v987 = vld [vmem:[#allocation3 + $0x10] sm:$0xff]
      %v988 = vld [vmem:[#allocation3 + $0x18] sm:$0xff]
      %v989 = vld [vmem:[#allocation3 + $0x20] sm:$0xff]
      %994 = vrot.lane.b32.xlu0 %v986, 109
      %v995 = vpop.permute.xlu0 %994
      %996 = vrot.lane.b32.xlu0 %v987, 109
      %v997 = vpop.permute.xlu0 %996
      %998 = vrot.lane.b32.xlu0 %v988, 109
      %v999 = vpop.permute.xlu0 %998
      %1000 = vrot.lane.b32.xlu0 %v989, 109
      %v1001 = vpop.permute.xlu0 %1000
      %v1002 = vsel %vm571, %v995, %v997
      %v1003 = vsel %vm571, %v997, %v999
      %v1004 = vsel %vm571, %v999, %v1001
      %1008 = vst [vmem:[#allocation2 + $0xc0] sm:$0xff] %v1002
      %1009 = vst [vmem:[#allocation2 + $0xc8] sm:$0xff] %v1003
      %1010 = vst [vmem:[#allocation2 + $0xd0] sm:$0xff] %v1004
      %v1011 = vld [vmem:[%s3] sm:$0xff]
      %v1012 = vld [vmem:[%s3 + $0x8] sm:$0xff]
      %v1013 = vld [vmem:[#allocation2] sm:$0xff]
      %v1014 = vld [vmem:[#allocation2 + $0x8] sm:$0xff]
      %v1015 = vld [vmem:[#allocation2 + $0x10] sm:$0xff]
      %v1016 = vld [vmem:[#allocation2 + $0x18] sm:$0xff]
      %v1017 = vld [vmem:[#allocation2 + $0x20] sm:$0xff]
      %v1018 = vld [vmem:[#allocation2 + $0x28] sm:$0xff]
      %v1019 = vld [vmem:[#allocation2 + $0x30] sm:$0xff]
      %v1020 = vld [vmem:[#allocation2 + $0x38] sm:$0xff]
      %v1021 = vld [vmem:[#allocation2 + $0x40] sm:$0xff]
      %v1022 = vld [vmem:[#allocation2 + $0x48] sm:$0xff]
      %v1023 = vld [vmem:[#allocation2 + $0x50] sm:$0xff]
      %v1024 = vld [vmem:[#allocation2 + $0x58] sm:$0xff]
      %v1025 = vld [vmem:[#allocation2 + $0x60] sm:$0xff]
      %v1026 = vld [vmem:[#allocation2 + $0x68] sm:$0xff]
      %v1027 = vld [vmem:[#allocation2 + $0x70] sm:$0xff]
      %v1028 = vld [vmem:[#allocation2 + $0x78] sm:$0xff]
      %v1029 = vld [vmem:[#allocation2 + $0x80] sm:$0xff]
      %v1030 = vld [vmem:[#allocation2 + $0x88] sm:$0xff]
      %v1031 = vld [vmem:[#allocation2 + $0x90] sm:$0xff]
      %v1032 = vld [vmem:[#allocation2 + $0x98] sm:$0xff]
      %v1033 = vld [vmem:[#allocation2 + $0xa0] sm:$0xff]
      %v1034 = vld [vmem:[#allocation2 + $0xa8] sm:$0xff]
      %v1035 = vld [vmem:[#allocation2 + $0xb0] sm:$0xff]
      %v1036 = vld [vmem:[#allocation2 + $0xb8] sm:$0xff]
      %v1037 = vld [vmem:[#allocation2 + $0xc0] sm:$0xff]
      %v1038 = vld [vmem:[#allocation2 + $0xc8] sm:$0xff]
      %v1039 = vld [vmem:[#allocation2 + $0xd0] sm:$0xff]
      %v1040 = vld [vmem:[%s4] sm:$0xff]
      %v1041 = vld [vmem:[%s4 + $0x8] sm:$0xff]
      %1043 = vset.pattern.permute.xlu0 0
      %1044 = vperm.xlu0 %1043, %v1040
      %v1045 = vpop.permute.xlu0 %1044
      %1048 = vset.pattern.permute.xlu0 0
      %1049 = vperm.xlu0 %1048, %v1041
      %v1050 = vpop.permute.xlu0 %1049
      %v1054 = vunpack.c.l.b16 %v1011
      %v1055 = vunpack.c.h.b16 %v1011
      %v1056 = vunpack.c.l.b16 %v1012
      %v1057 = vunpack.c.h.b16 %v1012
      %v1058 = vpack.c.b16 %v1056, %v1054
      %v1059 = vpack.c.b16 %v1057, %v1055
      %v1062 = vsel %vm654, %v1059, 0
      %1064 = vmatprep.subr.bf16.mxu0 %v1014
      %1065 = vmatpush1.bf16.msra.mxu0 %v1013
      %1066 = vmatprep.subr.bf16.mxu0 %v1017
      %1067 = vmatpush1.bf16.msra.mxu0 %v1016
      %1068 = vmatprep.subr.bf16.mxu0 %v1020
      %1069 = vmatpush1.bf16.msra.mxu0 %v1019
      %1070 = vmatprep.subr.bf16.mxu0 %v1023
      %1071 = vmatpush1.bf16.msra.mxu0 %v1022
      %1072 = vmatprep.subr.bf16.mxu0 %v1026
      %1073 = vmatpush1.bf16.msra.mxu0 %v1025
      %1074 = vmatprep.subr.bf16.mxu0 %v1029
      %1075 = vmatpush1.bf16.msra.mxu0 %v1028
      %1076 = vmatprep.subr.bf16.mxu0 %v1032
      %1077 = vmatpush1.bf16.msra.mxu0 %v1031
      %1078 = vmatprep.subr.bf16.mxu0 %v1035
      %1079 = vmatpush1.bf16.msra.mxu0 %v1034
      %1080 = vmatprep.subr.bf16.mxu0 %v1038
      %1081 = vmatpush1.bf16.msra.mxu0 %v1037
      %1082 = vmatprep.subr.bf16.mxu0 0
      %1083 = vmatpush1.bf16.msra.mxu0 0
      %1084 = vmatprep.subr.bf16.mxu0 0
      %1085 = vmatpush1.bf16.msra.mxu0 0
      %1086 = vmatprep.subr.bf16.mxu0 0
      %1087 = vmatpush1.bf16.msra.mxu0 0
      %1088 = vmatprep.subr.bf16.mxu0 0
      %1089 = vmatpush1.bf16.msra.mxu0 0
      %1090 = vmatprep.subr.bf16.mxu0 0
      %1091 = vmatpush1.bf16.msra.mxu0 0
      %1092 = vmatprep.subr.bf16.mxu0 0
      %1093 = vmatpush1.bf16.msra.mxu0 0
      %1094 = vmatprep.subr.bf16.mxu0 0
      %1095 = vmatpush1.bf16.msra.mxu0 0
      %1096 = vmatprep.mubr.bf16.mxu0 %v1062
      %1097 = vmatmul.mubr.bf16.gmra.mrb[0].mxu0 %v1058
      %v1098 = vpop.f32.mrb[0].mxu0
      %v1099 = vadd.f32 %v1045, %v1098
      %v1100 = vpop.f32.mrb[0].mxu0
      %v1101 = vadd.f32 %v1045, %v1100
      %v1102 = vpop.f32.mrb[0].mxu0
      %v1103 = vadd.f32 %v1050, %v1102
      %v1104 = vpop.f32.mrb[0].mxu0
      %v1105 = vadd.f32 %v1050, %v1104
      %1106 = vdwg.mxu0
      %1107 = vmatprep.subr.bf16.mxu0 0
      %1108 = vmatpush1.bf16.msra.mxu0 %v1015
      %1109 = vmatprep.subr.bf16.mxu0 0
      %1110 = vmatpush1.bf16.msra.mxu0 %v1018
      %1111 = vmatprep.subr.bf16.mxu0 0
      %1112 = vmatpush1.bf16.msra.mxu0 %v1021
      %1113 = vmatprep.subr.bf16.mxu0 0
      %1114 = vmatpush1.bf16.msra.mxu0 %v1024
      %1115 = vmatprep.subr.bf16.mxu0 0
      %1116 = vmatpush1.bf16.msra.mxu0 %v1027
      %1117 = vmatprep.subr.bf16.mxu0 0
      %1118 = vmatpush1.bf16.msra.mxu0 %v1030
      %1119 = vmatprep.subr.bf16.mxu0 0
      %1120 = vmatpush1.bf16.msra.mxu0 %v1033
      %1121 = vmatprep.subr.bf16.mxu0 0
      %1122 = vmatpush1.bf16.msra.mxu0 %v1036
      %1123 = vmatprep.subr.bf16.mxu0 0
      %1124 = vmatpush1.bf16.msra.mxu0 %v1039
      %1125 = vmatprep.subr.bf16.mxu0 0
      %1126 = vmatpush1.bf16.msra.mxu0 0
      %1127 = vmatprep.subr.bf16.mxu0 0
      %1128 = vmatpush1.bf16.msra.mxu0 0
      %1129 = vmatprep.subr.bf16.mxu0 0
      %1130 = vmatpush1.bf16.msra.mxu0 0
      %1131 = vmatprep.subr.bf16.mxu0 0
      %1132 = vmatpush1.bf16.msra.mxu0 0
      %1133 = vmatprep.subr.bf16.mxu0 0
      %1134 = vmatpush1.bf16.msra.mxu0 0
      %1135 = vmatprep.subr.bf16.mxu0 0
      %1136 = vmatpush1.bf16.msra.mxu0 0
      %1137 = vmatprep.subr.bf16.mxu0 0
      %1138 = vmatpush1.bf16.msra.mxu0 0
      %1139 = vmatprep.mubr.bf16.mxu0 %v1062
      %1140 = vmatmul.mubr.bf16.gmra.mrb[0].mxu0 %v1058
      %v1141 = vpop.f32.mrb[0].mxu0
      %v1142 = vadd.f32 %v1045, %v1141
      %v1143 = vpop.f32.mrb[0].mxu0
      %v1144 = vpop.f32.mrb[0].mxu0
      %v1145 = vadd.f32 %v1050, %v1144
      %v1146 = vpop.f32.mrb[0].mxu0
      %1147 = vdwg.mxu0
      %v1148 = vld [vmem:[#allocation4] sm:$0xff]
      %v1149 = vld [vmem:[#allocation4 + $0x8] sm:$0xff]
      %v1150 = vld [vmem:[#allocation4 + $0x10] sm:$0xff]
      %v1151 = vld [vmem:[#allocation4 + $0x18] sm:$0xff]
      %v1152 = vld [vmem:[#allocation4 + $0x20] sm:$0xff]
      %v1153 = vld [vmem:[#allocation4 + $0x28] sm:$0xff]
      %v1154 = vadd.f32 %v1099, %v1148
      %v1155 = vadd.f32 %v1101, %v1149
      %v1156 = vadd.f32 %v1142, %v1150
      %v1157 = vadd.f32 %v1103, %v1151
      %v1158 = vadd.f32 %v1105, %v1152
      %v1159 = vadd.f32 %v1145, %v1153
      %v1160 = vmax.f32 %v1154, 0.0
      %v1161 = vmax.f32 %v1155, 0.0
      %v1162 = vmax.f32 %v1156, 0.0
      %v1163 = vmax.f32 %v1157, 0.0
      %v1164 = vmax.f32 %v1158, 0.0
      %v1165 = vmax.f32 %v1159, 0.0
      %v1166 = vmul.f32 %v1160, %v779
      %v1167 = vmul.f32 %v1161, %v783
      %v1168 = vmul.f32 %v1162, %v787
      %v1169 = vmul.f32 %v1163, %v779
      %v1170 = vmul.f32 %v1164, %v783
      %v1171 = vmul.f32 %v1165, %v787
      %1172 = vst [vmem:[%s251] sm:$0xf] 0
      %1173 = vst [vmem:[%s251 + $0x14] sm:$0xf] 0
      %1174 = vst [vmem:[%s251 + $0x10] sm:$0xf] 0
      %1175 = vst [vmem:[%s251 + $0x24] sm:$0xf] 0
      %v1176 = vpack.c.bf16 %v1169, %v1166
      %v1177 = vpack.c.bf16 %v1170, %v1167
      %v1178 = vpack.c.bf16 %v1171, %v1168
      %v1182 = vunpack.c.l.b16 %v1176
      %v1183 = vunpack.c.l.b16 %v1177
      %v1184 = vunpack.c.l.b16 %v1178
      %v1185 = vunpack.c.h.b16 %v1176
      %v1186 = vunpack.c.h.b16 %v1177
      %v1187 = vunpack.c.h.b16 %v1178
      %v1188 = vpack.c.b16 %v1183, %v1182
      %v1189 = vpack.c.b16 %v1184, %v1184
      %v1190 = vpack.c.b16 %v1186, %v1185
      %v1191 = vpack.c.b16 %v1187, %v1187
      %1196 = vst [vmem:[%s251 + $0x4] sm:$0xff] %v1188
      %1197 = vst [vmem:[%s251 + $0xc] sm:$0xf] %v1189
      %1198 = vst [vmem:[%s251 + $0x18] sm:$0xff] %v1190
      %1199 = vst [vmem:[%s251 + $0x20] sm:$0xf] %v1191
      %p1200 = scmp.lt.s32.totalorder %s17, 1
      %s1201 = scalar_select %p1200, %s17, 1
      %s1202 = smul.addr %s1201, 10
      %s1203 = smul.addr %s1202, 4
      %s1204 = scalar_lea.vmem %s6, %s1203
      // Predicated region
      $region45: #{resnet18_blocks_up_forward.2} parent=43 // pred_check
        %p1205 = pneg %p166
      $region46: #{resnet18_blocks_up_forward.2} parent=43 // pred_check_branch
        %1207 = sbr.rel (%p1205) target = $region48
      $region47: #{resnet18_blocks_up_forward.2} parent=43 // pred_region
        _
      $region48: #{resnet18_blocks_up_forward.2} parent=43 // pred_fallthru
        _
    $region44: #{resnet18_blocks_up_forward.2} parent=5 // pred_fallthru
      _
    %p1208 = scmp.le.s32.totalorder 2, %s12
    // Predicated region
    $region49: #{resnet18_blocks_up_forward.2} parent=5 // pred_check
      %p1209 = pneg %p1208
    $region50: #{resnet18_blocks_up_forward.2} parent=5 // pred_check_branch
      %1211 = sbr.rel (%p1209) target = $region52
    $region51: #{resnet18_blocks_up_forward.2} parent=5 // pred_region
      %s1212 = ssub.s32 %s12, 2
      // Predicated region
      $region53: #{resnet18_blocks_up_forward.2} parent=51 // pred_check
        %p1213 = pneg %p172
      $region54: #{resnet18_blocks_up_forward.2} parent=51 // pred_check_branch
        %1215 = sbr.rel (%p1213) target = $region56
      $region55: #{resnet18_blocks_up_forward.2} parent=51 // pred_region
        %p1216 = scmp.lt.s32.totalorder %s18, 1
        %s1217 = scalar_select %p1216, %s18, 1
        %s1218 = smul.addr %s1217, 10
        %s1219 = smul.addr %s1218, 4
        %s1220 = scalar_lea.vmem %s6, %s1219
      $region56: #{resnet18_blocks_up_forward.2} parent=51 // pred_fallthru
        _
    $region52: #{resnet18_blocks_up_forward.2} parent=5 // pred_fallthru
      _
  $region6: #{resnet18_blocks_up_forward.2} parent=0 // loop_footer
    %s16 = sadd.s32 1, %s12
  $region7: #{resnet18_blocks_up_forward.2} parent=0 // loop_footer_branch
    %11 = sbr.rel target = $region3
  $region8: #{resnet18_blocks_up_forward.2} parent=0 // loop_exit
    _

// kernel: resnet18_blocks_up_forward.3
$region0: #{resnet18_blocks_up_forward.3}
  #allocation0 [shape = 'u32[]', space=smem, size = 0x4, offset = 0x4, fixed_abs, tag = 'smem constant byte address 0x4 - core index']
  #allocation1 [shape = 'u32[144,128]{1,0:T(1,128)}', space=vmem, size = 0x12000, scoped, tag = 'internal scratch']
  #allocation2 [shape = 'bf16[288,384]{1,0:T(16,128)(2,1)}', space=vmem, size = 0x36000, scoped, tag = 'scratch operand']
  #allocation3 [shape = 'bf16[16,640]{1,0:T(16,128)(2,1)}', space=vmem, size = 0x5000, scoped, tag = 'scratch operand']
  #allocation4 [shape = 'f32[16,384]{1,0:T(8,128)}', space=vmem, size = 0x6000, scoped, tag = 'scratch operand']
  %s0 = inlined_call_operand.vmem [shape: bf16[2,16,640], index: 0, kind: input, shape index: {}]
  %s1 = inlined_call_operand.vmem [shape: bf16[2,16,640], index: 1, kind: input, shape index: {}]
  %s2 = inlined_call_operand.vmem [shape: bf16[32,288], index: 2, kind: input, shape index: {}]
  %s3 = inlined_call_operand.vmem [shape: f32[32,1], index: 3, kind: input, shape index: {}]
  %s4 = inlined_call_operand.vmem [shape: bf16[16,144], index: 4, kind: input, shape index: {}]
  %s5 = inlined_call_operand.vmem [shape: f32[16,1], index: 5, kind: input, shape index: {}]
  %s6 = inlined_call_operand.vmem [shape: f32[1,384], index: 6, kind: input, shape index: {}]
  %s7 = inlined_call_operand.vmem [shape: f32[2,16,640], index: 7, kind: output, shape index: {}]
  %s8 = sld [smem:[#allocation0]]
  $region61: #{resnet18_blocks_up_forward.3} parent=0
    _
  %s10 = ssub.s32 1, %s8
  %s11 = scalar_select 0, %s10, %s8
  loop: start=0, step=1, limit=4
  $region2: #{resnet18_blocks_up_forward.3} parent=0 // loop_pre_header
    _
  $region3: #{resnet18_blocks_up_forward.3} parent=0 // loop_header
    %s13 = sphi 0, %s17
    %p14 = scmp.ge.s32.totalorder %s13, 4
    %s23 = sphi 0, %s25
    %s26 = sphi 0, %s23
    %s27 = sphi 0, %s26
    %s43 = sphi 0, %s27
    %s49 = sphi 0, %s51
    %s52 = sphi 0, %s49
    %s53 = sphi 0, %s52
    %s69 = sphi 0, %s53
    %s73 = sphi 0, %s73
    %s75 = sphi 0, %s73
    %s76 = sphi 0, %s75
    %s90 = sphi 0, %s76
    %s94 = sphi 0, %s94
    %s96 = sphi 0, %s94
    %s97 = sphi 0, %s96
    %s111 = sphi 0, %s97
    %s115 = sphi 0, %s115
    %s117 = sphi 0, %s115
    %s118 = sphi 0, %s117
    %s132 = sphi 0, %s118
    %s136 = sphi 0, %s136
    %s138 = sphi 0, %s136
    %s139 = sphi 0, %s138
    %s153 = sphi 0, %s139
    %s157 = sphi 0, %s157
    %s159 = sphi 0, %s157
    %s160 = sphi 0, %s159
    %s174 = sphi 0, %s160
    %s180 = sphi 0, %s182
    %s183 = sphi 0, %s180
    %s184 = sphi 0, %s183
    %s200 = sphi 0, %s184
  $region4: #{resnet18_blocks_up_forward.3} parent=0 // loop_header_branch
    %16 = sbr.rel (%p14) target = $region8
  $region5: #{resnet18_blocks_up_forward.3} parent=0 // loop_body
    %s18 = ssub.s32 %s13, 1
    %s19 = ssub.s32 %s13, 2
    %s20 = sadd.s32 %s13, 1
    %s21 = ssub.s32 %s13, %s20
    %p22 = scmp.eq.s32.totalorder %s21, 0
    %s24 = sadd.s32 %s23, 1
    %s25 = scalar_select %p22, %s23, %s24
    %p28 = pneg %p22
    %p29 = scmp.eq.s32.totalorder %s13, 1
    %p30 = por %p28, %p29
    %p31 = scmp.ne.s32.totalorder %s23, %s26
    %p32 = scmp.eq.s32.totalorder %s13, 0
    %p33 = por %p31, %p32
    %p34 = scmp.ne.s32.totalorder %s23, %s26
    %p35 = scmp.eq.s32.totalorder %s18, 1
    %p36 = por %p34, %p35
    %p37 = scmp.ne.s32.totalorder %s26, %s27
    %p38 = scmp.eq.s32.totalorder %s18, 0
    %p39 = por %p37, %p38
    %p40 = scmp.ne.s32.totalorder %s26, %s27
    %p41 = scmp.eq.s32.totalorder %s19, 1
    %p42 = por %p40, %p41
    %p44 = scmp.ne.s32.totalorder %s27, %s43
    %p45 = scmp.eq.s32.totalorder %s19, 0
    %p46 = por %p44, %p45
    %s47 = ssub.s32 %s13, %s20
    %p48 = scmp.eq.s32.totalorder %s47, 0
    %s50 = sadd.s32 %s49, 1
    %s51 = scalar_select %p48, %s49, %s50
    %p54 = pneg %p48
    %p55 = scmp.eq.s32.totalorder %s13, 1
    %p56 = por %p54, %p55
    %p57 = scmp.ne.s32.totalorder %s49, %s52
    %p58 = scmp.eq.s32.totalorder %s13, 0
    %p59 = por %p57, %p58
    %p60 = scmp.ne.s32.totalorder %s49, %s52
    %p61 = scmp.eq.s32.totalorder %s18, 1
    %p62 = por %p60, %p61
    %p63 = scmp.ne.s32.totalorder %s52, %s53
    %p64 = scmp.eq.s32.totalorder %s18, 0
    %p65 = por %p63, %p64
    %p66 = scmp.ne.s32.totalorder %s52, %s53
    %p67 = scmp.eq.s32.totalorder %s19, 1
    %p68 = por %p66, %p67
    %p70 = scmp.ne.s32.totalorder %s53, %s69
    %p71 = scmp.eq.s32.totalorder %s19, 0
    %p72 = por %p70, %p71
    %s74 = sadd.s32 %s73, 1
    %p77 = scmp.eq.s32.totalorder %s13, 1
    %p78 = scmp.ne.s32.totalorder %s73, %s75
    %p79 = scmp.eq.s32.totalorder %s13, 0
    %p80 = por %p78, %p79
    %p81 = scmp.ne.s32.totalorder %s73, %s75
    %p82 = scmp.eq.s32.totalorder %s18, 1
    %p83 = por %p81, %p82
    %p84 = scmp.ne.s32.totalorder %s75, %s76
    %p85 = scmp.eq.s32.totalorder %s18, 0
    %p86 = por %p84, %p85
    %p87 = scmp.ne.s32.totalorder %s75, %s76
    %p88 = scmp.eq.s32.totalorder %s19, 1
    %p89 = por %p87, %p88
    %p91 = scmp.ne.s32.totalorder %s76, %s90
    %p92 = scmp.eq.s32.totalorder %s19, 0
    %p93 = por %p91, %p92
    %s95 = sadd.s32 %s94, 1
    %p98 = scmp.eq.s32.totalorder %s13, 1
    %p99 = scmp.ne.s32.totalorder %s94, %s96
    %p100 = scmp.eq.s32.totalorder %s13, 0
    %p101 = por %p99, %p100
    %p102 = scmp.ne.s32.totalorder %s94, %s96
    %p103 = scmp.eq.s32.totalorder %s18, 1
    %p104 = por %p102, %p103
    %p105 = scmp.ne.s32.totalorder %s96, %s97
    %p106 = scmp.eq.s32.totalorder %s18, 0
    %p107 = por %p105, %p106
    %p108 = scmp.ne.s32.totalorder %s96, %s97
    %p109 = scmp.eq.s32.totalorder %s19, 1
    %p110 = por %p108, %p109
    %p112 = scmp.ne.s32.totalorder %s97, %s111
    %p113 = scmp.eq.s32.totalorder %s19, 0
    %p114 = por %p112, %p113
    %s116 = sadd.s32 %s115, 1
    %p119 = scmp.eq.s32.totalorder %s13, 1
    %p120 = scmp.ne.s32.totalorder %s115, %s117
    %p121 = scmp.eq.s32.totalorder %s13, 0
    %p122 = por %p120, %p121
    %p123 = scmp.ne.s32.totalorder %s115, %s117
    %p124 = scmp.eq.s32.totalorder %s18, 1
    %p125 = por %p123, %p124
    %p126 = scmp.ne.s32.totalorder %s117, %s118
    %p127 = scmp.eq.s32.totalorder %s18, 0
    %p128 = por %p126, %p127
    %p129 = scmp.ne.s32.totalorder %s117, %s118
    %p130 = scmp.eq.s32.totalorder %s19, 1
    %p131 = por %p129, %p130
    %p133 = scmp.ne.s32.totalorder %s118, %s132
    %p134 = scmp.eq.s32.totalorder %s19, 0
    %p135 = por %p133, %p134
    %s137 = sadd.s32 %s136, 1
    %p140 = scmp.eq.s32.totalorder %s13, 1
    %p141 = scmp.ne.s32.totalorder %s136, %s138
    %p142 = scmp.eq.s32.totalorder %s13, 0
    %p143 = por %p141, %p142
    %p144 = scmp.ne.s32.totalorder %s136, %s138
    %p145 = scmp.eq.s32.totalorder %s18, 1
    %p146 = por %p144, %p145
    %p147 = scmp.ne.s32.totalorder %s138, %s139
    %p148 = scmp.eq.s32.totalorder %s18, 0
    %p149 = por %p147, %p148
    %p150 = scmp.ne.s32.totalorder %s138, %s139
    %p151 = scmp.eq.s32.totalorder %s19, 1
    %p152 = por %p150, %p151
    %p154 = scmp.ne.s32.totalorder %s139, %s153
    %p155 = scmp.eq.s32.totalorder %s19, 0
    %p156 = por %p154, %p155
    %s158 = sadd.s32 %s157, 1
    %p161 = scmp.eq.s32.totalorder %s13, 1
    %p162 = scmp.ne.s32.totalorder %s157, %s159
    %p163 = scmp.eq.s32.totalorder %s13, 0
    %p164 = por %p162, %p163
    %p165 = scmp.ne.s32.totalorder %s157, %s159
    %p166 = scmp.eq.s32.totalorder %s18, 1
    %p167 = por %p165, %p166
    %p168 = scmp.ne.s32.totalorder %s159, %s160
    %p169 = scmp.eq.s32.totalorder %s18, 0
    %p170 = por %p168, %p169
    %p171 = scmp.ne.s32.totalorder %s159, %s160
    %p172 = scmp.eq.s32.totalorder %s19, 1
    %p173 = por %p171, %p172
    %p175 = scmp.ne.s32.totalorder %s160, %s174
    %p176 = scmp.eq.s32.totalorder %s19, 0
    %p177 = por %p175, %p176
    %s178 = ssub.s32 %s13, %s20
    %p179 = scmp.eq.s32.totalorder %s178, 0
    %s181 = sadd.s32 %s180, 1
    %s182 = scalar_select %p179, %s180, %s181
    %p185 = pneg %p179
    %p186 = scmp.eq.s32.totalorder %s13, 1
    %p187 = por %p185, %p186
    %p188 = scmp.ne.s32.totalorder %s180, %s183
    %p189 = scmp.eq.s32.totalorder %s13, 0
    %p190 = por %p188, %p189
    %p191 = scmp.ne.s32.totalorder %s180, %s183
    %p192 = scmp.eq.s32.totalorder %s18, 1
    %p193 = por %p191, %p192
    %p194 = scmp.ne.s32.totalorder %s183, %s184
    %p195 = scmp.eq.s32.totalorder %s18, 0
    %p196 = por %p194, %p195
    %p197 = scmp.ne.s32.totalorder %s183, %s184
    %p198 = scmp.eq.s32.totalorder %s19, 1
    %p199 = por %p197, %p198
    %p201 = scmp.ne.s32.totalorder %s184, %s200
    %p202 = scmp.eq.s32.totalorder %s19, 0
    %p203 = por %p201, %p202
    %p204 = scmp.le.s32.totalorder 1, %s13
    %p205 = scmp.lt.s32.totalorder %s13, 3
    %p206 = pnand %p204, %p205
    %p207 = pneg %p206
    // Predicated region
    $region9: #{resnet18_blocks_up_forward.3} parent=5 // pred_check
      _
    $region10: #{resnet18_blocks_up_forward.3} parent=5 // pred_check_branch
      %209 = sbr.rel (%p206) target = $region12
    $region11: #{resnet18_blocks_up_forward.3} parent=5 // pred_region
      %s210 = ssub.s32 %s13, 1
      // Predicated region
      $region13: #{resnet18_blocks_up_forward.3} parent=11 // pred_check
        %p211 = pneg %p86
      $region14: #{resnet18_blocks_up_forward.3} parent=11 // pred_check_branch
        %213 = sbr.rel (%p211) target = $region16
      $region15: #{resnet18_blocks_up_forward.3} parent=11 // pred_region
        _
      $region16: #{resnet18_blocks_up_forward.3} parent=11 // pred_fallthru
        _
      // Predicated region
      $region17: #{resnet18_blocks_up_forward.3} parent=11 // pred_check
        %p214 = pneg %p107
      $region18: #{resnet18_blocks_up_forward.3} parent=11 // pred_check_branch
        %216 = sbr.rel (%p214) target = $region20
      $region19: #{resnet18_blocks_up_forward.3} parent=11 // pred_region
        _
      $region20: #{resnet18_blocks_up_forward.3} parent=11 // pred_fallthru
        _
      // Predicated region
      $region21: #{resnet18_blocks_up_forward.3} parent=11 // pred_check
        %p217 = pneg %p128
      $region22: #{resnet18_blocks_up_forward.3} parent=11 // pred_check_branch
        %219 = sbr.rel (%p217) target = $region24
      $region23: #{resnet18_blocks_up_forward.3} parent=11 // pred_region
        _
      $region24: #{resnet18_blocks_up_forward.3} parent=11 // pred_fallthru
        _
      // Predicated region
      $region25: #{resnet18_blocks_up_forward.3} parent=11 // pred_check
        %p220 = pneg %p149
      $region26: #{resnet18_blocks_up_forward.3} parent=11 // pred_check_branch
        %222 = sbr.rel (%p220) target = $region28
      $region27: #{resnet18_blocks_up_forward.3} parent=11 // pred_region
        _
      $region28: #{resnet18_blocks_up_forward.3} parent=11 // pred_fallthru
        _
      // Predicated region
      $region29: #{resnet18_blocks_up_forward.3} parent=11 // pred_check
        %p223 = pneg %p170
      $region30: #{resnet18_blocks_up_forward.3} parent=11 // pred_check_branch
        %225 = sbr.rel (%p223) target = $region32
      $region31: #{resnet18_blocks_up_forward.3} parent=11 // pred_region
        _
      $region32: #{resnet18_blocks_up_forward.3} parent=11 // pred_fallthru
        _
    $region12: #{resnet18_blocks_up_forward.3} parent=5 // pred_fallthru
      _
    %p226 = scmp.lt.s32.totalorder %s13, 2
    // Predicated region
    $region33: #{resnet18_blocks_up_forward.3} parent=5 // pred_check
      %p227 = pneg %p226
    $region34: #{resnet18_blocks_up_forward.3} parent=5 // pred_check_branch
      %229 = sbr.rel (%p227) target = $region36
    $region35: #{resnet18_blocks_up_forward.3} parent=5 // pred_region
      // Predicated region
      $region37: #{resnet18_blocks_up_forward.3} parent=35 // pred_check
        %p230 = pneg %p33
      $region38: #{resnet18_blocks_up_forward.3} parent=35 // pred_check_branch
        %232 = sbr.rel (%p230) target = $region40
      $region39: #{resnet18_blocks_up_forward.3} parent=35 // pred_region
        %p233 = scmp.lt.s32.totalorder %s13, 1
        %s234 = scalar_select %p233, %s13, 1
        %s235 = smul.addr %s234, 10
        %s236 = smul.addr %s235, 4
        %s237 = scalar_lea.vmem %s0, %s236
      $region40: #{resnet18_blocks_up_forward.3} parent=35 // pred_fallthru
        _
      // Predicated region
      $region41: #{resnet18_blocks_up_forward.3} parent=35 // pred_check
        %p238 = pneg %p59
      $region42: #{resnet18_blocks_up_forward.3} parent=35 // pred_check_branch
        %240 = sbr.rel (%p238) target = $region44
      $region43: #{resnet18_blocks_up_forward.3} parent=35 // pred_region
        %p241 = scmp.lt.s32.totalorder %s13, 1
        %s242 = scalar_select %p241, %s13, 1
        %s243 = smul.addr %s242, 10
        %s244 = smul.addr %s243, 4
        %s245 = scalar_lea.vmem %s1, %s244
      $region44: #{resnet18_blocks_up_forward.3} parent=35 // pred_fallthru
        _
    $region36: #{resnet18_blocks_up_forward.3} parent=5 // pred_fallthru
      _
    %p246 = scmp.le.s32.totalorder 1, %s13
    %p247 = scmp.lt.s32.totalorder %s13, 3
    %p248 = pnand %p246, %p247
    %p249 = pneg %p248
    // Predicated region
    $region45: #{resnet18_blocks_up_forward.3} parent=5 // pred_check
      _
    $region46: #{resnet18_blocks_up_forward.3} parent=5 // pred_check_branch
      %251 = sbr.rel (%p248) target = $region48
    $region47: #{resnet18_blocks_up_forward.3} parent=5 // pred_region
      %s252 = ssub.s32 %s13, 1
      %p253 = scmp.lt.s32.totalorder %s18, 1
      %s254 = scalar_select %p253, %s18, 1
      %s255 = smul.addr %s254, 10
      %s256 = smul.addr %s255, 4
      %s257 = scalar_lea.vmem %s0, %s256
      %p258 = pneg %p39
      %p259 = pneg %p36
      %p260 = scmp.lt.s32.totalorder %s18, 1
      %s261 = scalar_select %p260, %s18, 1
      %s262 = smul.addr %s261, 10
      %s263 = smul.addr %s262, 4
      %s264 = scalar_lea.vmem %s1, %s263
      %p265 = pneg %p65
      %p266 = pneg %p62
      %p267 = pneg %p86
      %p268 = pneg %p83
      %p269 = pneg %p107
      %p270 = pneg %p104
      %p271 = pneg %p128
      %p272 = pneg %p125
      %p273 = pneg %p149
      %p274 = pneg %p146
      %p275 = pneg %p170
      %p276 = pneg %p167
      %p277 = pneg %p196
      %p278 = pneg %p193
      %p279 = scmp.lt.s32.totalorder %s18, 1
      %s280 = scalar_select %p279, %s18, 1
      %s281 = smul.addr %s280, 10
      %s282 = smul.addr %s281, 8
      %s283 = scalar_lea.vmem %s7, %s282
      %p284 = scmp.lt.s32.totalorder %s18, 1
      %s285 = scalar_select %p284, %s18, 1
      %s286 = smul.addr %s285, 10
      %s287 = smul.addr %s286, 4
      %s288 = scalar_lea.vmem %s0, %s287
      %p289 = scmp.lt.s32.totalorder %s18, 1
      %s290 = scalar_select %p289, %s18, 1
      %s291 = smul.addr %s290, 10
      %s292 = smul.addr %s291, 4
      %s293 = scalar_lea.vmem %s1, %s292
      %p294 = scmp.lt.s32.totalorder %s18, 1
      %s295 = scalar_select %p294, %s18, 1
      %s296 = smul.addr %s295, 10
      %s297 = smul.addr %s296, 8
      %s298 = scalar_lea.vmem %s7, %s297
      %v300 = vld [vmem:[%s6] sm:$0x7]
      %v301 = vld [vmem:[%s288] sm:$0xff]
      %v302 = vld [vmem:[%s288 + $0x8] sm:$0xff]
      %v303 = vld [vmem:[%s288 + $0x14] sm:$0xff]
      %v304 = vld [vmem:[%s288 + $0x1c] sm:$0xff]
      %v309 = vunpack.c.l.b16 %v301
      %v310 = vunpack.c.h.b16 %v301
      %v311 = vunpack.c.l.b16 %v302
      %v312 = vunpack.c.h.b16 %v302
      %v313 = vunpack.c.l.b16 %v303
      %v314 = vunpack.c.h.b16 %v303
      %v315 = vunpack.c.l.b16 %v304
      %v316 = vunpack.c.h.b16 %v304
      %v317 = vpack.c.b16 %v313, %v309
      %v318 = vpack.c.b16 %v314, %v310
      %v319 = vpack.c.b16 %v315, %v311
      %v320 = vpack.c.b16 %v316, %v312
      %321 = vrot.lane.b32.xlu0 %v317, 19
      %v322 = vpop.permute.xlu0 %321
      %323 = vrot.lane.b32.xlu0 %v318, 19
      %v324 = vpop.permute.xlu0 %323
      %325 = vrot.lane.b32.xlu0 %v319, 19
      %v326 = vpop.permute.xlu0 %325
      %327 = vrot.lane.b32.xlu0 %v320, 19
      %v328 = vpop.permute.xlu0 %327
      %vm329 = vcmask 154624
      %v330 = vsel %vm329, %v322, %v324
      %v331 = vsel %vm329, %v324, %v326
      %v332 = vsel %vm329, %v326, %v328
      %336 = vst [vmem:[#allocation2] sm:$0xff] %v330
      %337 = vst [vmem:[#allocation2 + $0x8] sm:$0xff] %v331
      %338 = vst [vmem:[#allocation2 + $0x10] sm:$0xff] %v332
      %v339 = vld [vmem:[%s293] sm:$0xff]
      %v340 = vld [vmem:[%s293 + $0x8] sm:$0xff]
      %v341 = vld [vmem:[%s293 + $0x14] sm:$0xff]
      %v342 = vld [vmem:[%s293 + $0x1c] sm:$0xff]
      %v347 = vunpack.c.l.b16 %v339
      %v348 = vunpack.c.h.b16 %v339
      %v349 = vunpack.c.l.b16 %v340
      %v350 = vunpack.c.h.b16 %v340
      %v351 = vunpack.c.l.b16 %v341
      %v352 = vunpack.c.h.b16 %v341
      %v353 = vunpack.c.l.b16 %v342
      %v354 = vunpack.c.h.b16 %v342
      %v355 = vpack.c.b16 %v351, %v347
      %v356 = vpack.c.b16 %v352, %v348
      %v357 = vpack.c.b16 %v353, %v349
      %v358 = vpack.c.b16 %v354, %v350
      %359 = vrot.lane.b32.xlu0 %v355, 19
      %v360 = vpop.permute.xlu0 %359
      %361 = vrot.lane.b32.xlu0 %v356, 19
      %v362 = vpop.permute.xlu0 %361
      %363 = vrot.lane.b32.xlu0 %v357, 19
      %v364 = vpop.permute.xlu0 %363
      %365 = vrot.lane.b32.xlu0 %v358, 19
      %v366 = vpop.permute.xlu0 %365
      %v367 = vsel %vm329, %v360, %v362
      %v368 = vsel %vm329, %v362, %v364
      %v369 = vsel %vm329, %v364, %v366
      %373 = vst [vmem:[#allocation2 + $0x18] sm:$0xff] %v367
      %374 = vst [vmem:[#allocation2 + $0x20] sm:$0xff] %v368
      %375 = vst [vmem:[#allocation2 + $0x28] sm:$0xff] %v369
      %v376 = vld [vmem:[%s288] sm:$0xff]
      %v377 = vld [vmem:[%s288 + $0x8] sm:$0xff]
      %v378 = vld [vmem:[%s288 + $0x14] sm:$0xff]
      %v379 = vld [vmem:[%s288 + $0x1c] sm:$0xff]
      %v384 = vunpack.c.l.b16 %v376
      %v385 = vunpack.c.h.b16 %v376
      %v386 = vunpack.c.l.b16 %v377
      %v387 = vunpack.c.h.b16 %v377
      %v388 = vunpack.c.l.b16 %v378
      %v389 = vunpack.c.h.b16 %v378
      %v390 = vunpack.c.l.b16 %v379
      %v391 = vunpack.c.h.b16 %v379
      %v392 = vpack.c.b16 %v388, %v384
      %v393 = vpack.c.b16 %v389, %v385
      %v394 = vpack.c.b16 %v390, %v386
      %v395 = vpack.c.b16 %v391, %v387
      %396 = vrot.lane.b32.xlu0 %v392, 18
      %v397 = vpop.permute.xlu0 %396
      %398 = vrot.lane.b32.xlu0 %v393, 18
      %v399 = vpop.permute.xlu0 %398
      %400 = vrot.lane.b32.xlu0 %v394, 18
      %v401 = vpop.permute.xlu0 %400
      %402 = vrot.lane.b32.xlu0 %v395, 18
      %v403 = vpop.permute.xlu0 %402
      %vm404 = vcmask 146432
      %v405 = vsel %vm404, %v397, %v399
      %v406 = vsel %vm404, %v399, %v401
      %v407 = vsel %vm404, %v401, %v403
      %411 = vst [vmem:[#allocation2 + $0x30] sm:$0xff] %v405
      %412 = vst [vmem:[#allocation2 + $0x38] sm:$0xff] %v406
      %413 = vst [vmem:[#allocation2 + $0x40] sm:$0xff] %v407
      %v414 = vld [vmem:[%s293] sm:$0xff]
      %v415 = vld [vmem:[%s293 + $0x8] sm:$0xff]
      %v416 = vld [vmem:[%s293 + $0x14] sm:$0xff]
      %v417 = vld [vmem:[%s293 + $0x1c] sm:$0xff]
      %v422 = vunpack.c.l.b16 %v414
      %v423 = vunpack.c.h.b16 %v414
      %v424 = vunpack.c.l.b16 %v415
      %v425 = vunpack.c.h.b16 %v415
      %v426 = vunpack.c.l.b16 %v416
      %v427 = vunpack.c.h.b16 %v416
      %v428 = vunpack.c.l.b16 %v417
      %v429 = vunpack.c.h.b16 %v417
      %v430 = vpack.c.b16 %v426, %v422
      %v431 = vpack.c.b16 %v427, %v423
      %v432 = vpack.c.b16 %v428, %v424
      %v433 = vpack.c.b16 %v429, %v425
      %434 = vrot.lane.b32.xlu0 %v430, 18
      %v435 = vpop.permute.xlu0 %434
      %436 = vrot.lane.b32.xlu0 %v431, 18
      %v437 = vpop.permute.xlu0 %436
      %438 = vrot.lane.b32.xlu0 %v432, 18
      %v439 = vpop.permute.xlu0 %438
      %440 = vrot.lane.b32.xlu0 %v433, 18
      %v441 = vpop.permute.xlu0 %440
      %v442 = vsel %vm404, %v435, %v437
      %v443 = vsel %vm404, %v437, %v439
      %v444 = vsel %vm404, %v439, %v441
      %448 = vst [vmem:[#allocation2 + $0x48] sm:$0xff] %v442
      %449 = vst [vmem:[#allocation2 + $0x50] sm:$0xff] %v443
      %450 = vst [vmem:[#allocation2 + $0x58] sm:$0xff] %v444
      %v451 = vld [vmem:[%s288] sm:$0xff]
      %v452 = vld [vmem:[%s288 + $0x8] sm:$0xff]
      %v453 = vld [vmem:[%s288 + $0x14] sm:$0xff]
      %v454 = vld [vmem:[%s288 + $0x1c] sm:$0xff]
      %v459 = vunpack.c.l.b16 %v451
      %v460 = vunpack.c.h.b16 %v451
      %v461 = vunpack.c.l.b16 %v452
      %v462 = vunpack.c.h.b16 %v452
      %v463 = vunpack.c.l.b16 %v453
      %v464 = vunpack.c.h.b16 %v453
      %v465 = vunpack.c.l.b16 %v454
      %v466 = vunpack.c.h.b16 %v454
      %v467 = vpack.c.b16 %v463, %v459
      %v468 = vpack.c.b16 %v464, %v460
      %v469 = vpack.c.b16 %v465, %v461
      %v470 = vpack.c.b16 %v466, %v462
      %471 = vrot.lane.b32.xlu0 %v467, 17
      %v472 = vpop.permute.xlu0 %471
      %473 = vrot.lane.b32.xlu0 %v468, 17
      %v474 = vpop.permute.xlu0 %473
      %475 = vrot.lane.b32.xlu0 %v469, 17
      %v476 = vpop.permute.xlu0 %475
      %477 = vrot.lane.b32.xlu0 %v470, 17
      %v478 = vpop.permute.xlu0 %477
      %vm479 = vcmask 138240
      %v480 = vsel %vm479, %v472, %v474
      %v481 = vsel %vm479, %v474, %v476
      %v482 = vsel %vm479, %v476, %v478
      %486 = vst [vmem:[#allocation2 + $0x60] sm:$0xff] %v480
      %487 = vst [vmem:[#allocation2 + $0x68] sm:$0xff] %v481
      %488 = vst [vmem:[#allocation2 + $0x70] sm:$0xff] %v482
      %v489 = vld [vmem:[%s293] sm:$0xff]
      %v490 = vld [vmem:[%s293 + $0x8] sm:$0xff]
      %v491 = vld [vmem:[%s293 + $0x14] sm:$0xff]
      %v492 = vld [vmem:[%s293 + $0x1c] sm:$0xff]
      %v497 = vunpack.c.l.b16 %v489
      %v498 = vunpack.c.h.b16 %v489
      %v499 = vunpack.c.l.b16 %v490
      %v500 = vunpack.c.h.b16 %v490
      %v501 = vunpack.c.l.b16 %v491
      %v502 = vunpack.c.h.b16 %v491
      %v503 = vunpack.c.l.b16 %v492
      %v504 = vunpack.c.h.b16 %v492
      %v505 = vpack.c.b16 %v501, %v497
      %v506 = vpack.c.b16 %v502, %v498
      %v507 = vpack.c.b16 %v503, %v499
      %v508 = vpack.c.b16 %v504, %v500
      %509 = vrot.lane.b32.xlu0 %v505, 17
      %v510 = vpop.permute.xlu0 %509
      %511 = vrot.lane.b32.xlu0 %v506, 17
      %v512 = vpop.permute.xlu0 %511
      %513 = vrot.lane.b32.xlu0 %v507, 17
      %v514 = vpop.permute.xlu0 %513
      %515 = vrot.lane.b32.xlu0 %v508, 17
      %v516 = vpop.permute.xlu0 %515
      %v517 = vsel %vm479, %v510, %v512
      %v518 = vsel %vm479, %v512, %v514
      %v519 = vsel %vm479, %v514, %v516
      %523 = vst [vmem:[#allocation2 + $0x78] sm:$0xff] %v517
      %524 = vst [vmem:[#allocation2 + $0x80] sm:$0xff] %v518
      %525 = vst [vmem:[#allocation2 + $0x88] sm:$0xff] %v519
      %v526 = vld [vmem:[%s288] sm:$0xff]
      %v527 = vld [vmem:[%s288 + $0x8] sm:$0xff]
      %v528 = vld [vmem:[%s288 + $0x14] sm:$0xff]
      %v529 = vld [vmem:[%s288 + $0x1c] sm:$0xff]
      %v534 = vunpack.c.l.b16 %v526
      %v535 = vunpack.c.h.b16 %v526
      %v536 = vunpack.c.l.b16 %v527
      %v537 = vunpack.c.h.b16 %v527
      %v538 = vunpack.c.l.b16 %v528
      %v539 = vunpack.c.h.b16 %v528
      %v540 = vunpack.c.l.b16 %v529
      %v541 = vunpack.c.h.b16 %v529
      %v542 = vpack.c.b16 %v538, %v534
      %v543 = vpack.c.b16 %v539, %v535
      %v544 = vpack.c.b16 %v540, %v536
      %v545 = vpack.c.b16 %v541, %v537
      %546 = vrot.lane.b32.xlu0 %v542, 1
      %v547 = vpop.permute.xlu0 %546
      %548 = vrot.lane.b32.xlu0 %v543, 1
      %v549 = vpop.permute.xlu0 %548
      %550 = vrot.lane.b32.xlu0 %v544, 1
      %v551 = vpop.permute.xlu0 %550
      %552 = vrot.lane.b32.xlu0 %v545, 1
      %v553 = vpop.permute.xlu0 %552
      %vm554 = vcmask 7168
      %v555 = vsel %vm554, %v547, %v549
      %v556 = vsel %vm554, %v549, %v551
      %v557 = vsel %vm554, %v551, %v553
      %561 = vst [vmem:[#allocation2 + $0x90] sm:$0xff] %v555
      %562 = vst [vmem:[#allocation2 + $0x98] sm:$0xff] %v556
      %563 = vst [vmem:[#allocation2 + $0xa0] sm:$0xff] %v557
      %v564 = vld [vmem:[%s293] sm:$0xff]
      %v565 = vld [vmem:[%s293 + $0x8] sm:$0xff]
      %v566 = vld [vmem:[%s293 + $0x14] sm:$0xff]
      %v567 = vld [vmem:[%s293 + $0x1c] sm:$0xff]
      %v572 = vunpack.c.l.b16 %v564
      %v573 = vunpack.c.h.b16 %v564
      %v574 = vunpack.c.l.b16 %v565
      %v575 = vunpack.c.h.b16 %v565
      %v576 = vunpack.c.l.b16 %v566
      %v577 = vunpack.c.h.b16 %v566
      %v578 = vunpack.c.l.b16 %v567
      %v579 = vunpack.c.h.b16 %v567
      %v580 = vpack.c.b16 %v576, %v572
      %v581 = vpack.c.b16 %v577, %v573
      %v582 = vpack.c.b16 %v578, %v574
      %v583 = vpack.c.b16 %v579, %v575
      %584 = vrot.lane.b32.xlu0 %v580, 1
      %v585 = vpop.permute.xlu0 %584
      %586 = vrot.lane.b32.xlu0 %v581, 1
      %v587 = vpop.permute.xlu0 %586
      %588 = vrot.lane.b32.xlu0 %v582, 1
      %v589 = vpop.permute.xlu0 %588
      %590 = vrot.lane.b32.xlu0 %v583, 1
      %v591 = vpop.permute.xlu0 %590
      %v592 = vsel %vm554, %v585, %v587
      %v593 = vsel %vm554, %v587, %v589
      %v594 = vsel %vm554, %v589, %v591
      %598 = vst [vmem:[#allocation2 + $0xa8] sm:$0xff] %v592
      %599 = vst [vmem:[#allocation2 + $0xb0] sm:$0xff] %v593
      %600 = vst [vmem:[#allocation2 + $0xb8] sm:$0xff] %v594
      %v601 = vld [vmem:[%s288 + $0x4] sm:$0xff]
      %v602 = vld [vmem:[%s288 + $0xc] sm:$0xf]
      %v603 = vld [vmem:[%s288 + $0x18] sm:$0xff]
      %v604 = vld [vmem:[%s288 + $0x20] sm:$0xf]
      %v609 = vunpack.c.l.b16 %v601
      %v610 = vunpack.c.h.b16 %v601
      %v611 = vunpack.c.l.b16 %v602
      %v612 = vunpack.c.l.b16 %v603
      %v613 = vunpack.c.h.b16 %v603
      %v614 = vunpack.c.l.b16 %v604
      %v615 = vpack.c.b16 %v612, %v609
      %v616 = vpack.c.b16 %v613, %v610
      %v617 = vpack.c.b16 %v614, %v611
      %621 = vst [vmem:[#allocation2 + $0xc0] sm:$0xff] %v615
      %622 = vst [vmem:[#allocation2 + $0xc8] sm:$0xff] %v616
      %623 = vst [vmem:[#allocation2 + $0xd0] sm:$0xff] %v617
      %v624 = vld [vmem:[%s293 + $0x4] sm:$0xff]
      %v625 = vld [vmem:[%s293 + $0xc] sm:$0xf]
      %v626 = vld [vmem:[%s293 + $0x18] sm:$0xff]
      %v627 = vld [vmem:[%s293 + $0x20] sm:$0xf]
      %v632 = vunpack.c.l.b16 %v624
      %v633 = vunpack.c.h.b16 %v624
      %v634 = vunpack.c.l.b16 %v625
      %v635 = vunpack.c.l.b16 %v626
      %v636 = vunpack.c.h.b16 %v626
      %v637 = vunpack.c.l.b16 %v627
      %v638 = vpack.c.b16 %v635, %v632
      %v639 = vpack.c.b16 %v636, %v633
      %v640 = vpack.c.b16 %v637, %v634
      %644 = vst [vmem:[#allocation2 + $0xd8] sm:$0xff] %v638
      %645 = vst [vmem:[#allocation2 + $0xe0] sm:$0xff] %v639
      %646 = vst [vmem:[#allocation2 + $0xe8] sm:$0xff] %v640
      %v647 = vld [vmem:[%s288 + $0x4] sm:$0xff]
      %v648 = vld [vmem:[%s288 + $0xc] sm:$0xff]
      %v649 = vld [vmem:[%s288 + $0x18] sm:$0xff]
      %v650 = vld [vmem:[%s288 + $0x20] sm:$0xff]
      %v655 = vunpack.c.l.b16 %v647
      %v656 = vunpack.c.h.b16 %v647
      %v657 = vunpack.c.l.b16 %v648
      %v658 = vunpack.c.h.b16 %v648
      %v659 = vunpack.c.l.b16 %v649
      %v660 = vunpack.c.h.b16 %v649
      %v661 = vunpack.c.l.b16 %v650
      %v662 = vunpack.c.h.b16 %v650
      %v663 = vpack.c.b16 %v659, %v655
      %v664 = vpack.c.b16 %v660, %v656
      %v665 = vpack.c.b16 %v661, %v657
      %v666 = vpack.c.b16 %v662, %v658
      %667 = vrot.lane.b32.xlu0 %v663, 127
      %v668 = vpop.permute.xlu0 %667
      %669 = vrot.lane.b32.xlu0 %v664, 127
      %v670 = vpop.permute.xlu0 %669
      %671 = vrot.lane.b32.xlu0 %v665, 127
      %v672 = vpop.permute.xlu0 %671
      %673 = vrot.lane.b32.xlu0 %v666, 127
      %v674 = vpop.permute.xlu0 %673
      %vm675 = vcmask 1039360
      %v676 = vsel %vm675, %v668, %v670
      %v677 = vsel %vm675, %v670, %v672
      %v678 = vsel %vm675, %v672, %v674
      %682 = vst [vmem:[#allocation2 + $0xf0] sm:$0xff] %v676
      %683 = vst [vmem:[#allocation2 + $0xf8] sm:$0xff] %v677
      %684 = vst [vmem:[#allocation2 + $0x100] sm:$0xff] %v678
      %v685 = vld [vmem:[%s293 + $0x4] sm:$0xff]
      %v686 = vld [vmem:[%s293 + $0xc] sm:$0xff]
      %v687 = vld [vmem:[%s293 + $0x18] sm:$0xff]
      %v688 = vld [vmem:[%s293 + $0x20] sm:$0xff]
      %v693 = vunpack.c.l.b16 %v685
      %v694 = vunpack.c.h.b16 %v685
      %v695 = vunpack.c.l.b16 %v686
      %v696 = vunpack.c.h.b16 %v686
      %v697 = vunpack.c.l.b16 %v687
      %v698 = vunpack.c.h.b16 %v687
      %v699 = vunpack.c.l.b16 %v688
      %v700 = vunpack.c.h.b16 %v688
      %v701 = vpack.c.b16 %v697, %v693
      %v702 = vpack.c.b16 %v698, %v694
      %v703 = vpack.c.b16 %v699, %v695
      %v704 = vpack.c.b16 %v700, %v696
      %705 = vrot.lane.b32.xlu0 %v701, 127
      %v706 = vpop.permute.xlu0 %705
      %707 = vrot.lane.b32.xlu0 %v702, 127
      %v708 = vpop.permute.xlu0 %707
      %709 = vrot.lane.b32.xlu0 %v703, 127
      %v710 = vpop.permute.xlu0 %709
      %711 = vrot.lane.b32.xlu0 %v704, 127
      %v712 = vpop.permute.xlu0 %711
      %v713 = vsel %vm675, %v706, %v708
      %v714 = vsel %vm675, %v708, %v710
      %v715 = vsel %vm675, %v710, %v712
      %719 = vst [vmem:[#allocation2 + $0x108] sm:$0xff] %v713
      %720 = vst [vmem:[#allocation2 + $0x110] sm:$0xff] %v714
      %721 = vst [vmem:[#allocation2 + $0x118] sm:$0xff] %v715
      %v722 = vld [vmem:[%s288 + $0x4] sm:$0xff]
      %v723 = vld [vmem:[%s288 + $0xc] sm:$0xff]
      %v724 = vld [vmem:[%s288 + $0x18] sm:$0xff]
      %v725 = vld [vmem:[%s288 + $0x20] sm:$0xff]
      %v730 = vunpack.c.l.b16 %v722
      %v731 = vunpack.c.h.b16 %v722
      %v732 = vunpack.c.l.b16 %v723
      %v733 = vunpack.c.h.b16 %v723
      %v734 = vunpack.c.l.b16 %v724
      %v735 = vunpack.c.h.b16 %v724
      %v736 = vunpack.c.l.b16 %v725
      %v737 = vunpack.c.h.b16 %v725
      %v738 = vpack.c.b16 %v734, %v730
      %v739 = vpack.c.b16 %v735, %v731
      %v740 = vpack.c.b16 %v736, %v732
      %v741 = vpack.c.b16 %v737, %v733
      %742 = vrot.lane.b32.xlu0 %v738, 111
      %v743 = vpop.permute.xlu0 %742
      %744 = vrot.lane.b32.xlu0 %v739, 111
      %v745 = vpop.permute.xlu0 %744
      %746 = vrot.lane.b32.xlu0 %v740, 111
      %v747 = vpop.permute.xlu0 %746
      %748 = vrot.lane.b32.xlu0 %v741, 111
      %v749 = vpop.permute.xlu0 %748
      %vm750 = vcmask 908288
      %v751 = vsel %vm750, %v743, %v745
      %v752 = vsel %vm750, %v745, %v747
      %v753 = vsel %vm750, %v747, %v749
      %757 = vst [vmem:[#allocation2 + $0x120] sm:$0xff] %v751
      %758 = vst [vmem:[#allocation2 + $0x128] sm:$0xff] %v752
      %759 = vst [vmem:[#allocation2 + $0x130] sm:$0xff] %v753
      %v760 = vld [vmem:[%s293 + $0x4] sm:$0xff]
      %v761 = vld [vmem:[%s293 + $0xc] sm:$0xff]
      %v762 = vld [vmem:[%s293 + $0x18] sm:$0xff]
      %v763 = vld [vmem:[%s293 + $0x20] sm:$0xff]
      %v768 = vunpack.c.l.b16 %v760
      %v769 = vunpack.c.h.b16 %v760
      %v770 = vunpack.c.l.b16 %v761
      %v771 = vunpack.c.h.b16 %v761
      %v772 = vunpack.c.l.b16 %v762
      %v773 = vunpack.c.h.b16 %v762
      %v774 = vunpack.c.l.b16 %v763
      %v775 = vunpack.c.h.b16 %v763
      %v776 = vpack.c.b16 %v772, %v768
      %v777 = vpack.c.b16 %v773, %v769
      %v778 = vpack.c.b16 %v774, %v770
      %v779 = vpack.c.b16 %v775, %v771
      %780 = vrot.lane.b32.xlu0 %v776, 111
      %v781 = vpop.permute.xlu0 %780
      %782 = vrot.lane.b32.xlu0 %v777, 111
      %v783 = vpop.permute.xlu0 %782
      %784 = vrot.lane.b32.xlu0 %v778, 111
      %v785 = vpop.permute.xlu0 %784
      %786 = vrot.lane.b32.xlu0 %v779, 111
      %v787 = vpop.permute.xlu0 %786
      %v788 = vsel %vm750, %v781, %v783
      %v789 = vsel %vm750, %v783, %v785
      %v790 = vsel %vm750, %v785, %v787
      %794 = vst [vmem:[#allocation2 + $0x138] sm:$0xff] %v788
      %795 = vst [vmem:[#allocation2 + $0x140] sm:$0xff] %v789
      %796 = vst [vmem:[#allocation2 + $0x148] sm:$0xff] %v790
      %v797 = vld [vmem:[%s288 + $0x4] sm:$0xff]
      %v798 = vld [vmem:[%s288 + $0xc] sm:$0xff]
      %v799 = vld [vmem:[%s288 + $0x18] sm:$0xff]
      %v800 = vld [vmem:[%s288 + $0x20] sm:$0xff]
      %v805 = vunpack.c.l.b16 %v797
      %v806 = vunpack.c.h.b16 %v797
      %v807 = vunpack.c.l.b16 %v798
      %v808 = vunpack.c.h.b16 %v798
      %v809 = vunpack.c.l.b16 %v799
      %v810 = vunpack.c.h.b16 %v799
      %v811 = vunpack.c.l.b16 %v800
      %v812 = vunpack.c.h.b16 %v800
      %v813 = vpack.c.b16 %v809, %v805
      %v814 = vpack.c.b16 %v810, %v806
      %v815 = vpack.c.b16 %v811, %v807
      %v816 = vpack.c.b16 %v812, %v808
      %817 = vrot.lane.b32.xlu0 %v813, 110
      %v818 = vpop.permute.xlu0 %817
      %819 = vrot.lane.b32.xlu0 %v814, 110
      %v820 = vpop.permute.xlu0 %819
      %821 = vrot.lane.b32.xlu0 %v815, 110
      %v822 = vpop.permute.xlu0 %821
      %823 = vrot.lane.b32.xlu0 %v816, 110
      %v824 = vpop.permute.xlu0 %823
      %vm825 = vcmask 900096
      %v826 = vsel %vm825, %v818, %v820
      %v827 = vsel %vm825, %v820, %v822
      %v828 = vsel %vm825, %v822, %v824
      %832 = vst [vmem:[#allocation2 + $0x150] sm:$0xff] %v826
      %833 = vst [vmem:[#allocation2 + $0x158] sm:$0xff] %v827
      %834 = vst [vmem:[#allocation2 + $0x160] sm:$0xff] %v828
      %v835 = vld [vmem:[%s293 + $0x4] sm:$0xff]
      %v836 = vld [vmem:[%s293 + $0xc] sm:$0xff]
      %v837 = vld [vmem:[%s293 + $0x18] sm:$0xff]
      %v838 = vld [vmem:[%s293 + $0x20] sm:$0xff]
      %v843 = vunpack.c.l.b16 %v835
      %v844 = vunpack.c.h.b16 %v835
      %v845 = vunpack.c.l.b16 %v836
      %v846 = vunpack.c.h.b16 %v836
      %v847 = vunpack.c.l.b16 %v837
      %v848 = vunpack.c.h.b16 %v837
      %v849 = vunpack.c.l.b16 %v838
      %v850 = vunpack.c.h.b16 %v838
      %v851 = vpack.c.b16 %v847, %v843
      %v852 = vpack.c.b16 %v848, %v844
      %v853 = vpack.c.b16 %v849, %v845
      %v854 = vpack.c.b16 %v850, %v846
      %855 = vrot.lane.b32.xlu0 %v851, 110
      %v856 = vpop.permute.xlu0 %855
      %857 = vrot.lane.b32.xlu0 %v852, 110
      %v858 = vpop.permute.xlu0 %857
      %859 = vrot.lane.b32.xlu0 %v853, 110
      %v860 = vpop.permute.xlu0 %859
      %861 = vrot.lane.b32.xlu0 %v854, 110
      %v862 = vpop.permute.xlu0 %861
      %v863 = vsel %vm825, %v856, %v858
      %v864 = vsel %vm825, %v858, %v860
      %v865 = vsel %vm825, %v860, %v862
      %869 = vst [vmem:[#allocation2 + $0x168] sm:$0xff] %v863
      %870 = vst [vmem:[#allocation2 + $0x170] sm:$0xff] %v864
      %871 = vst [vmem:[#allocation2 + $0x178] sm:$0xff] %v865
      %v872 = vld [vmem:[%s288 + $0x4] sm:$0xff]
      %v873 = vld [vmem:[%s288 + $0xc] sm:$0xff]
      %v874 = vld [vmem:[%s288 + $0x18] sm:$0xff]
      %v875 = vld [vmem:[%s288 + $0x20] sm:$0xff]
      %v880 = vunpack.c.l.b16 %v872
      %v881 = vunpack.c.h.b16 %v872
      %v882 = vunpack.c.l.b16 %v873
      %v883 = vunpack.c.h.b16 %v873
      %v884 = vunpack.c.l.b16 %v874
      %v885 = vunpack.c.h.b16 %v874
      %v886 = vunpack.c.l.b16 %v875
      %v887 = vunpack.c.h.b16 %v875
      %v888 = vpack.c.b16 %v884, %v880
      %v889 = vpack.c.b16 %v885, %v881
      %v890 = vpack.c.b16 %v886, %v882
      %v891 = vpack.c.b16 %v887, %v883
      %892 = vrot.lane.b32.xlu0 %v888, 109
      %v893 = vpop.permute.xlu0 %892
      %894 = vrot.lane.b32.xlu0 %v889, 109
      %v895 = vpop.permute.xlu0 %894
      %896 = vrot.lane.b32.xlu0 %v890, 109
      %v897 = vpop.permute.xlu0 %896
      %898 = vrot.lane.b32.xlu0 %v891, 109
      %v899 = vpop.permute.xlu0 %898
      %vm900 = vcmask 891904
      %v901 = vsel %vm900, %v893, %v895
      %v902 = vsel %vm900, %v895, %v897
      %v903 = vsel %vm900, %v897, %v899
      %907 = vst [vmem:[#allocation2 + $0x180] sm:$0xff] %v901
      %908 = vst [vmem:[#allocation2 + $0x188] sm:$0xff] %v902
      %909 = vst [vmem:[#allocation2 + $0x190] sm:$0xff] %v903
      %v910 = vld [vmem:[%s293 + $0x4] sm:$0xff]
      %v911 = vld [vmem:[%s293 + $0xc] sm:$0xff]
      %v912 = vld [vmem:[%s293 + $0x18] sm:$0xff]
      %v913 = vld [vmem:[%s293 + $0x20] sm:$0xff]
      %v918 = vunpack.c.l.b16 %v910
      %v919 = vunpack.c.h.b16 %v910
      %v920 = vunpack.c.l.b16 %v911
      %v921 = vunpack.c.h.b16 %v911
      %v922 = vunpack.c.l.b16 %v912
      %v923 = vunpack.c.h.b16 %v912
      %v924 = vunpack.c.l.b16 %v913
      %v925 = vunpack.c.h.b16 %v913
      %v926 = vpack.c.b16 %v922, %v918
      %v927 = vpack.c.b16 %v923, %v919
      %v928 = vpack.c.b16 %v924, %v920
      %v929 = vpack.c.b16 %v925, %v921
      %930 = vrot.lane.b32.xlu0 %v926, 109
      %v931 = vpop.permute.xlu0 %930
      %932 = vrot.lane.b32.xlu0 %v927, 109
      %v933 = vpop.permute.xlu0 %932
      %934 = vrot.lane.b32.xlu0 %v928, 109
      %v935 = vpop.permute.xlu0 %934
      %936 = vrot.lane.b32.xlu0 %v929, 109
      %v937 = vpop.permute.xlu0 %936
      %v938 = vsel %vm900, %v931, %v933
      %v939 = vsel %vm900, %v933, %v935
      %v940 = vsel %vm900, %v935, %v937
      %944 = vst [vmem:[#allocation2 + $0x198] sm:$0xff] %v938
      %945 = vst [vmem:[#allocation2 + $0x1a0] sm:$0xff] %v939
      %946 = vst [vmem:[#allocation2 + $0x1a8] sm:$0xff] %v940
      %v947 = vld [vmem:[%s2] sm:$0xff]
      %v948 = vld [vmem:[%s2 + $0x8] sm:$0xf]
      %v949 = vld [vmem:[%s2 + $0xc] sm:$0xff]
      %v950 = vld [vmem:[%s2 + $0x14] sm:$0xf]
      %v951 = vld [vmem:[%s2 + $0x18] sm:$0xff]
      %v952 = vld [vmem:[%s2 + $0x20] sm:$0xf]
      %v953 = vld [vmem:[%s2 + $0x24] sm:$0xff]
      %v954 = vld [vmem:[%s2 + $0x2c] sm:$0xf]
      %v955 = vld [vmem:[#allocation2] sm:$0xff]
      %v956 = vld [vmem:[#allocation2 + $0x8] sm:$0xff]
      %v957 = vld [vmem:[#allocation2 + $0x10] sm:$0xff]
      %v958 = vld [vmem:[#allocation2 + $0x18] sm:$0xff]
      %v959 = vld [vmem:[#allocation2 + $0x20] sm:$0xff]
      %v960 = vld [vmem:[#allocation2 + $0x28] sm:$0xff]
      %v961 = vld [vmem:[#allocation2 + $0x30] sm:$0xff]
      %v962 = vld [vmem:[#allocation2 + $0x38] sm:$0xff]
      %v963 = vld [vmem:[#allocation2 + $0x40] sm:$0xff]
      %v964 = vld [vmem:[#allocation2 + $0x48] sm:$0xff]
      %v965 = vld [vmem:[#allocation2 + $0x50] sm:$0xff]
      %v966 = vld [vmem:[#allocation2 + $0x58] sm:$0xff]
      %v967 = vld [vmem:[#allocation2 + $0x60] sm:$0xff]
      %v968 = vld [vmem:[#allocation2 + $0x68] sm:$0xff]
      %v969 = vld [vmem:[#allocation2 + $0x70] sm:$0xff]
      %v970 = vld [vmem:[#allocation2 + $0x78] sm:$0xff]
      %v971 = vld [vmem:[#allocation2 + $0x80] sm:$0xff]
      %v972 = vld [vmem:[#allocation2 + $0x88] sm:$0xff]
      %v973 = vld [vmem:[#allocation2 + $0x90] sm:$0xff]
      %v974 = vld [vmem:[#allocation2 + $0x98] sm:$0xff]
      %v975 = vld [vmem:[#allocation2 + $0xa0] sm:$0xff]
      %v976 = vld [vmem:[#allocation2 + $0xa8] sm:$0xff]
      %v977 = vld [vmem:[#allocation2 + $0xb0] sm:$0xff]
      %v978 = vld [vmem:[#allocation2 + $0xb8] sm:$0xff]
      %v979 = vld [vmem:[#allocation2 + $0xc0] sm:$0xff]
      %v980 = vld [vmem:[#allocation2 + $0xc8] sm:$0xff]
      %v981 = vld [vmem:[#allocation2 + $0xd0] sm:$0xff]
      %v982 = vld [vmem:[#allocation2 + $0xd8] sm:$0xff]
      %v983 = vld [vmem:[#allocation2 + $0xe0] sm:$0xff]
      %v984 = vld [vmem:[#allocation2 + $0xe8] sm:$0xff]
      %v985 = vld [vmem:[#allocation2 + $0xf0] sm:$0xff]
      %v986 = vld [vmem:[#allocation2 + $0xf8] sm:$0xff]
      %v987 = vld [vmem:[#allocation2 + $0x100] sm:$0xff]
      %v988 = vld [vmem:[#allocation2 + $0x108] sm:$0xff]
      %v989 = vld [vmem:[#allocation2 + $0x110] sm:$0xff]
      %v990 = vld [vmem:[#allocation2 + $0x118] sm:$0xff]
      %v991 = vld [vmem:[#allocation2 + $0x120] sm:$0xff]
      %v992 = vld [vmem:[#allocation2 + $0x128] sm:$0xff]
      %v993 = vld [vmem:[#allocation2 + $0x130] sm:$0xff]
      %v994 = vld [vmem:[#allocation2 + $0x138] sm:$0xff]
      %v995 = vld [vmem:[#allocation2 + $0x140] sm:$0xff]
      %v996 = vld [vmem:[#allocation2 + $0x148] sm:$0xff]
      %v997 = vld [vmem:[#allocation2 + $0x150] sm:$0xff]
      %v998 = vld [vmem:[#allocation2 + $0x158] sm:$0xff]
      %v999 = vld [vmem:[#allocation2 + $0x160] sm:$0xff]
      %v1000 = vld [vmem:[#allocation2 + $0x168] sm:$0xff]
      %v1001 = vld [vmem:[#allocation2 + $0x170] sm:$0xff]
      %v1002 = vld [vmem:[#allocation2 + $0x178] sm:$0xff]
      %v1003 = vld [vmem:[#allocation2 + $0x180] sm:$0xff]
      %v1004 = vld [vmem:[#allocation2 + $0x188] sm:$0xff]
      %v1005 = vld [vmem:[#allocation2 + $0x190] sm:$0xff]
      %v1006 = vld [vmem:[#allocation2 + $0x198] sm:$0xff]
      %v1007 = vld [vmem:[#allocation2 + $0x1a0] sm:$0xff]
      %v1008 = vld [vmem:[#allocation2 + $0x1a8] sm:$0xff]
      %v1009 = vld [vmem:[%s3] sm:$0xff]
      %v1010 = vld [vmem:[%s3 + $0x8] sm:$0xff]
      %v1011 = vld [vmem:[%s3 + $0x10] sm:$0xff]
      %v1012 = vld [vmem:[%s3 + $0x18] sm:$0xff]
      %1014 = vset.pattern.permute.xlu0 0
      %1015 = vperm.xlu0 %1014, %v1009
      %v1016 = vpop.permute.xlu0 %1015
      %1019 = vset.pattern.permute.xlu0 0
      %1020 = vperm.xlu0 %1019, %v1010
      %v1021 = vpop.permute.xlu0 %1020
      %1024 = vset.pattern.permute.xlu0 0
      %1025 = vperm.xlu0 %1024, %v1011
      %v1026 = vpop.permute.xlu0 %1025
      %1029 = vset.pattern.permute.xlu0 0
      %1030 = vperm.xlu0 %1029, %v1012
      %v1031 = vpop.permute.xlu0 %1030
      %v1041 = vunpack.c.l.b16 %v947
      %v1042 = vunpack.c.h.b16 %v947
      %v1043 = vunpack.c.l.b16 %v948
      %v1044 = vunpack.c.l.b16 %v949
      %v1045 = vunpack.c.h.b16 %v949
      %v1046 = vunpack.c.l.b16 %v950
      %v1047 = vunpack.c.l.b16 %v951
      %v1048 = vunpack.c.h.b16 %v951
      %v1049 = vunpack.c.l.b16 %v952
      %v1050 = vunpack.c.l.b16 %v953
      %v1051 = vunpack.c.h.b16 %v953
      %v1052 = vunpack.c.l.b16 %v954
      %v1053 = vpack.c.b16 %v1044, %v1041
      %v1054 = vpack.c.b16 %v1045, %v1042
      %v1055 = vpack.c.b16 %v1046, %v1043
      %v1056 = vpack.c.b16 %v1050, %v1047
      %v1057 = vpack.c.b16 %v1051, %v1048
      %v1058 = vpack.c.b16 %v1052, %v1049
      %vm1063 = vcmask 261120
      %v1065 = vsel %vm1063, %v1055, 0
      %v1068 = vsel %vm1063, %v1058, 0
      %1070 = vmatprep.subr.bf16.mxu0 %v956
      %1071 = vmatpush1.bf16.msra.mxu0 %v955
      %1072 = vmatprep.subr.bf16.mxu0 %v959
      %1073 = vmatpush1.bf16.msra.mxu0 %v958
      %1074 = vmatprep.subr.bf16.mxu0 %v962
      %1075 = vmatpush1.bf16.msra.mxu0 %v961
      %1076 = vmatprep.subr.bf16.mxu0 %v965
      %1077 = vmatpush1.bf16.msra.mxu0 %v964
      %1078 = vmatprep.subr.bf16.mxu0 %v968
      %1079 = vmatpush1.bf16.msra.mxu0 %v967
      %1080 = vmatprep.subr.bf16.mxu0 %v971
      %1081 = vmatpush1.bf16.msra.mxu0 %v970
      %1082 = vmatprep.subr.bf16.mxu0 %v974
      %1083 = vmatpush1.bf16.msra.mxu0 %v973
      %1084 = vmatprep.subr.bf16.mxu0 %v977
      %1085 = vmatpush1.bf16.msra.mxu0 %v976
      %1086 = vmatprep.subr.bf16.mxu0 %v980
      %1087 = vmatpush1.bf16.msra.mxu0 %v979
      %1088 = vmatprep.subr.bf16.mxu0 %v983
      %1089 = vmatpush1.bf16.msra.mxu0 %v982
      %1090 = vmatprep.subr.bf16.mxu0 %v986
      %1091 = vmatpush1.bf16.msra.mxu0 %v985
      %1092 = vmatprep.subr.bf16.mxu0 %v989
      %1093 = vmatpush1.bf16.msra.mxu0 %v988
      %1094 = vmatprep.subr.bf16.mxu0 %v992
      %1095 = vmatpush1.bf16.msra.mxu0 %v991
      %1096 = vmatprep.subr.bf16.mxu0 %v995
      %1097 = vmatpush1.bf16.msra.mxu0 %v994
      %1098 = vmatprep.subr.bf16.mxu0 %v998
      %1099 = vmatpush1.bf16.msra.mxu0 %v997
      %1100 = vmatprep.subr.bf16.mxu0 %v1001
      %1101 = vmatpush1.bf16.msra.mxu0 %v1000
      %1102 = vmatprep.mubr.bf16.mxu0 %v1054
      %1103 = vmatmul.mubr.bf16.gmra.mrb[0].mxu0 %v1053
      %v1104 = vpop.f32.mrb[0].mxu0
      %v1105 = vadd.f32 %v1016, %v1104
      %v1106 = vpop.f32.mrb[0].mxu0
      %v1107 = vadd.f32 %v1016, %v1106
      %v1108 = vpop.f32.mrb[0].mxu0
      %v1109 = vadd.f32 %v1021, %v1108
      %v1110 = vpop.f32.mrb[0].mxu0
      %v1111 = vadd.f32 %v1021, %v1110
      %1112 = vmatprep.mubr.bf16.mxu0 %v1057
      %1113 = vmatmul.mubr.bf16.gmra.mrb[0].mxu0 %v1056
      %v1114 = vpop.f32.mrb[0].mxu0
      %v1115 = vadd.f32 %v1026, %v1114
      %v1116 = vpop.f32.mrb[0].mxu0
      %v1117 = vadd.f32 %v1026, %v1116
      %v1118 = vpop.f32.mrb[0].mxu0
      %v1119 = vadd.f32 %v1031, %v1118
      %v1120 = vpop.f32.mrb[0].mxu0
      %v1121 = vadd.f32 %v1031, %v1120
      %1122 = vdwg.mxu0
      %1123 = vmatprep.subr.bf16.mxu0 %v1004
      %1124 = vmatpush1.bf16.msra.mxu0 %v1003
      %1125 = vmatprep.subr.bf16.mxu0 %v1007
      %1126 = vmatpush1.bf16.msra.mxu0 %v1006
      %1127 = vmatprep.subr.bf16.mxu0 0
      %1128 = vmatpush1.bf16.msra.mxu0 0
      %1129 = vmatprep.subr.bf16.mxu0 0
      %1130 = vmatpush1.bf16.msra.mxu0 0
      %1131 = vmatprep.subr.bf16.mxu0 0
      %1132 = vmatpush1.bf16.msra.mxu0 0
      %1133 = vmatprep.subr.bf16.mxu0 0
      %1134 = vmatpush1.bf16.msra.mxu0 0
      %1135 = vmatprep.subr.bf16.mxu0 0
      %1136 = vmatpush1.bf16.msra.mxu0 0
      %1137 = vmatprep.subr.bf16.mxu0 0
      %1138 = vmatpush1.bf16.msra.mxu0 0
      %1139 = vmatprep.subr.bf16.mxu0 0
      %1140 = vmatpush1.bf16.msra.mxu0 0
      %1141 = vmatprep.subr.bf16.mxu0 0
      %1142 = vmatpush1.bf16.msra.mxu0 0
      %1143 = vmatprep.subr.bf16.mxu0 0
      %1144 = vmatpush1.bf16.msra.mxu0 0
      %1145 = vmatprep.subr.bf16.mxu0 0
      %1146 = vmatpush1.bf16.msra.mxu0 0
      %1147 = vmatprep.subr.bf16.mxu0 0
      %1148 = vmatpush1.bf16.msra.mxu0 0
      %1149 = vmatprep.subr.bf16.mxu0 0
      %1150 = vmatpush1.bf16.msra.mxu0 0
      %1151 = vmatprep.subr.bf16.mxu0 0
      %1152 = vmatpush1.bf16.msra.mxu0 0
      %1153 = vmatprep.subr.bf16.mxu0 0
      %1154 = vmatpush1.bf16.msra.mxu0 0
      %1155 = vmatprep.mubr.bf16.mxu0 0
      %1156 = vmatmul.mubr.bf16.gmra.mrb[0].mxu0 %v1065
      %v1157 = vpop.f32.mrb[0].mxu0
      %v1158 = vadd.f32 %v1105, %v1157
      %v1159 = vpop.f32.mrb[0].mxu0
      %v1160 = vadd.f32 %v1107, %v1159
      %v1161 = vpop.f32.mrb[0].mxu0
      %v1162 = vadd.f32 %v1109, %v1161
      %v1163 = vpop.f32.mrb[0].mxu0
      %v1164 = vadd.f32 %v1111, %v1163
      %1165 = vmatprep.mubr.bf16.mxu0 0
      %1166 = vmatmul.mubr.bf16.gmra.mrb[0].mxu0 %v1068
      %v1167 = vpop.f32.mrb[0].mxu0
      %v1168 = vadd.f32 %v1115, %v1167
      %v1169 = vpop.f32.mrb[0].mxu0
      %v1170 = vadd.f32 %v1117, %v1169
      %v1171 = vpop.f32.mrb[0].mxu0
      %v1172 = vadd.f32 %v1119, %v1171
      %v1173 = vpop.f32.mrb[0].mxu0
      %v1174 = vadd.f32 %v1121, %v1173
      %1175 = vdwg.mxu0
      %1176 = vmatprep.subr.bf16.mxu0 0
      %1177 = vmatpush1.bf16.msra.mxu0 %v957
      %1178 = vmatprep.subr.bf16.mxu0 0
      %1179 = vmatpush1.bf16.msra.mxu0 %v960
      %1180 = vmatprep.subr.bf16.mxu0 0
      %1181 = vmatpush1.bf16.msra.mxu0 %v963
      %1182 = vmatprep.subr.bf16.mxu0 0
      %1183 = vmatpush1.bf16.msra.mxu0 %v966
      %1184 = vmatprep.subr.bf16.mxu0 0
      %1185 = vmatpush1.bf16.msra.mxu0 %v969
      %1186 = vmatprep.subr.bf16.mxu0 0
      %1187 = vmatpush1.bf16.msra.mxu0 %v972
      %1188 = vmatprep.subr.bf16.mxu0 0
      %1189 = vmatpush1.bf16.msra.mxu0 %v975
      %1190 = vmatprep.subr.bf16.mxu0 0
      %1191 = vmatpush1.bf16.msra.mxu0 %v978
      %1192 = vmatprep.subr.bf16.mxu0 0
      %1193 = vmatpush1.bf16.msra.mxu0 %v981
      %1194 = vmatprep.subr.bf16.mxu0 0
      %1195 = vmatpush1.bf16.msra.mxu0 %v984
      %1196 = vmatprep.subr.bf16.mxu0 0
      %1197 = vmatpush1.bf16.msra.mxu0 %v987
      %1198 = vmatprep.subr.bf16.mxu0 0
      %1199 = vmatpush1.bf16.msra.mxu0 %v990
      %1200 = vmatprep.subr.bf16.mxu0 0
      %1201 = vmatpush1.bf16.msra.mxu0 %v993
      %1202 = vmatprep.subr.bf16.mxu0 0
      %1203 = vmatpush1.bf16.msra.mxu0 %v996
      %1204 = vmatprep.subr.bf16.mxu0 0
      %1205 = vmatpush1.bf16.msra.mxu0 %v999
      %1206 = vmatprep.subr.bf16.mxu0 0
      %1207 = vmatpush1.bf16.msra.mxu0 %v1002
      %1208 = vmatprep.mubr.bf16.mxu0 %v1054
      %1209 = vmatmul.mubr.bf16.gmra.mrb[0].mxu0 %v1053
      %v1210 = vpop.f32.mrb[0].mxu0
      %v1211 = vadd.f32 %v1016, %v1210
      %v1212 = vpop.f32.mrb[0].mxu0
      %v1213 = vpop.f32.mrb[0].mxu0
      %v1214 = vadd.f32 %v1021, %v1213
      %v1215 = vpop.f32.mrb[0].mxu0
      %1216 = vmatprep.mubr.bf16.mxu0 %v1057
      %1217 = vmatmul.mubr.bf16.gmra.mrb[0].mxu0 %v1056
      %v1218 = vpop.f32.mrb[0].mxu0
      %v1219 = vadd.f32 %v1026, %v1218
      %v1220 = vpop.f32.mrb[0].mxu0
      %v1221 = vpop.f32.mrb[0].mxu0
      %v1222 = vadd.f32 %v1031, %v1221
      %v1223 = vpop.f32.mrb[0].mxu0
      %1224 = vdwg.mxu0
      %1225 = vmatprep.subr.bf16.mxu0 0
      %1226 = vmatpush1.bf16.msra.mxu0 %v1005
      %1227 = vmatprep.subr.bf16.mxu0 0
      %1228 = vmatpush1.bf16.msra.mxu0 %v1008
      %1229 = vmatprep.subr.bf16.mxu0 0
      %1230 = vmatpush1.bf16.msra.mxu0 0
      %1231 = vmatprep.subr.bf16.mxu0 0
      %1232 = vmatpush1.bf16.msra.mxu0 0
      %1233 = vmatprep.subr.bf16.mxu0 0
      %1234 = vmatpush1.bf16.msra.mxu0 0
      %1235 = vmatprep.subr.bf16.mxu0 0
      %1236 = vmatpush1.bf16.msra.mxu0 0
      %1237 = vmatprep.subr.bf16.mxu0 0
      %1238 = vmatpush1.bf16.msra.mxu0 0
      %1239 = vmatprep.subr.bf16.mxu0 0
      %1240 = vmatpush1.bf16.msra.mxu0 0
      %1241 = vmatprep.subr.bf16.mxu0 0
      %1242 = vmatpush1.bf16.msra.mxu0 0
      %1243 = vmatprep.subr.bf16.mxu0 0
      %1244 = vmatpush1.bf16.msra.mxu0 0
      %1245 = vmatprep.subr.bf16.mxu0 0
      %1246 = vmatpush1.bf16.msra.mxu0 0
      %1247 = vmatprep.subr.bf16.mxu0 0
      %1248 = vmatpush1.bf16.msra.mxu0 0
      %1249 = vmatprep.subr.bf16.mxu0 0
      %1250 = vmatpush1.bf16.msra.mxu0 0
      %1251 = vmatprep.subr.bf16.mxu0 0
      %1252 = vmatpush1.bf16.msra.mxu0 0
      %1253 = vmatprep.subr.bf16.mxu0 0
      %1254 = vmatpush1.bf16.msra.mxu0 0
      %1255 = vmatprep.subr.bf16.mxu0 0
      %1256 = vmatpush1.bf16.msra.mxu0 0
      %1257 = vmatprep.mubr.bf16.mxu0 0
      %1258 = vmatmul.mubr.bf16.gmra.mrb[0].mxu0 %v1065
      %v1259 = vpop.f32.mrb[0].mxu0
      %v1260 = vadd.f32 %v1211, %v1259
      %v1261 = vpop.f32.mrb[0].mxu0
      %v1262 = vpop.f32.mrb[0].mxu0
      %v1263 = vadd.f32 %v1214, %v1262
      %v1264 = vpop.f32.mrb[0].mxu0
      %1265 = vmatprep.mubr.bf16.mxu0 0
      %1266 = vmatmul.mubr.bf16.gmra.mrb[0].mxu0 %v1068
      %v1267 = vpop.f32.mrb[0].mxu0
      %v1268 = vadd.f32 %v1219, %v1267
      %v1269 = vpop.f32.mrb[0].mxu0
      %v1270 = vpop.f32.mrb[0].mxu0
      %v1271 = vadd.f32 %v1222, %v1270
      %v1272 = vpop.f32.mrb[0].mxu0
      %1273 = vdwg.mxu0
      %1274 = vst [vmem:[#allocation4] sm:$0xff] %v1168
      %1275 = vst [vmem:[#allocation4 + $0x8] sm:$0xff] %v1170
      %1276 = vst [vmem:[#allocation4 + $0x10] sm:$0xff] %v1268
      %1277 = vst [vmem:[#allocation4 + $0x18] sm:$0xff] %v1172
      %1278 = vst [vmem:[#allocation4 + $0x20] sm:$0xff] %v1174
      %1279 = vst [vmem:[#allocation4 + $0x28] sm:$0xff] %v1271
      %v1280 = vmax.f32 %v1158, 0.0
      %v1281 = vmax.f32 %v1160, 0.0
      %v1282 = vmax.f32 %v1260, 0.0
      %v1283 = vmax.f32 %v1162, 0.0
      %v1284 = vmax.f32 %v1164, 0.0
      %v1285 = vmax.f32 %v1263, 0.0
      %v1287 = vlaneseq
      %v1288 = vshrl.u32 %v1287, 7
      %v1289 = vsub.s32 0, %v1288
      %v1290 = vrot.slane %v300, %v1289
      %v1291 = vlaneseq
      %v1292 = vshrl.u32 %v1291, 7
      %v1293 = vsub.s32 1, %v1292
      %v1294 = vrot.slane %v300, %v1293
      %v1295 = vlaneseq
      %v1296 = vshrl.u32 %v1295, 7
      %v1297 = vsub.s32 2, %v1296
      %v1298 = vrot.slane %v300, %v1297
      %v1302 = vmul.f32 %v1280, %v1290
      %v1303 = vmul.f32 %v1281, %v1294
      %v1304 = vmul.f32 %v1282, %v1298
      %v1305 = vmul.f32 %v1283, %v1290
      %v1306 = vmul.f32 %v1284, %v1294
      %v1307 = vmul.f32 %v1285, %v1298
      %1308 = vst [vmem:[#allocation3] sm:$0xff] 0
      %1309 = vst [vmem:[#allocation3 + $0x20] sm:$0xff] 0
      %v1310 = vpack.c.bf16 %v1305, %v1302
      %v1311 = vpack.c.bf16 %v1306, %v1303
      %v1312 = vpack.c.bf16 %v1307, %v1304
      %1313 = vst [vmem:[#allocation3 + $0x8] sm:$0xff] %v1310
      %1314 = vst [vmem:[#allocation3 + $0x10] sm:$0xff] %v1311
      %1315 = vst [vmem:[#allocation3 + $0x18] sm:$0xff] %v1312
      %v1316 = vld [vmem:[#allocation3] sm:$0xff]
      %v1317 = vld [vmem:[#allocation3 + $0x8] sm:$0xff]
      %v1318 = vld [vmem:[#allocation3 + $0x10] sm:$0xff]
      %v1319 = vld [vmem:[#allocation3 + $0x18] sm:$0xff]
      %1324 = vrot.lane.b32.xlu0 %v1316, 19
      %v1325 = vpop.permute.xlu0 %1324
      %1326 = vrot.lane.b32.xlu0 %v1317, 19
      %v1327 = vpop.permute.xlu0 %1326
      %1328 = vrot.lane.b32.xlu0 %v1318, 19
      %v1329 = vpop.permute.xlu0 %1328
      %1330 = vrot.lane.b32.xlu0 %v1319, 19
      %v1331 = vpop.permute.xlu0 %1330
      %v1332 = vsel %vm329, %v1325, %v1327
      %v1333 = vsel %vm329, %v1327, %v1329
      %v1334 = vsel %vm329, %v1329, %v1331
      %1338 = vst [vmem:[#allocation2] sm:$0xff] %v1332
      %1339 = vst [vmem:[#allocation2 + $0x8] sm:$0xff] %v1333
      %1340 = vst [vmem:[#allocation2 + $0x10] sm:$0xff] %v1334
      %v1341 = vld [vmem:[#allocation3] sm:$0xff]
      %v1342 = vld [vmem:[#allocation3 + $0x8] sm:$0xff]
      %v1343 = vld [vmem:[#allocation3 + $0x10] sm:$0xff]
      %v1344 = vld [vmem:[#allocation3 + $0x18] sm:$0xff]
      %1349 = vrot.lane.b32.xlu0 %v1341, 18
      %v1350 = vpop.permute.xlu0 %1349
      %1351 = vrot.lane.b32.xlu0 %v1342, 18
      %v1352 = vpop.permute.xlu0 %1351
      %1353 = vrot.lane.b32.xlu0 %v1343, 18
      %v1354 = vpop.permute.xlu0 %1353
      %1355 = vrot.lane.b32.xlu0 %v1344, 18
      %v1356 = vpop.permute.xlu0 %1355
      %v1357 = vsel %vm404, %v1350, %v1352
      %v1358 = vsel %vm404, %v1352, %v1354
      %v1359 = vsel %vm404, %v1354, %v1356
      %1363 = vst [vmem:[#allocation2 + $0x18] sm:$0xff] %v1357
      %1364 = vst [vmem:[#allocation2 + $0x20] sm:$0xff] %v1358
      %1365 = vst [vmem:[#allocation2 + $0x28] sm:$0xff] %v1359
      %v1366 = vld [vmem:[#allocation3] sm:$0xff]
      %v1367 = vld [vmem:[#allocation3 + $0x8] sm:$0xff]
      %v1368 = vld [vmem:[#allocation3 + $0x10] sm:$0xff]
      %v1369 = vld [vmem:[#allocation3 + $0x18] sm:$0xff]
      %1374 = vrot.lane.b32.xlu0 %v1366, 17
      %v1375 = vpop.permute.xlu0 %1374
      %1376 = vrot.lane.b32.xlu0 %v1367, 17
      %v1377 = vpop.permute.xlu0 %1376
      %1378 = vrot.lane.b32.xlu0 %v1368, 17
      %v1379 = vpop.permute.xlu0 %1378
      %1380 = vrot.lane.b32.xlu0 %v1369, 17
      %v1381 = vpop.permute.xlu0 %1380
      %v1382 = vsel %vm479, %v1375, %v1377
      %v1383 = vsel %vm479, %v1377, %v1379
      %v1384 = vsel %vm479, %v1379, %v1381
      %1388 = vst [vmem:[#allocation2 + $0x30] sm:$0xff] %v1382
      %1389 = vst [vmem:[#allocation2 + $0x38] sm:$0xff] %v1383
      %1390 = vst [vmem:[#allocation2 + $0x40] sm:$0xff] %v1384
      %v1391 = vld [vmem:[#allocation3] sm:$0xff]
      %v1392 = vld [vmem:[#allocation3 + $0x8] sm:$0xff]
      %v1393 = vld [vmem:[#allocation3 + $0x10] sm:$0xff]
      %v1394 = vld [vmem:[#allocation3 + $0x18] sm:$0xff]
      %1399 = vrot.lane.b32.xlu0 %v1391, 1
      %v1400 = vpop.permute.xlu0 %1399
      %1401 = vrot.lane.b32.xlu0 %v1392, 1
      %v1402 = vpop.permute.xlu0 %1401
      %1403 = vrot.lane.b32.xlu0 %v1393, 1
      %v1404 = vpop.permute.xlu0 %1403
      %1405 = vrot.lane.b32.xlu0 %v1394, 1
      %v1406 = vpop.permute.xlu0 %1405
      %v1407 = vsel %vm554, %v1400, %v1402
      %v1408 = vsel %vm554, %v1402, %v1404
      %v1409 = vsel %vm554, %v1404, %v1406
      %1413 = vst [vmem:[#allocation2 + $0x48] sm:$0xff] %v1407
      %1414 = vst [vmem:[#allocation2 + $0x50] sm:$0xff] %v1408
      %1415 = vst [vmem:[#allocation2 + $0x58] sm:$0xff] %v1409
      %v1416 = vld [vmem:[#allocation3 + $0x8] sm:$0xff]
      %v1417 = vld [vmem:[#allocation3 + $0x10] sm:$0xff]
      %v1418 = vld [vmem:[#allocation3 + $0x18] sm:$0xff]
      %1419 = vst [vmem:[#allocation2 + $0x60] sm:$0xff] %v1416
      %1420 = vst [vmem:[#allocation2 + $0x68] sm:$0xff] %v1417
      %1421 = vst [vmem:[#allocation2 + $0x70] sm:$0xff] %v1418
      %v1422 = vld [vmem:[#allocation3 + $0x8] sm:$0xff]
      %v1423 = vld [vmem:[#allocation3 + $0x10] sm:$0xff]
      %v1424 = vld [vmem:[#allocation3 + $0x18] sm:$0xff]
      %v1425 = vld [vmem:[#allocation3 + $0x20] sm:$0xff]
      %1430 = vrot.lane.b32.xlu0 %v1422, 127
      %v1431 = vpop.permute.xlu0 %1430
      %1432 = vrot.lane.b32.xlu0 %v1423, 127
      %v1433 = vpop.permute.xlu0 %1432
      %1434 = vrot.lane.b32.xlu0 %v1424, 127
      %v1435 = vpop.permute.xlu0 %1434
      %1436 = vrot.lane.b32.xlu0 %v1425, 127
      %v1437 = vpop.permute.xlu0 %1436
      %v1438 = vsel %vm675, %v1431, %v1433
      %v1439 = vsel %vm675, %v1433, %v1435
      %v1440 = vsel %vm675, %v1435, %v1437
      %1444 = vst [vmem:[#allocation2 + $0x78] sm:$0xff] %v1438
      %1445 = vst [vmem:[#allocation2 + $0x80] sm:$0xff] %v1439
      %1446 = vst [vmem:[#allocation2 + $0x88] sm:$0xff] %v1440
      %v1447 = vld [vmem:[#allocation3 + $0x8] sm:$0xff]
      %v1448 = vld [vmem:[#allocation3 + $0x10] sm:$0xff]
      %v1449 = vld [vmem:[#allocation3 + $0x18] sm:$0xff]
      %v1450 = vld [vmem:[#allocation3 + $0x20] sm:$0xff]
      %1455 = vrot.lane.b32.xlu0 %v1447, 111
      %v1456 = vpop.permute.xlu0 %1455
      %1457 = vrot.lane.b32.xlu0 %v1448, 111
      %v1458 = vpop.permute.xlu0 %1457
      %1459 = vrot.lane.b32.xlu0 %v1449, 111
      %v1460 = vpop.permute.xlu0 %1459
      %1461 = vrot.lane.b32.xlu0 %v1450, 111
      %v1462 = vpop.permute.xlu0 %1461
      %v1463 = vsel %vm750, %v1456, %v1458
      %v1464 = vsel %vm750, %v1458, %v1460
      %v1465 = vsel %vm750, %v1460, %v1462
      %1469 = vst [vmem:[#allocation2 + $0x90] sm:$0xff] %v1463
      %1470 = vst [vmem:[#allocation2 + $0x98] sm:$0xff] %v1464
      %1471 = vst [vmem:[#allocation2 + $0xa0] sm:$0xff] %v1465
      %v1472 = vld [vmem:[#allocation3 + $0x8] sm:$0xff]
      %v1473 = vld [vmem:[#allocation3 + $0x10] sm:$0xff]
      %v1474 = vld [vmem:[#allocation3 + $0x18] sm:$0xff]
      %v1475 = vld [vmem:[#allocation3 + $0x20] sm:$0xff]
      %1480 = vrot.lane.b32.xlu0 %v1472, 110
      %v1481 = vpop.permute.xlu0 %1480
      %1482 = vrot.lane.b32.xlu0 %v1473, 110
      %v1483 = vpop.permute.xlu0 %1482
      %1484 = vrot.lane.b32.xlu0 %v1474, 110
      %v1485 = vpop.permute.xlu0 %1484
      %1486 = vrot.lane.b32.xlu0 %v1475, 110
      %v1487 = vpop.permute.xlu0 %1486
      %v1488 = vsel %vm825, %v1481, %v1483
      %v1489 = vsel %vm825, %v1483, %v1485
      %v1490 = vsel %vm825, %v1485, %v1487
      %1494 = vst [vmem:[#allocation2 + $0xa8] sm:$0xff] %v1488
      %1495 = vst [vmem:[#allocation2 + $0xb0] sm:$0xff] %v1489
      %1496 = vst [vmem:[#allocation2 + $0xb8] sm:$0xff] %v1490
      %v1497 = vld [vmem:[#allocation3 + $0x8] sm:$0xff]
      %v1498 = vld [vmem:[#allocation3 + $0x10] sm:$0xff]
      %v1499 = vld [vmem:[#allocation3 + $0x18] sm:$0xff]
      %v1500 = vld [vmem:[#allocation3 + $0x20] sm:$0xff]
      %1505 = vrot.lane.b32.xlu0 %v1497, 109
      %v1506 = vpop.permute.xlu0 %1505
      %1507 = vrot.lane.b32.xlu0 %v1498, 109
      %v1508 = vpop.permute.xlu0 %1507
      %1509 = vrot.lane.b32.xlu0 %v1499, 109
      %v1510 = vpop.permute.xlu0 %1509
      %1511 = vrot.lane.b32.xlu0 %v1500, 109
      %v1512 = vpop.permute.xlu0 %1511
      %v1513 = vsel %vm900, %v1506, %v1508
      %v1514 = vsel %vm900, %v1508, %v1510
      %v1515 = vsel %vm900, %v1510, %v1512
      %1519 = vst [vmem:[#allocation2 + $0xc0] sm:$0xff] %v1513
      %1520 = vst [vmem:[#allocation2 + $0xc8] sm:$0xff] %v1514
      %1521 = vst [vmem:[#allocation2 + $0xd0] sm:$0xff] %v1515
      %v1522 = vld [vmem:[%s4] sm:$0xff]
      %v1523 = vld [vmem:[%s4 + $0x8] sm:$0xff]
      %v1524 = vld [vmem:[#allocation2] sm:$0xff]
      %v1525 = vld [vmem:[#allocation2 + $0x8] sm:$0xff]
      %v1526 = vld [vmem:[#allocation2 + $0x10] sm:$0xff]
      %v1527 = vld [vmem:[#allocation2 + $0x18] sm:$0xff]
      %v1528 = vld [vmem:[#allocation2 + $0x20] sm:$0xff]
      %v1529 = vld [vmem:[#allocation2 + $0x28] sm:$0xff]
      %v1530 = vld [vmem:[#allocation2 + $0x30] sm:$0xff]
      %v1531 = vld [vmem:[#allocation2 + $0x38] sm:$0xff]
      %v1532 = vld [vmem:[#allocation2 + $0x40] sm:$0xff]
      %v1533 = vld [vmem:[#allocation2 + $0x48] sm:$0xff]
      %v1534 = vld [vmem:[#allocation2 + $0x50] sm:$0xff]
      %v1535 = vld [vmem:[#allocation2 + $0x58] sm:$0xff]
      %v1536 = vld [vmem:[#allocation2 + $0x60] sm:$0xff]
      %v1537 = vld [vmem:[#allocation2 + $0x68] sm:$0xff]
      %v1538 = vld [vmem:[#allocation2 + $0x70] sm:$0xff]
      %v1539 = vld [vmem:[#allocation2 + $0x78] sm:$0xff]
      %v1540 = vld [vmem:[#allocation2 + $0x80] sm:$0xff]
      %v1541 = vld [vmem:[#allocation2 + $0x88] sm:$0xff]
      %v1542 = vld [vmem:[#allocation2 + $0x90] sm:$0xff]
      %v1543 = vld [vmem:[#allocation2 + $0x98] sm:$0xff]
      %v1544 = vld [vmem:[#allocation2 + $0xa0] sm:$0xff]
      %v1545 = vld [vmem:[#allocation2 + $0xa8] sm:$0xff]
      %v1546 = vld [vmem:[#allocation2 + $0xb0] sm:$0xff]
      %v1547 = vld [vmem:[#allocation2 + $0xb8] sm:$0xff]
      %v1548 = vld [vmem:[#allocation2 + $0xc0] sm:$0xff]
      %v1549 = vld [vmem:[#allocation2 + $0xc8] sm:$0xff]
      %v1550 = vld [vmem:[#allocation2 + $0xd0] sm:$0xff]
      %v1551 = vld [vmem:[%s5] sm:$0xff]
      %v1552 = vld [vmem:[%s5 + $0x8] sm:$0xff]
      %1554 = vset.pattern.permute.xlu0 0
      %1555 = vperm.xlu0 %1554, %v1551
      %v1556 = vpop.permute.xlu0 %1555
      %1559 = vset.pattern.permute.xlu0 0
      %1560 = vperm.xlu0 %1559, %v1552
      %v1561 = vpop.permute.xlu0 %1560
      %v1565 = vunpack.c.l.b16 %v1522
      %v1566 = vunpack.c.h.b16 %v1522
      %v1567 = vunpack.c.l.b16 %v1523
      %v1568 = vunpack.c.h.b16 %v1523
      %v1569 = vpack.c.b16 %v1567, %v1565
      %v1570 = vpack.c.b16 %v1568, %v1566
      %vm1572 = vcmask 130048
      %v1574 = vsel %vm1572, %v1570, 0
      %1576 = vmatprep.subr.bf16.mxu0 %v1525
      %1577 = vmatpush1.bf16.msra.mxu0 %v1524
      %1578 = vmatprep.subr.bf16.mxu0 %v1528
      %1579 = vmatpush1.bf16.msra.mxu0 %v1527
      %1580 = vmatprep.subr.bf16.mxu0 %v1531
      %1581 = vmatpush1.bf16.msra.mxu0 %v1530
      %1582 = vmatprep.subr.bf16.mxu0 %v1534
      %1583 = vmatpush1.bf16.msra.mxu0 %v1533
      %1584 = vmatprep.subr.bf16.mxu0 %v1537
      %1585 = vmatpush1.bf16.msra.mxu0 %v1536
      %1586 = vmatprep.subr.bf16.mxu0 %v1540
      %1587 = vmatpush1.bf16.msra.mxu0 %v1539
      %1588 = vmatprep.subr.bf16.mxu0 %v1543
      %1589 = vmatpush1.bf16.msra.mxu0 %v1542
      %1590 = vmatprep.subr.bf16.mxu0 %v1546
      %1591 = vmatpush1.bf16.msra.mxu0 %v1545
      %1592 = vmatprep.subr.bf16.mxu0 %v1549
      %1593 = vmatpush1.bf16.msra.mxu0 %v1548
      %1594 = vmatprep.subr.bf16.mxu0 0
      %1595 = vmatpush1.bf16.msra.mxu0 0
      %1596 = vmatprep.subr.bf16.mxu0 0
      %1597 = vmatpush1.bf16.msra.mxu0 0
      %1598 = vmatprep.subr.bf16.mxu0 0
      %1599 = vmatpush1.bf16.msra.mxu0 0
      %1600 = vmatprep.subr.bf16.mxu0 0
      %1601 = vmatpush1.bf16.msra.mxu0 0
      %1602 = vmatprep.subr.bf16.mxu0 0
      %1603 = vmatpush1.bf16.msra.mxu0 0
      %1604 = vmatprep.subr.bf16.mxu0 0
      %1605 = vmatpush1.bf16.msra.mxu0 0
      %1606 = vmatprep.subr.bf16.mxu0 0
      %1607 = vmatpush1.bf16.msra.mxu0 0
      %1608 = vmatprep.mubr.bf16.mxu0 %v1574
      %1609 = vmatmul.mubr.bf16.gmra.mrb[0].mxu0 %v1569
      %v1610 = vpop.f32.mrb[0].mxu0
      %v1611 = vadd.f32 %v1556, %v1610
      %v1612 = vpop.f32.mrb[0].mxu0
      %v1613 = vadd.f32 %v1556, %v1612
      %v1614 = vpop.f32.mrb[0].mxu0
      %v1615 = vadd.f32 %v1561, %v1614
      %v1616 = vpop.f32.mrb[0].mxu0
      %v1617 = vadd.f32 %v1561, %v1616
      %1618 = vdwg.mxu0
      %1619 = vmatprep.subr.bf16.mxu0 0
      %1620 = vmatpush1.bf16.msra.mxu0 %v1526
      %1621 = vmatprep.subr.bf16.mxu0 0
      %1622 = vmatpush1.bf16.msra.mxu0 %v1529
      %1623 = vmatprep.subr.bf16.mxu0 0
      %1624 = vmatpush1.bf16.msra.mxu0 %v1532
      %1625 = vmatprep.subr.bf16.mxu0 0
      %1626 = vmatpush1.bf16.msra.mxu0 %v1535
      %1627 = vmatprep.subr.bf16.mxu0 0
      %1628 = vmatpush1.bf16.msra.mxu0 %v1538
      %1629 = vmatprep.subr.bf16.mxu0 0
      %1630 = vmatpush1.bf16.msra.mxu0 %v1541
      %1631 = vmatprep.subr.bf16.mxu0 0
      %1632 = vmatpush1.bf16.msra.mxu0 %v1544
      %1633 = vmatprep.subr.bf16.mxu0 0
      %1634 = vmatpush1.bf16.msra.mxu0 %v1547
      %1635 = vmatprep.subr.bf16.mxu0 0
      %1636 = vmatpush1.bf16.msra.mxu0 %v1550
      %1637 = vmatprep.subr.bf16.mxu0 0
      %1638 = vmatpush1.bf16.msra.mxu0 0
      %1639 = vmatprep.subr.bf16.mxu0 0
      %1640 = vmatpush1.bf16.msra.mxu0 0
      %1641 = vmatprep.subr.bf16.mxu0 0
      %1642 = vmatpush1.bf16.msra.mxu0 0
      %1643 = vmatprep.subr.bf16.mxu0 0
      %1644 = vmatpush1.bf16.msra.mxu0 0
      %1645 = vmatprep.subr.bf16.mxu0 0
      %1646 = vmatpush1.bf16.msra.mxu0 0
      %1647 = vmatprep.subr.bf16.mxu0 0
      %1648 = vmatpush1.bf16.msra.mxu0 0
      %1649 = vmatprep.subr.bf16.mxu0 0
      %1650 = vmatpush1.bf16.msra.mxu0 0
      %1651 = vmatprep.mubr.bf16.mxu0 %v1574
      %1652 = vmatmul.mubr.bf16.gmra.mrb[0].mxu0 %v1569
      %v1653 = vpop.f32.mrb[0].mxu0
      %v1654 = vadd.f32 %v1556, %v1653
      %v1655 = vpop.f32.mrb[0].mxu0
      %v1656 = vpop.f32.mrb[0].mxu0
      %v1657 = vadd.f32 %v1561, %v1656
      %v1658 = vpop.f32.mrb[0].mxu0
      %1659 = vdwg.mxu0
      %v1660 = vld [vmem:[#allocation4] sm:$0xff]
      %v1661 = vld [vmem:[#allocation4 + $0x8] sm:$0xff]
      %v1662 = vld [vmem:[#allocation4 + $0x10] sm:$0xff]
      %v1663 = vld [vmem:[#allocation4 + $0x18] sm:$0xff]
      %v1664 = vld [vmem:[#allocation4 + $0x20] sm:$0xff]
      %v1665 = vld [vmem:[#allocation4 + $0x28] sm:$0xff]
      %v1666 = vadd.f32 %v1611, %v1660
      %v1667 = vadd.f32 %v1613, %v1661
      %v1668 = vadd.f32 %v1654, %v1662
      %v1669 = vadd.f32 %v1615, %v1663
      %v1670 = vadd.f32 %v1617, %v1664
      %v1671 = vadd.f32 %v1657, %v1665
      %v1672 = vmax.f32 %v1666, 0.0
      %v1673 = vmax.f32 %v1667, 0.0
      %v1674 = vmax.f32 %v1668, 0.0
      %v1675 = vmax.f32 %v1669, 0.0
      %v1676 = vmax.f32 %v1670, 0.0
      %v1677 = vmax.f32 %v1671, 0.0
      %v1678 = vmul.f32 %v1672, %v1290
      %v1679 = vmul.f32 %v1673, %v1294
      %v1680 = vmul.f32 %v1674, %v1298
      %v1681 = vmul.f32 %v1675, %v1290
      %v1682 = vmul.f32 %v1676, %v1294
      %v1683 = vmul.f32 %v1677, %v1298
      %1684 = vst [vmem:[%s298] sm:$0xff] 0.0
      %1685 = vst [vmem:[%s298 + $0x28] sm:$0xff] 0.0
      %1686 = vst [vmem:[%s298 + $0x20] sm:$0xff] 0.0
      %1687 = vst [vmem:[%s298 + $0x48] sm:$0xff] 0.0
      %1688 = vst [vmem:[%s298 + $0x8] sm:$0xff] %v1678
      %1689 = vst [vmem:[%s298 + $0x10] sm:$0xff] %v1679
      %1690 = vst [vmem:[%s298 + $0x18] sm:$0xff] %v1680
      %1691 = vst [vmem:[%s298 + $0x30] sm:$0xff] %v1681
      %1692 = vst [vmem:[%s298 + $0x38] sm:$0xff] %v1682
      %1693 = vst [vmem:[%s298 + $0x40] sm:$0xff] %v1683
      %p1694 = scmp.lt.s32.totalorder %s18, 1
      %s1695 = scalar_select %p1694, %s18, 1
      %s1696 = smul.addr %s1695, 10
      %s1697 = smul.addr %s1696, 8
      %s1698 = scalar_lea.vmem %s7, %s1697
      // Predicated region
      $region49: #{resnet18_blocks_up_forward.3} parent=47 // pred_check
        %p1699 = pneg %p193
      $region50: #{resnet18_blocks_up_forward.3} parent=47 // pred_check_branch
        %1701 = sbr.rel (%p1699) target = $region52
      $region51: #{resnet18_blocks_up_forward.3} parent=47 // pred_region
        _
      $region52: #{resnet18_blocks_up_forward.3} parent=47 // pred_fallthru
        _
    $region48: #{resnet18_blocks_up_forward.3} parent=5 // pred_fallthru
      _
    %p1702 = scmp.le.s32.totalorder 2, %s13
    // Predicated region
    $region53: #{resnet18_blocks_up_forward.3} parent=5 // pred_check
      %p1703 = pneg %p1702
    $region54: #{resnet18_blocks_up_forward.3} parent=5 // pred_check_branch
      %1705 = sbr.rel (%p1703) target = $region56
    $region55: #{resnet18_blocks_up_forward.3} parent=5 // pred_region
      %s1706 = ssub.s32 %s13, 2
      // Predicated region
      $region57: #{resnet18_blocks_up_forward.3} parent=55 // pred_check
        %p1707 = pneg %p199
      $region58: #{resnet18_blocks_up_forward.3} parent=55 // pred_check_branch
        %1709 = sbr.rel (%p1707) target = $region60
      $region59: #{resnet18_blocks_up_forward.3} parent=55 // pred_region
        %p1710 = scmp.lt.s32.totalorder %s19, 1
        %s1711 = scalar_select %p1710, %s19, 1
        %s1712 = smul.addr %s1711, 10
        %s1713 = smul.addr %s1712, 8
        %s1714 = scalar_lea.vmem %s7, %s1713
      $region60: #{resnet18_blocks_up_forward.3} parent=55 // pred_fallthru
        _
    $region56: #{resnet18_blocks_up_forward.3} parent=5 // pred_fallthru
      _
  $region6: #{resnet18_blocks_up_forward.3} parent=0 // loop_footer
    %s17 = sadd.s32 1, %s13
  $region7: #{resnet18_blocks_up_forward.3} parent=0 // loop_footer_branch
    %12 = sbr.rel target = $region3
  $region8: #{resnet18_blocks_up_forward.3} parent=0 // loop_exit
    _

</llo_original>
